<compile_context>
chip_gen: v6e
topology: v6e:2x2x1
jax: 0.10.0
libtpu: 0.0.40
codegen_flags: <defaults>
</compile_context>

<pallas_src>
import numpy as np
import jax
import jax.numpy as jnp
from jax import lax
from jax.experimental import pallas as pl
from jax.experimental.pallas import tpu as pltpu


def _get_concat_index(batch_size):
    """Same as ContrastiveLoss.getConcatIndex: all pairs (i, j) with i < j (flat 1-D int32)."""
    res = [[], []]
    for index in range(batch_size - 1):
        res[0] += [index for _ in range(batch_size - index - 1)]
        res[1] += list(range(index + 1, batch_size))
    return (np.asarray(res[0], dtype=np.int32),
            np.asarray(res[1], dtype=np.int32))


def _gram_cosine_kernel(x_ref, o_ref):
    """x_ref: (TC, B, D) class-tile of features; o_ref: (TC, B, B) per-class cosine matrix."""
    x = x_ref[...].astype(jnp.float32)                              # (TC, B, D)

    # MXU: per-class Gram matrix G[c] = X[c] @ X[c]^T (contraction over the lane axis D),
    # f32 accumulation, full-precision passes. The batch (class) dim is the leading dim,
    # which is the layout Mosaic lowers batched dot_general to most directly.
    g = jnp.einsum(
        "cbd,ced->cbe", x, x,
        preferred_element_type=jnp.float32,
        precision=lax.Precision.HIGHEST,
    )                                                               # (TC, B, B)

    # Squared norms: reuse the x tile already in vregs (VPU mul + XLU lane reduce).
    n2 = jnp.sum(x * x, axis=-1)                                    # (TC, B)
    denom2 = n2[:, :, None] * n2[:, None, :]                        # (TC, B, B)

    # cos = dot * rsqrt(max(||a||^2*||b||^2, 1e-18)) == dot / max(||a||*||b||, 1e-9).
    # rsqrt runs in the otherwise-idle EUP slot.
    o_ref[...] = (g * lax.rsqrt(jnp.maximum(denom2, jnp.float32(1e-18)))).astype(o_ref.dtype)


def _choose_class_tile(C, B, D, itemsize, budget_bytes=6 * 1024 * 1024):
    """Largest class-tile whose (input + output) block stays under ~6 MiB. BlockSpec
    double-buffers both operands, so the resident pipeline footprint is ~2x that, which
    stays comfortably under the scoped-VMEM limit on v5e/v6e/v7x."""
    per_class = B * D * itemsize + B * B * 4
    tc = max(1, int(budget_bytes // max(per_class, 1)))
    return min(tc, C)


def _cosine_gram_pallas(x_cbd):
    """x_cbd: (C, B, D) -> (C, B, B) cosine-similarity matrix per class (f32)."""
    C, B, D = x_cbd.shape
    tc = _choose_class_tile(C, B, D, x_cbd.dtype.itemsize)
    return pl.pallas_call(
        _gram_cosine_kernel,
        out_shape=jax.ShapeDtypeStruct((C, B, B), jnp.float32),
        grid_spec=pltpu.PrefetchScalarGridSpec(
            num_scalar_prefetch=0,
            grid=(pl.cdiv(C, tc),),
            # Last two block dims equal the full array dims -> no (8,128) divisibility issue.
            in_specs=[pl.BlockSpec((tc, B, D), lambda c: (c, 0, 0))],
            out_specs=pl.BlockSpec((tc, B, B), lambda c: (c, 0, 0)),
        ),
        compiler_params=pltpu.CompilerParams(
            dimension_semantics=("parallel",),
            vmem_limit_bytes=32 * 1024 * 1024,
        ),
    )(x_cbd)


class ContrastiveLossPallas:
    """JAX/Pallas port of ContrastiveLoss (reduce=None, size_average=None)."""

    def __init__(self, batch_size, reduce=None, size_average=None):
        self.batch_size = batch_size
        self.reduce = reduce
        self.size_average = size_average
        idx0, idx1 = _get_concat_index(batch_size)   # flat 1-D int32 host constants
        self.idx0 = jnp.asarray(idx0)
        self.idx1 = jnp.asarray(idx1)

    def __call__(self, inputs, target):
        # inputs: (B, C, D); target: (B, C) (unused on the default reduce=None path).
        del target
        # Layout plumbing only: present (C, B, D) so the kernel batches over classes
        # with featureDim on the lane/contraction axis. One extra HBM pass over X,
        # versus the (B-1)x amplification a per-pair gather would cost.
        x_cbd = jnp.swapaxes(inputs, 0, 1)           # (C, B, D)
        cos_cbb = _cosine_gram_pallas(x_cbd)         # (C, B, B) f32
        # Slice the i<j pair triangle in glue (tiny compared to the kernel traffic).
        dist_cp = cos_cbb[:, self.idx0, self.idx1]   # (C, P)
        distance = jnp.swapaxes(dist_cp, 0, 1)       # (P, C)
        # Match PyTorch CosineSimilarity: output dtype follows the input dtype.
        return distance.astype(inputs.dtype)
        # reduce=True branch intentionally not implemented (see TODO at top of file).


def _reference_distance(inputs, idx0, idx1):
    a = inputs[idx0].astype(jnp.float32)
    b = inputs[idx1].astype(jnp.float32)
    dot = jnp.sum(a * b, axis=-1)
    na = jnp.sqrt(jnp.sum(a * a, axis=-1))
    nb = jnp.sqrt(jnp.sum(b * b, axis=-1))
    return dot / jnp.maximum(na * nb, 1e-9)


if __name__ == "__main__":
    B, C, D = 4, 8, 32  # batch=4, classNum=8, featureDim=32
    key = jax.random.PRNGKey(0)
    k_x, k_t = jax.random.split(key)
    x = jax.random.normal(k_x, (B, C, D), dtype=jnp.float32)
    target = jax.random.randint(k_t, (B, C), minval=-1, maxval=2).astype(jnp.float32)

    loss_mod = ContrastiveLossPallas(batch_size=B)
    fwd = jax.jit(loss_mod.__call__)
    dist = fwd(x, target)
    dist = jax.block_until_ready(dist)

    ref = _reference_distance(x, loss_mod.idx0, loss_mod.idx1)
    assert dist.shape == (B * (B - 1) // 2, C)
    # Tolerance covers reduced-precision MXU passes for f32 matmul; any real indexing or
    # formula bug produces O(0.1..1) errors, far above this threshold.
    np.testing.assert_allclose(np.asarray(dist), np.asarray(ref), rtol=5e-3, atol=5e-3)

    print("KERNEL_OK")
</pallas_src>

<mosaic_0001>
module attributes {stable_mosaic.version = 11 : i64} {
  func.func @_gram_cosine_kernel(%arg0: i32, %arg1: memref<8x4x32xf32, #tpu.memory_space<vmem>>, %arg2: memref<8x4x4xf32, #tpu.memory_space<vmem>>) attributes {dimension_semantics = [#tpu.dimension_semantics<parallel>], iteration_bounds = array<i64: 1>, scalar_prefetch = 0 : i64, scratch_operands = 0 : i64, tpu.core_type = #tpu.core_type<tc>, window_params = [{transform_indices = @transform_0, window_bounds = array<i64: 8, 4, 32>}, {transform_indices = @transform_1, window_bounds = array<i64: 8, 4, 4>}]} {
    %c0 = arith.constant 0 : index
    %c0_0 = arith.constant 0 : index
    %c0_1 = arith.constant 0 : index
    %0 = vector.load %arg1[%c0, %c0_0, %c0_1] : memref<8x4x32xf32, #tpu.memory_space<vmem>>, vector<8x4x32xf32>
    "tpu.trace_start"() <{level = 10 : i32, message = "cbd,ced->cbe"}> : () -> ()
    %cst = arith.constant dense<0.000000e+00> : vector<8x4x4xf32>
    %1 = tpu.matmul %0, %0, %cst {dimension_numbers = #tpu.dot_dimension_numbers<[2], [2], [1], [1], [0, 0, 0, 1, 1, 1], [0], [0]>, precision = #tpu.contract_precision<fp32>} : vector<8x4x32xf32>, vector<8x4x32xf32>, vector<8x4x4xf32> -> vector<8x4x4xf32>
    "tpu.trace_stop"() : () -> ()
    %2 = arith.mulf %0, %0 : vector<8x4x32xf32>
    %cst_2 = arith.constant dense<0.000000e+00> : vector<8x4xf32>
    %3 = vector.multi_reduction <add>, %2, %cst_2 [2] : vector<8x4x32xf32> to vector<8x4xf32>
    %4 = vector.shape_cast %3 : vector<8x4xf32> to vector<8x4x1xf32>
    %5 = vector.shape_cast %3 : vector<8x4xf32> to vector<8x1x4xf32>
    %6 = vector.broadcast %4 : vector<8x4x1xf32> to vector<8x4x4xf32>
    %7 = vector.broadcast %5 : vector<8x1x4xf32> to vector<8x4x4xf32>
    %8 = arith.mulf %6, %7 : vector<8x4x4xf32>
    %cst_3 = arith.constant 1.000000e-18 : f32
    %9 = vector.broadcast %cst_3 : f32 to vector<8x4x4xf32>
    %10 = arith.maximumf %8, %9 : vector<8x4x4xf32>
    %11 = math.rsqrt %10 : vector<8x4x4xf32>
    %12 = arith.mulf %1, %11 : vector<8x4x4xf32>
    %c0_4 = arith.constant 0 : index
    %c0_5 = arith.constant 0 : index
    %c0_6 = arith.constant 0 : index
    %13 = vector.load %arg2[%c0_4, %c0_5, %c0_6] : memref<8x4x4xf32, #tpu.memory_space<vmem>>, vector<8x4x4xf32>
    tpu.vector_store %arg2[%c0_4, %c0_5, %c0_6], %12 {strides = array<i32>} : memref<8x4x4xf32, #tpu.memory_space<vmem>>, vector<8x4x4xf32>,
    return
  }
  func.func @transform_0(%arg0: i32) -> (i32, i32, i32) {
    %c0_i32 = arith.constant 0 : i32
    %c0_i32_0 = arith.constant 0 : i32
    %c0_i32_1 = arith.constant 0 : i32
    return %arg0, %c0_i32, %c0_i32_0 : i32, i32, i32
  }
  func.func @transform_1(%arg0: i32) -> (i32, i32, i32) {
    %c0_i32 = arith.constant 0 : i32
    %c0_i32_0 = arith.constant 0 : i32
    %c0_i32_1 = arith.constant 0 : i32
    return %arg0, %c0_i32, %c0_i32_0 : i32, i32, i32
  }
}

</mosaic_0001>

<llo_original>
// kernel: a_call__.1
$region0: #{a_call__.1}
  #allocation0 [shape = 'u32[]', space=smem, size = 0x4, offset = 0x4, fixed_abs, tag = 'smem constant byte address 0x4 - core index']
  #allocation1 [shape = 'u32[144,128]{1,0:T(1,128)}', space=vmem, size = 0x12000, scoped, tag = 'internal scratch']
  %s0 = inlined_call_operand.vmem [shape: f32[8,4,32], index: 0, kind: input, shape index: {}]
  %s1 = inlined_call_operand.vmem [shape: f32[8,4,4], index: 1, kind: output, shape index: {}]
  %s2 = sld [smem:[#allocation0]]
  $region14: #{a_call__.1} parent=0
    _
  %s4 = ssub.s32 1, %s2
  %s5 = scalar_select 0, %s4, %s2
  // Predicated region
  $region2: #{a_call__.1} parent=0 // pred_check
    _
  $region3: #{a_call__.1} parent=0 // pred_check_branch
    %7 = sbr.rel (0) target = $region5
  $region4: #{a_call__.1} parent=0 // pred_region
    _
  $region5: #{a_call__.1} parent=0 // pred_fallthru
    _
  %v8 = vld [vmem:[%s0] sm:$0xf]
  %v9 = vld [vmem:[%s0 + $0x4] sm:$0xf]
  %v10 = vld [vmem:[%s0 + $0x8] sm:$0xf]
  %v11 = vld [vmem:[%s0 + $0xc] sm:$0xf]
  %v12 = vld [vmem:[%s0 + $0x10] sm:$0xf]
  %v13 = vld [vmem:[%s0 + $0x14] sm:$0xf]
  %v14 = vld [vmem:[%s0 + $0x18] sm:$0xf]
  %v15 = vld [vmem:[%s0 + $0x1c] sm:$0xf]
  %vm16 = vcmask 261120
  %v18 = vsel %vm16, %v8, 0
  %20 = vmatprep.subr.mxu0 0.0
  %21 = vmatpush1.xpose.msra.mxu0 0.0
  %22 = vmatprep.subr.mxu0 0.0
  %23 = vmatpush1.xpose.msra.mxu0 0.0
  %24 = vmatprep.subr.mxu0 0.0
  %25 = vmatpush1.xpose.msra.mxu0 0.0
  %26 = vmatprep.subr.mxu0 0.0
  %27 = vmatpush1.xpose.msra.mxu0 0.0
  %28 = vmatprep.subr.mxu0 0.0
  %29 = vmatpush1.xpose.msra.mxu0 0.0
  %30 = vmatprep.subr.mxu0 0.0
  %31 = vmatpush1.xpose.msra.mxu0 0.0
  %32 = vmatprep.subr.mxu0 0.0
  %33 = vmatpush1.xpose.msra.mxu0 0.0
  %34 = vmatprep.subr.mxu0 0.0
  %35 = vmatpush1.xpose.msra.mxu0 0.0
  %36 = vmatprep.subr.mxu0 0.0
  %37 = vmatpush1.xpose.msra.mxu0 0.0
  %38 = vmatprep.subr.mxu0 0.0
  %39 = vmatpush1.xpose.msra.mxu0 0.0
  %40 = vmatprep.subr.mxu0 0.0
  %41 = vmatpush1.xpose.msra.mxu0 0.0
  %42 = vmatprep.subr.mxu0 0.0
  %43 = vmatpush1.xpose.msra.mxu0 0.0
  %44 = vmatprep.subr.mxu0 0.0
  %45 = vmatpush1.xpose.msra.mxu0 0.0
  %46 = vmatprep.subr.mxu0 0.0
  %47 = vmatpush1.xpose.msra.mxu0 0.0
  %48 = vmatprep.subr.mxu0 0.0
  %49 = vmatpush1.xpose.msra.mxu0 0.0
  %50 = vmatprep.subr.mxu0 0.0
  %v51 = vand.u32 %v18, 4294901760
  %52 = vmatpush1.xpose.msra.mxu0 %v51
  %53 = vmatprep.subr.mxu0 0.0
  %54 = vmatpush2.xpose.msra.mxu0 0.0
  %55 = vmatprep.subr.mxu0 0.0
  %56 = vmatpush2.xpose.msra.mxu0 0.0
  %57 = vmatprep.subr.mxu0 0.0
  %58 = vmatpush2.xpose.msra.mxu0 0.0
  %59 = vmatprep.subr.mxu0 0.0
  %60 = vmatpush2.xpose.msra.mxu0 0.0
  %61 = vmatprep.subr.mxu0 0.0
  %62 = vmatpush2.xpose.msra.mxu0 0.0
  %63 = vmatprep.subr.mxu0 0.0
  %64 = vmatpush2.xpose.msra.mxu0 0.0
  %65 = vmatprep.subr.mxu0 0.0
  %66 = vmatpush2.xpose.msra.mxu0 0.0
  %67 = vmatprep.subr.mxu0 0.0
  %68 = vmatpush2.xpose.msra.mxu0 0.0
  %69 = vmatprep.subr.mxu0 0.0
  %70 = vmatpush2.xpose.msra.mxu0 0.0
  %71 = vmatprep.subr.mxu0 0.0
  %72 = vmatpush2.xpose.msra.mxu0 0.0
  %73 = vmatprep.subr.mxu0 0.0
  %74 = vmatpush2.xpose.msra.mxu0 0.0
  %75 = vmatprep.subr.mxu0 0.0
  %76 = vmatpush2.xpose.msra.mxu0 0.0
  %77 = vmatprep.subr.mxu0 0.0
  %78 = vmatpush2.xpose.msra.mxu0 0.0
  %79 = vmatprep.subr.mxu0 0.0
  %80 = vmatpush2.xpose.msra.mxu0 0.0
  %81 = vmatprep.subr.mxu0 0.0
  %82 = vmatpush2.xpose.msra.mxu0 0.0
  %83 = vmatprep.subr.mxu0 0.0
  %84 = vmatpush2.xpose.msra.mxu0 0.0
  %85 = vmatprep.mubr.f32.mxu0 0.0
  %v86 = vand.u32 %v18, 4294901760
  %v87 = vsub.f32 %v18, %v86
  %v88 = vand.u32 %v87, 4294901760
  %v89 = vsub.f32 %v87, %v88
  %v90 = vand.u32 %v89, 4294901760
  %91 = vmatmul.mubr.f32.gmra.mxu0 %v90
  %v92 = vpop.f32.mrf.mxu0
  %v93 = vadd.f32 0.0, %v92
  %v94 = vpop.f32.mrf.mxu0
  %95 = vdwg.mxu0
  %96 = vmatprep.subr.mxu0 0.0
  %97 = vmatpush1.xpose.msra.mxu0 0.0
  %98 = vmatprep.subr.mxu0 0.0
  %99 = vmatpush1.xpose.msra.mxu0 0.0
  %100 = vmatprep.subr.mxu0 0.0
  %101 = vmatpush1.xpose.msra.mxu0 0.0
  %102 = vmatprep.subr.mxu0 0.0
  %103 = vmatpush1.xpose.msra.mxu0 0.0
  %104 = vmatprep.subr.mxu0 0.0
  %105 = vmatpush1.xpose.msra.mxu0 0.0
  %106 = vmatprep.subr.mxu0 0.0
  %107 = vmatpush1.xpose.msra.mxu0 0.0
  %108 = vmatprep.subr.mxu0 0.0
  %109 = vmatpush1.xpose.msra.mxu0 0.0
  %110 = vmatprep.subr.mxu0 0.0
  %111 = vmatpush1.xpose.msra.mxu0 0.0
  %112 = vmatprep.subr.mxu0 0.0
  %113 = vmatpush1.xpose.msra.mxu0 0.0
  %114 = vmatprep.subr.mxu0 0.0
  %115 = vmatpush1.xpose.msra.mxu0 0.0
  %116 = vmatprep.subr.mxu0 0.0
  %117 = vmatpush1.xpose.msra.mxu0 0.0
  %118 = vmatprep.subr.mxu0 0.0
  %119 = vmatpush1.xpose.msra.mxu0 0.0
  %120 = vmatprep.subr.mxu0 0.0
  %121 = vmatpush1.xpose.msra.mxu0 0.0
  %122 = vmatprep.subr.mxu0 0.0
  %123 = vmatpush1.xpose.msra.mxu0 0.0
  %124 = vmatprep.subr.mxu0 0.0
  %125 = vmatpush1.xpose.msra.mxu0 0.0
  %126 = vmatprep.subr.mxu0 0.0
  %v127 = vand.u32 %v18, 4294901760
  %v128 = vsub.f32 %v18, %v127
  %v129 = vand.u32 %v128, 4294901760
  %v130 = vsub.f32 %v128, %v129
  %v131 = vand.u32 %v130, 4294901760
  %132 = vmatpush1.xpose.msra.mxu0 %v131
  %133 = vmatprep.subr.mxu0 0.0
  %134 = vmatpush2.xpose.msra.mxu0 0.0
  %135 = vmatprep.subr.mxu0 0.0
  %136 = vmatpush2.xpose.msra.mxu0 0.0
  %137 = vmatprep.subr.mxu0 0.0
  %138 = vmatpush2.xpose.msra.mxu0 0.0
  %139 = vmatprep.subr.mxu0 0.0
  %140 = vmatpush2.xpose.msra.mxu0 0.0
  %141 = vmatprep.subr.mxu0 0.0
  %142 = vmatpush2.xpose.msra.mxu0 0.0
  %143 = vmatprep.subr.mxu0 0.0
  %144 = vmatpush2.xpose.msra.mxu0 0.0
  %145 = vmatprep.subr.mxu0 0.0
  %146 = vmatpush2.xpose.msra.mxu0 0.0
  %147 = vmatprep.subr.mxu0 0.0
  %148 = vmatpush2.xpose.msra.mxu0 0.0
  %149 = vmatprep.subr.mxu0 0.0
  %150 = vmatpush2.xpose.msra.mxu0 0.0
  %151 = vmatprep.subr.mxu0 0.0
  %152 = vmatpush2.xpose.msra.mxu0 0.0
  %153 = vmatprep.subr.mxu0 0.0
  %154 = vmatpush2.xpose.msra.mxu0 0.0
  %155 = vmatprep.subr.mxu0 0.0
  %156 = vmatpush2.xpose.msra.mxu0 0.0
  %157 = vmatprep.subr.mxu0 0.0
  %158 = vmatpush2.xpose.msra.mxu0 0.0
  %159 = vmatprep.subr.mxu0 0.0
  %160 = vmatpush2.xpose.msra.mxu0 0.0
  %161 = vmatprep.subr.mxu0 0.0
  %162 = vmatpush2.xpose.msra.mxu0 0.0
  %163 = vmatprep.subr.mxu0 0.0
  %164 = vmatpush2.xpose.msra.mxu0 0.0
  %165 = vmatprep.mubr.f32.mxu0 0.0
  %v166 = vand.u32 %v18, 4294901760
  %167 = vmatmul.mubr.f32.gmra.mxu0 %v166
  %v168 = vpop.f32.mrf.mxu0
  %v169 = vadd.f32 %v93, %v168
  %v170 = vpop.f32.mrf.mxu0
  %171 = vdwg.mxu0
  %172 = vmatprep.subr.mxu0 0.0
  %173 = vmatpush1.xpose.msra.mxu0 0.0
  %174 = vmatprep.subr.mxu0 0.0
  %175 = vmatpush1.xpose.msra.mxu0 0.0
  %176 = vmatprep.subr.mxu0 0.0
  %177 = vmatpush1.xpose.msra.mxu0 0.0
  %178 = vmatprep.subr.mxu0 0.0
  %179 = vmatpush1.xpose.msra.mxu0 0.0
  %180 = vmatprep.subr.mxu0 0.0
  %181 = vmatpush1.xpose.msra.mxu0 0.0
  %182 = vmatprep.subr.mxu0 0.0
  %183 = vmatpush1.xpose.msra.mxu0 0.0
  %184 = vmatprep.subr.mxu0 0.0
  %185 = vmatpush1.xpose.msra.mxu0 0.0
  %186 = vmatprep.subr.mxu0 0.0
  %187 = vmatpush1.xpose.msra.mxu0 0.0
  %188 = vmatprep.subr.mxu0 0.0
  %189 = vmatpush1.xpose.msra.mxu0 0.0
  %190 = vmatprep.subr.mxu0 0.0
  %191 = vmatpush1.xpose.msra.mxu0 0.0
  %192 = vmatprep.subr.mxu0 0.0
  %193 = vmatpush1.xpose.msra.mxu0 0.0
  %194 = vmatprep.subr.mxu0 0.0
  %195 = vmatpush1.xpose.msra.mxu0 0.0
  %196 = vmatprep.subr.mxu0 0.0
  %197 = vmatpush1.xpose.msra.mxu0 0.0
  %198 = vmatprep.subr.mxu0 0.0
  %199 = vmatpush1.xpose.msra.mxu0 0.0
  %200 = vmatprep.subr.mxu0 0.0
  %201 = vmatpush1.xpose.msra.mxu0 0.0
  %202 = vmatprep.subr.mxu0 0.0
  %v203 = vand.u32 %v18, 4294901760
  %v204 = vsub.f32 %v18, %v203
  %205 = vmatpush1.xpose.msra.mxu0 %v204
  %206 = vmatprep.subr.mxu0 0.0
  %207 = vmatpush2.xpose.msra.mxu0 0.0
  %208 = vmatprep.subr.mxu0 0.0
  %209 = vmatpush2.xpose.msra.mxu0 0.0
  %210 = vmatprep.subr.mxu0 0.0
  %211 = vmatpush2.xpose.msra.mxu0 0.0
  %212 = vmatprep.subr.mxu0 0.0
  %213 = vmatpush2.xpose.msra.mxu0 0.0
  %214 = vmatprep.subr.mxu0 0.0
  %215 = vmatpush2.xpose.msra.mxu0 0.0
  %216 = vmatprep.subr.mxu0 0.0
  %217 = vmatpush2.xpose.msra.mxu0 0.0
  %218 = vmatprep.subr.mxu0 0.0
  %219 = vmatpush2.xpose.msra.mxu0 0.0
  %220 = vmatprep.subr.mxu0 0.0
  %221 = vmatpush2.xpose.msra.mxu0 0.0
  %222 = vmatprep.subr.mxu0 0.0
  %223 = vmatpush2.xpose.msra.mxu0 0.0
  %224 = vmatprep.subr.mxu0 0.0
  %225 = vmatpush2.xpose.msra.mxu0 0.0
  %226 = vmatprep.subr.mxu0 0.0
  %227 = vmatpush2.xpose.msra.mxu0 0.0
  %228 = vmatprep.subr.mxu0 0.0
  %229 = vmatpush2.xpose.msra.mxu0 0.0
  %230 = vmatprep.subr.mxu0 0.0
  %231 = vmatpush2.xpose.msra.mxu0 0.0
  %232 = vmatprep.subr.mxu0 0.0
  %233 = vmatpush2.xpose.msra.mxu0 0.0
  %234 = vmatprep.subr.mxu0 0.0
  %235 = vmatpush2.xpose.msra.mxu0 0.0
  %236 = vmatprep.subr.mxu0 0.0
  %237 = vmatpush2.xpose.msra.mxu0 0.0
  %238 = vmatprep.mubr.f32.mxu0 0.0
  %v239 = vand.u32 %v18, 4294901760
  %v240 = vsub.f32 %v18, %v239
  %241 = vmatmul.mubr.f32.gmra.mxu0 %v240
  %v242 = vpop.f32.mrf.mxu0
  %v243 = vadd.f32 %v169, %v242
  %v244 = vpop.f32.mrf.mxu0
  %245 = vdwg.mxu0
  %246 = vmatprep.subr.mxu0 0.0
  %247 = vmatpush1.xpose.msra.mxu0 0.0
  %248 = vmatprep.subr.mxu0 0.0
  %249 = vmatpush1.xpose.msra.mxu0 0.0
  %250 = vmatprep.subr.mxu0 0.0
  %251 = vmatpush1.xpose.msra.mxu0 0.0
  %252 = vmatprep.subr.mxu0 0.0
  %253 = vmatpush1.xpose.msra.mxu0 0.0
  %254 = vmatprep.subr.mxu0 0.0
  %255 = vmatpush1.xpose.msra.mxu0 0.0
  %256 = vmatprep.subr.mxu0 0.0
  %257 = vmatpush1.xpose.msra.mxu0 0.0
  %258 = vmatprep.subr.mxu0 0.0
  %259 = vmatpush1.xpose.msra.mxu0 0.0
  %260 = vmatprep.subr.mxu0 0.0
  %261 = vmatpush1.xpose.msra.mxu0 0.0
  %262 = vmatprep.subr.mxu0 0.0
  %263 = vmatpush1.xpose.msra.mxu0 0.0
  %264 = vmatprep.subr.mxu0 0.0
  %265 = vmatpush1.xpose.msra.mxu0 0.0
  %266 = vmatprep.subr.mxu0 0.0
  %267 = vmatpush1.xpose.msra.mxu0 0.0
  %268 = vmatprep.subr.mxu0 0.0
  %269 = vmatpush1.xpose.msra.mxu0 0.0
  %270 = vmatprep.subr.mxu0 0.0
  %271 = vmatpush1.xpose.msra.mxu0 0.0
  %272 = vmatprep.subr.mxu0 0.0
  %273 = vmatpush1.xpose.msra.mxu0 0.0
  %274 = vmatprep.subr.mxu0 0.0
  %275 = vmatpush1.xpose.msra.mxu0 0.0
  %276 = vmatprep.subr.mxu0 0.0
  %v277 = vand.u32 %v18, 4294901760
  %278 = vmatpush1.xpose.msra.mxu0 %v277
  %279 = vmatprep.subr.mxu0 0.0
  %280 = vmatpush2.xpose.msra.mxu0 0.0
  %281 = vmatprep.subr.mxu0 0.0
  %282 = vmatpush2.xpose.msra.mxu0 0.0
  %283 = vmatprep.subr.mxu0 0.0
  %284 = vmatpush2.xpose.msra.mxu0 0.0
  %285 = vmatprep.subr.mxu0 0.0
  %286 = vmatpush2.xpose.msra.mxu0 0.0
  %287 = vmatprep.subr.mxu0 0.0
  %288 = vmatpush2.xpose.msra.mxu0 0.0
  %289 = vmatprep.subr.mxu0 0.0
  %290 = vmatpush2.xpose.msra.mxu0 0.0
  %291 = vmatprep.subr.mxu0 0.0
  %292 = vmatpush2.xpose.msra.mxu0 0.0
  %293 = vmatprep.subr.mxu0 0.0
  %294 = vmatpush2.xpose.msra.mxu0 0.0
  %295 = vmatprep.subr.mxu0 0.0
  %296 = vmatpush2.xpose.msra.mxu0 0.0
  %297 = vmatprep.subr.mxu0 0.0
  %298 = vmatpush2.xpose.msra.mxu0 0.0
  %299 = vmatprep.subr.mxu0 0.0
  %300 = vmatpush2.xpose.msra.mxu0 0.0
  %301 = vmatprep.subr.mxu0 0.0
  %302 = vmatpush2.xpose.msra.mxu0 0.0
  %303 = vmatprep.subr.mxu0 0.0
  %304 = vmatpush2.xpose.msra.mxu0 0.0
  %305 = vmatprep.subr.mxu0 0.0
  %306 = vmatpush2.xpose.msra.mxu0 0.0
  %307 = vmatprep.subr.mxu0 0.0
  %308 = vmatpush2.xpose.msra.mxu0 0.0
  %309 = vmatprep.subr.mxu0 0.0
  %310 = vmatpush2.xpose.msra.mxu0 0.0
  %311 = vmatprep.mubr.f32.mxu0 0.0
  %v312 = vand.u32 %v18, 4294901760
  %v313 = vsub.f32 %v18, %v312
  %v314 = vand.u32 %v313, 4294901760
  %315 = vmatmul.mubr.f32.gmra.mxu0 %v314
  %v316 = vpop.f32.mrf.mxu0
  %v317 = vadd.f32 %v243, %v316
  %v318 = vpop.f32.mrf.mxu0
  %319 = vdwg.mxu0
  %320 = vmatprep.subr.mxu0 0.0
  %321 = vmatpush1.xpose.msra.mxu0 0.0
  %322 = vmatprep.subr.mxu0 0.0
  %323 = vmatpush1.xpose.msra.mxu0 0.0
  %324 = vmatprep.subr.mxu0 0.0
  %325 = vmatpush1.xpose.msra.mxu0 0.0
  %326 = vmatprep.subr.mxu0 0.0
  %327 = vmatpush1.xpose.msra.mxu0 0.0
  %328 = vmatprep.subr.mxu0 0.0
  %329 = vmatpush1.xpose.msra.mxu0 0.0
  %330 = vmatprep.subr.mxu0 0.0
  %331 = vmatpush1.xpose.msra.mxu0 0.0
  %332 = vmatprep.subr.mxu0 0.0
  %333 = vmatpush1.xpose.msra.mxu0 0.0
  %334 = vmatprep.subr.mxu0 0.0
  %335 = vmatpush1.xpose.msra.mxu0 0.0
  %336 = vmatprep.subr.mxu0 0.0
  %337 = vmatpush1.xpose.msra.mxu0 0.0
  %338 = vmatprep.subr.mxu0 0.0
  %339 = vmatpush1.xpose.msra.mxu0 0.0
  %340 = vmatprep.subr.mxu0 0.0
  %341 = vmatpush1.xpose.msra.mxu0 0.0
  %342 = vmatprep.subr.mxu0 0.0
  %343 = vmatpush1.xpose.msra.mxu0 0.0
  %344 = vmatprep.subr.mxu0 0.0
  %345 = vmatpush1.xpose.msra.mxu0 0.0
  %346 = vmatprep.subr.mxu0 0.0
  %347 = vmatpush1.xpose.msra.mxu0 0.0
  %348 = vmatprep.subr.mxu0 0.0
  %349 = vmatpush1.xpose.msra.mxu0 0.0
  %350 = vmatprep.subr.mxu0 0.0
  %v351 = vand.u32 %v18, 4294901760
  %v352 = vsub.f32 %v18, %v351
  %v353 = vand.u32 %v352, 4294901760
  %354 = vmatpush1.xpose.msra.mxu0 %v353
  %355 = vmatprep.subr.mxu0 0.0
  %356 = vmatpush2.xpose.msra.mxu0 0.0
  %357 = vmatprep.subr.mxu0 0.0
  %358 = vmatpush2.xpose.msra.mxu0 0.0
  %359 = vmatprep.subr.mxu0 0.0
  %360 = vmatpush2.xpose.msra.mxu0 0.0
  %361 = vmatprep.subr.mxu0 0.0
  %362 = vmatpush2.xpose.msra.mxu0 0.0
  %363 = vmatprep.subr.mxu0 0.0
  %364 = vmatpush2.xpose.msra.mxu0 0.0
  %365 = vmatprep.subr.mxu0 0.0
  %366 = vmatpush2.xpose.msra.mxu0 0.0
  %367 = vmatprep.subr.mxu0 0.0
  %368 = vmatpush2.xpose.msra.mxu0 0.0
  %369 = vmatprep.subr.mxu0 0.0
  %370 = vmatpush2.xpose.msra.mxu0 0.0
  %371 = vmatprep.subr.mxu0 0.0
  %372 = vmatpush2.xpose.msra.mxu0 0.0
  %373 = vmatprep.subr.mxu0 0.0
  %374 = vmatpush2.xpose.msra.mxu0 0.0
  %375 = vmatprep.subr.mxu0 0.0
  %376 = vmatpush2.xpose.msra.mxu0 0.0
  %377 = vmatprep.subr.mxu0 0.0
  %378 = vmatpush2.xpose.msra.mxu0 0.0
  %379 = vmatprep.subr.mxu0 0.0
  %380 = vmatpush2.xpose.msra.mxu0 0.0
  %381 = vmatprep.subr.mxu0 0.0
  %382 = vmatpush2.xpose.msra.mxu0 0.0
  %383 = vmatprep.subr.mxu0 0.0
  %384 = vmatpush2.xpose.msra.mxu0 0.0
  %385 = vmatprep.subr.mxu0 0.0
  %386 = vmatpush2.xpose.msra.mxu0 0.0
  %387 = vmatprep.mubr.f32.mxu0 0.0
  %v388 = vand.u32 %v18, 4294901760
  %389 = vmatmul.mubr.f32.gmra.mxu0 %v388
  %v390 = vpop.f32.mrf.mxu0
  %v391 = vadd.f32 %v317, %v390
  %v392 = vpop.f32.mrf.mxu0
  %393 = vdwg.mxu0
  %394 = vmatprep.subr.mxu0 0.0
  %395 = vmatpush1.xpose.msra.mxu0 0.0
  %396 = vmatprep.subr.mxu0 0.0
  %397 = vmatpush1.xpose.msra.mxu0 0.0
  %398 = vmatprep.subr.mxu0 0.0
  %399 = vmatpush1.xpose.msra.mxu0 0.0
  %400 = vmatprep.subr.mxu0 0.0
  %401 = vmatpush1.xpose.msra.mxu0 0.0
  %402 = vmatprep.subr.mxu0 0.0
  %403 = vmatpush1.xpose.msra.mxu0 0.0
  %404 = vmatprep.subr.mxu0 0.0
  %405 = vmatpush1.xpose.msra.mxu0 0.0
  %406 = vmatprep.subr.mxu0 0.0
  %407 = vmatpush1.xpose.msra.mxu0 0.0
  %408 = vmatprep.subr.mxu0 0.0
  %409 = vmatpush1.xpose.msra.mxu0 0.0
  %410 = vmatprep.subr.mxu0 0.0
  %411 = vmatpush1.xpose.msra.mxu0 0.0
  %412 = vmatprep.subr.mxu0 0.0
  %413 = vmatpush1.xpose.msra.mxu0 0.0
  %414 = vmatprep.subr.mxu0 0.0
  %415 = vmatpush1.xpose.msra.mxu0 0.0
  %416 = vmatprep.subr.mxu0 0.0
  %417 = vmatpush1.xpose.msra.mxu0 0.0
  %418 = vmatprep.subr.mxu0 0.0
  %419 = vmatpush1.xpose.msra.mxu0 0.0
  %420 = vmatprep.subr.mxu0 0.0
  %421 = vmatpush1.xpose.msra.mxu0 0.0
  %422 = vmatprep.subr.mxu0 0.0
  %423 = vmatpush1.xpose.msra.mxu0 0.0
  %424 = vmatprep.subr.mxu0 0.0
  %v425 = vand.u32 %v18, 4294901760
  %426 = vmatpush1.xpose.msra.mxu0 %v425
  %427 = vmatprep.subr.mxu0 0.0
  %428 = vmatpush2.xpose.msra.mxu0 0.0
  %429 = vmatprep.subr.mxu0 0.0
  %430 = vmatpush2.xpose.msra.mxu0 0.0
  %431 = vmatprep.subr.mxu0 0.0
  %432 = vmatpush2.xpose.msra.mxu0 0.0
  %433 = vmatprep.subr.mxu0 0.0
  %434 = vmatpush2.xpose.msra.mxu0 0.0
  %435 = vmatprep.subr.mxu0 0.0
  %436 = vmatpush2.xpose.msra.mxu0 0.0
  %437 = vmatprep.subr.mxu0 0.0
  %438 = vmatpush2.xpose.msra.mxu0 0.0
  %439 = vmatprep.subr.mxu0 0.0
  %440 = vmatpush2.xpose.msra.mxu0 0.0
  %441 = vmatprep.subr.mxu0 0.0
  %442 = vmatpush2.xpose.msra.mxu0 0.0
  %443 = vmatprep.subr.mxu0 0.0
  %444 = vmatpush2.xpose.msra.mxu0 0.0
  %445 = vmatprep.subr.mxu0 0.0
  %446 = vmatpush2.xpose.msra.mxu0 0.0
  %447 = vmatprep.subr.mxu0 0.0
  %448 = vmatpush2.xpose.msra.mxu0 0.0
  %449 = vmatprep.subr.mxu0 0.0
  %450 = vmatpush2.xpose.msra.mxu0 0.0
  %451 = vmatprep.subr.mxu0 0.0
  %452 = vmatpush2.xpose.msra.mxu0 0.0
  %453 = vmatprep.subr.mxu0 0.0
  %454 = vmatpush2.xpose.msra.mxu0 0.0
  %455 = vmatprep.subr.mxu0 0.0
  %456 = vmatpush2.xpose.msra.mxu0 0.0
  %457 = vmatprep.subr.mxu0 0.0
  %458 = vmatpush2.xpose.msra.mxu0 0.0
  %459 = vmatprep.mubr.f32.mxu0 0.0
  %v460 = vand.u32 %v18, 4294901760
  %461 = vmatmul.mubr.f32.gmra.mxu0 %v460
  %v462 = vpop.f32.mrf.mxu0
  %v463 = vadd.f32 %v391, %v462
  %v464 = vpop.f32.mrf.mxu0
  %465 = vdwg.mxu0
  %v467 = vsel %vm16, %v9, 0
  %469 = vmatprep.subr.mxu0 0.0
  %470 = vmatpush1.xpose.msra.mxu0 0.0
  %471 = vmatprep.subr.mxu0 0.0
  %472 = vmatpush1.xpose.msra.mxu0 0.0
  %473 = vmatprep.subr.mxu0 0.0
  %474 = vmatpush1.xpose.msra.mxu0 0.0
  %475 = vmatprep.subr.mxu0 0.0
  %476 = vmatpush1.xpose.msra.mxu0 0.0
  %477 = vmatprep.subr.mxu0 0.0
  %478 = vmatpush1.xpose.msra.mxu0 0.0
  %479 = vmatprep.subr.mxu0 0.0
  %480 = vmatpush1.xpose.msra.mxu0 0.0
  %481 = vmatprep.subr.mxu0 0.0
  %482 = vmatpush1.xpose.msra.mxu0 0.0
  %483 = vmatprep.subr.mxu0 0.0
  %484 = vmatpush1.xpose.msra.mxu0 0.0
  %485 = vmatprep.subr.mxu0 0.0
  %486 = vmatpush1.xpose.msra.mxu0 0.0
  %487 = vmatprep.subr.mxu0 0.0
  %488 = vmatpush1.xpose.msra.mxu0 0.0
  %489 = vmatprep.subr.mxu0 0.0
  %490 = vmatpush1.xpose.msra.mxu0 0.0
  %491 = vmatprep.subr.mxu0 0.0
  %492 = vmatpush1.xpose.msra.mxu0 0.0
  %493 = vmatprep.subr.mxu0 0.0
  %494 = vmatpush1.xpose.msra.mxu0 0.0
  %495 = vmatprep.subr.mxu0 0.0
  %496 = vmatpush1.xpose.msra.mxu0 0.0
  %497 = vmatprep.subr.mxu0 0.0
  %498 = vmatpush1.xpose.msra.mxu0 0.0
  %499 = vmatprep.subr.mxu0 0.0
  %v500 = vand.u32 %v467, 4294901760
  %501 = vmatpush1.xpose.msra.mxu0 %v500
  %502 = vmatprep.subr.mxu0 0.0
  %503 = vmatpush2.xpose.msra.mxu0 0.0
  %504 = vmatprep.subr.mxu0 0.0
  %505 = vmatpush2.xpose.msra.mxu0 0.0
  %506 = vmatprep.subr.mxu0 0.0
  %507 = vmatpush2.xpose.msra.mxu0 0.0
  %508 = vmatprep.subr.mxu0 0.0
  %509 = vmatpush2.xpose.msra.mxu0 0.0
  %510 = vmatprep.subr.mxu0 0.0
  %511 = vmatpush2.xpose.msra.mxu0 0.0
  %512 = vmatprep.subr.mxu0 0.0
  %513 = vmatpush2.xpose.msra.mxu0 0.0
  %514 = vmatprep.subr.mxu0 0.0
  %515 = vmatpush2.xpose.msra.mxu0 0.0
  %516 = vmatprep.subr.mxu0 0.0
  %517 = vmatpush2.xpose.msra.mxu0 0.0
  %518 = vmatprep.subr.mxu0 0.0
  %519 = vmatpush2.xpose.msra.mxu0 0.0
  %520 = vmatprep.subr.mxu0 0.0
  %521 = vmatpush2.xpose.msra.mxu0 0.0
  %522 = vmatprep.subr.mxu0 0.0
  %523 = vmatpush2.xpose.msra.mxu0 0.0
  %524 = vmatprep.subr.mxu0 0.0
  %525 = vmatpush2.xpose.msra.mxu0 0.0
  %526 = vmatprep.subr.mxu0 0.0
  %527 = vmatpush2.xpose.msra.mxu0 0.0
  %528 = vmatprep.subr.mxu0 0.0
  %529 = vmatpush2.xpose.msra.mxu0 0.0
  %530 = vmatprep.subr.mxu0 0.0
  %531 = vmatpush2.xpose.msra.mxu0 0.0
  %532 = vmatprep.subr.mxu0 0.0
  %533 = vmatpush2.xpose.msra.mxu0 0.0
  %534 = vmatprep.mubr.f32.mxu0 0.0
  %v535 = vand.u32 %v467, 4294901760
  %v536 = vsub.f32 %v467, %v535
  %v537 = vand.u32 %v536, 4294901760
  %v538 = vsub.f32 %v536, %v537
  %v539 = vand.u32 %v538, 4294901760
  %540 = vmatmul.mubr.f32.gmra.mxu0 %v539
  %v541 = vpop.f32.mrf.mxu0
  %v542 = vadd.f32 0.0, %v541
  %v543 = vpop.f32.mrf.mxu0
  %544 = vdwg.mxu0
  %545 = vmatprep.subr.mxu0 0.0
  %546 = vmatpush1.xpose.msra.mxu0 0.0
  %547 = vmatprep.subr.mxu0 0.0
  %548 = vmatpush1.xpose.msra.mxu0 0.0
  %549 = vmatprep.subr.mxu0 0.0
  %550 = vmatpush1.xpose.msra.mxu0 0.0
  %551 = vmatprep.subr.mxu0 0.0
  %552 = vmatpush1.xpose.msra.mxu0 0.0
  %553 = vmatprep.subr.mxu0 0.0
  %554 = vmatpush1.xpose.msra.mxu0 0.0
  %555 = vmatprep.subr.mxu0 0.0
  %556 = vmatpush1.xpose.msra.mxu0 0.0
  %557 = vmatprep.subr.mxu0 0.0
  %558 = vmatpush1.xpose.msra.mxu0 0.0
  %559 = vmatprep.subr.mxu0 0.0
  %560 = vmatpush1.xpose.msra.mxu0 0.0
  %561 = vmatprep.subr.mxu0 0.0
  %562 = vmatpush1.xpose.msra.mxu0 0.0
  %563 = vmatprep.subr.mxu0 0.0
  %564 = vmatpush1.xpose.msra.mxu0 0.0
  %565 = vmatprep.subr.mxu0 0.0
  %566 = vmatpush1.xpose.msra.mxu0 0.0
  %567 = vmatprep.subr.mxu0 0.0
  %568 = vmatpush1.xpose.msra.mxu0 0.0
  %569 = vmatprep.subr.mxu0 0.0
  %570 = vmatpush1.xpose.msra.mxu0 0.0
  %571 = vmatprep.subr.mxu0 0.0
  %572 = vmatpush1.xpose.msra.mxu0 0.0
  %573 = vmatprep.subr.mxu0 0.0
  %574 = vmatpush1.xpose.msra.mxu0 0.0
  %575 = vmatprep.subr.mxu0 0.0
  %v576 = vand.u32 %v467, 4294901760
  %v577 = vsub.f32 %v467, %v576
  %v578 = vand.u32 %v577, 4294901760
  %v579 = vsub.f32 %v577, %v578
  %v580 = vand.u32 %v579, 4294901760
  %581 = vmatpush1.xpose.msra.mxu0 %v580
  %582 = vmatprep.subr.mxu0 0.0
  %583 = vmatpush2.xpose.msra.mxu0 0.0
  %584 = vmatprep.subr.mxu0 0.0
  %585 = vmatpush2.xpose.msra.mxu0 0.0
  %586 = vmatprep.subr.mxu0 0.0
  %587 = vmatpush2.xpose.msra.mxu0 0.0
  %588 = vmatprep.subr.mxu0 0.0
  %589 = vmatpush2.xpose.msra.mxu0 0.0
  %590 = vmatprep.subr.mxu0 0.0
  %591 = vmatpush2.xpose.msra.mxu0 0.0
  %592 = vmatprep.subr.mxu0 0.0
  %593 = vmatpush2.xpose.msra.mxu0 0.0
  %594 = vmatprep.subr.mxu0 0.0
  %595 = vmatpush2.xpose.msra.mxu0 0.0
  %596 = vmatprep.subr.mxu0 0.0
  %597 = vmatpush2.xpose.msra.mxu0 0.0
  %598 = vmatprep.subr.mxu0 0.0
  %599 = vmatpush2.xpose.msra.mxu0 0.0
  %600 = vmatprep.subr.mxu0 0.0
  %601 = vmatpush2.xpose.msra.mxu0 0.0
  %602 = vmatprep.subr.mxu0 0.0
  %603 = vmatpush2.xpose.msra.mxu0 0.0
  %604 = vmatprep.subr.mxu0 0.0
  %605 = vmatpush2.xpose.msra.mxu0 0.0
  %606 = vmatprep.subr.mxu0 0.0
  %607 = vmatpush2.xpose.msra.mxu0 0.0
  %608 = vmatprep.subr.mxu0 0.0
  %609 = vmatpush2.xpose.msra.mxu0 0.0
  %610 = vmatprep.subr.mxu0 0.0
  %611 = vmatpush2.xpose.msra.mxu0 0.0
  %612 = vmatprep.subr.mxu0 0.0
  %613 = vmatpush2.xpose.msra.mxu0 0.0
  %614 = vmatprep.mubr.f32.mxu0 0.0
  %v615 = vand.u32 %v467, 4294901760
  %616 = vmatmul.mubr.f32.gmra.mxu0 %v615
  %v617 = vpop.f32.mrf.mxu0
  %v618 = vadd.f32 %v542, %v617
  %v619 = vpop.f32.mrf.mxu0
  %620 = vdwg.mxu0
  %621 = vmatprep.subr.mxu0 0.0
  %622 = vmatpush1.xpose.msra.mxu0 0.0
  %623 = vmatprep.subr.mxu0 0.0
  %624 = vmatpush1.xpose.msra.mxu0 0.0
  %625 = vmatprep.subr.mxu0 0.0
  %626 = vmatpush1.xpose.msra.mxu0 0.0
  %627 = vmatprep.subr.mxu0 0.0
  %628 = vmatpush1.xpose.msra.mxu0 0.0
  %629 = vmatprep.subr.mxu0 0.0
  %630 = vmatpush1.xpose.msra.mxu0 0.0
  %631 = vmatprep.subr.mxu0 0.0
  %632 = vmatpush1.xpose.msra.mxu0 0.0
  %633 = vmatprep.subr.mxu0 0.0
  %634 = vmatpush1.xpose.msra.mxu0 0.0
  %635 = vmatprep.subr.mxu0 0.0
  %636 = vmatpush1.xpose.msra.mxu0 0.0
  %637 = vmatprep.subr.mxu0 0.0
  %638 = vmatpush1.xpose.msra.mxu0 0.0
  %639 = vmatprep.subr.mxu0 0.0
  %640 = vmatpush1.xpose.msra.mxu0 0.0
  %641 = vmatprep.subr.mxu0 0.0
  %642 = vmatpush1.xpose.msra.mxu0 0.0
  %643 = vmatprep.subr.mxu0 0.0
  %644 = vmatpush1.xpose.msra.mxu0 0.0
  %645 = vmatprep.subr.mxu0 0.0
  %646 = vmatpush1.xpose.msra.mxu0 0.0
  %647 = vmatprep.subr.mxu0 0.0
  %648 = vmatpush1.xpose.msra.mxu0 0.0
  %649 = vmatprep.subr.mxu0 0.0
  %650 = vmatpush1.xpose.msra.mxu0 0.0
  %651 = vmatprep.subr.mxu0 0.0
  %v652 = vand.u32 %v467, 4294901760
  %v653 = vsub.f32 %v467, %v652
  %654 = vmatpush1.xpose.msra.mxu0 %v653
  %655 = vmatprep.subr.mxu0 0.0
  %656 = vmatpush2.xpose.msra.mxu0 0.0
  %657 = vmatprep.subr.mxu0 0.0
  %658 = vmatpush2.xpose.msra.mxu0 0.0
  %659 = vmatprep.subr.mxu0 0.0
  %660 = vmatpush2.xpose.msra.mxu0 0.0
  %661 = vmatprep.subr.mxu0 0.0
  %662 = vmatpush2.xpose.msra.mxu0 0.0
  %663 = vmatprep.subr.mxu0 0.0
  %664 = vmatpush2.xpose.msra.mxu0 0.0
  %665 = vmatprep.subr.mxu0 0.0
  %666 = vmatpush2.xpose.msra.mxu0 0.0
  %667 = vmatprep.subr.mxu0 0.0
  %668 = vmatpush2.xpose.msra.mxu0 0.0
  %669 = vmatprep.subr.mxu0 0.0
  %670 = vmatpush2.xpose.msra.mxu0 0.0
  %671 = vmatprep.subr.mxu0 0.0
  %672 = vmatpush2.xpose.msra.mxu0 0.0
  %673 = vmatprep.subr.mxu0 0.0
  %674 = vmatpush2.xpose.msra.mxu0 0.0
  %675 = vmatprep.subr.mxu0 0.0
  %676 = vmatpush2.xpose.msra.mxu0 0.0
  %677 = vmatprep.subr.mxu0 0.0
  %678 = vmatpush2.xpose.msra.mxu0 0.0
  %679 = vmatprep.subr.mxu0 0.0
  %680 = vmatpush2.xpose.msra.mxu0 0.0
  %681 = vmatprep.subr.mxu0 0.0
  %682 = vmatpush2.xpose.msra.mxu0 0.0
  %683 = vmatprep.subr.mxu0 0.0
  %684 = vmatpush2.xpose.msra.mxu0 0.0
  %685 = vmatprep.subr.mxu0 0.0
  %686 = vmatpush2.xpose.msra.mxu0 0.0
  %687 = vmatprep.mubr.f32.mxu0 0.0
  %v688 = vand.u32 %v467, 4294901760
  %v689 = vsub.f32 %v467, %v688
  %690 = vmatmul.mubr.f32.gmra.mxu0 %v689
  %v691 = vpop.f32.mrf.mxu0
  %v692 = vadd.f32 %v618, %v691
  %v693 = vpop.f32.mrf.mxu0
  %694 = vdwg.mxu0
  %695 = vmatprep.subr.mxu0 0.0
  %696 = vmatpush1.xpose.msra.mxu0 0.0
  %697 = vmatprep.subr.mxu0 0.0
  %698 = vmatpush1.xpose.msra.mxu0 0.0
  %699 = vmatprep.subr.mxu0 0.0
  %700 = vmatpush1.xpose.msra.mxu0 0.0
  %701 = vmatprep.subr.mxu0 0.0
  %702 = vmatpush1.xpose.msra.mxu0 0.0
  %703 = vmatprep.subr.mxu0 0.0
  %704 = vmatpush1.xpose.msra.mxu0 0.0
  %705 = vmatprep.subr.mxu0 0.0
  %706 = vmatpush1.xpose.msra.mxu0 0.0
  %707 = vmatprep.subr.mxu0 0.0
  %708 = vmatpush1.xpose.msra.mxu0 0.0
  %709 = vmatprep.subr.mxu0 0.0
  %710 = vmatpush1.xpose.msra.mxu0 0.0
  %711 = vmatprep.subr.mxu0 0.0
  %712 = vmatpush1.xpose.msra.mxu0 0.0
  %713 = vmatprep.subr.mxu0 0.0
  %714 = vmatpush1.xpose.msra.mxu0 0.0
  %715 = vmatprep.subr.mxu0 0.0
  %716 = vmatpush1.xpose.msra.mxu0 0.0
  %717 = vmatprep.subr.mxu0 0.0
  %718 = vmatpush1.xpose.msra.mxu0 0.0
  %719 = vmatprep.subr.mxu0 0.0
  %720 = vmatpush1.xpose.msra.mxu0 0.0
  %721 = vmatprep.subr.mxu0 0.0
  %722 = vmatpush1.xpose.msra.mxu0 0.0
  %723 = vmatprep.subr.mxu0 0.0
  %724 = vmatpush1.xpose.msra.mxu0 0.0
  %725 = vmatprep.subr.mxu0 0.0
  %v726 = vand.u32 %v467, 4294901760
  %727 = vmatpush1.xpose.msra.mxu0 %v726
  %728 = vmatprep.subr.mxu0 0.0
  %729 = vmatpush2.xpose.msra.mxu0 0.0
  %730 = vmatprep.subr.mxu0 0.0
  %731 = vmatpush2.xpose.msra.mxu0 0.0
  %732 = vmatprep.subr.mxu0 0.0
  %733 = vmatpush2.xpose.msra.mxu0 0.0
  %734 = vmatprep.subr.mxu0 0.0
  %735 = vmatpush2.xpose.msra.mxu0 0.0
  %736 = vmatprep.subr.mxu0 0.0
  %737 = vmatpush2.xpose.msra.mxu0 0.0
  %738 = vmatprep.subr.mxu0 0.0
  %739 = vmatpush2.xpose.msra.mxu0 0.0
  %740 = vmatprep.subr.mxu0 0.0
  %741 = vmatpush2.xpose.msra.mxu0 0.0
  %742 = vmatprep.subr.mxu0 0.0
  %743 = vmatpush2.xpose.msra.mxu0 0.0
  %744 = vmatprep.subr.mxu0 0.0
  %745 = vmatpush2.xpose.msra.mxu0 0.0
  %746 = vmatprep.subr.mxu0 0.0
  %747 = vmatpush2.xpose.msra.mxu0 0.0
  %748 = vmatprep.subr.mxu0 0.0
  %749 = vmatpush2.xpose.msra.mxu0 0.0
  %750 = vmatprep.subr.mxu0 0.0
  %751 = vmatpush2.xpose.msra.mxu0 0.0
  %752 = vmatprep.subr.mxu0 0.0
  %753 = vmatpush2.xpose.msra.mxu0 0.0
  %754 = vmatprep.subr.mxu0 0.0
  %755 = vmatpush2.xpose.msra.mxu0 0.0
  %756 = vmatprep.subr.mxu0 0.0
  %757 = vmatpush2.xpose.msra.mxu0 0.0
  %758 = vmatprep.subr.mxu0 0.0
  %759 = vmatpush2.xpose.msra.mxu0 0.0
  %760 = vmatprep.mubr.f32.mxu0 0.0
  %v761 = vand.u32 %v467, 4294901760
  %v762 = vsub.f32 %v467, %v761
  %v763 = vand.u32 %v762, 4294901760
  %764 = vmatmul.mubr.f32.gmra.mxu0 %v763
  %v765 = vpop.f32.mrf.mxu0
  %v766 = vadd.f32 %v692, %v765
  %v767 = vpop.f32.mrf.mxu0
  %768 = vdwg.mxu0
  %769 = vmatprep.subr.mxu0 0.0
  %770 = vmatpush1.xpose.msra.mxu0 0.0
  %771 = vmatprep.subr.mxu0 0.0
  %772 = vmatpush1.xpose.msra.mxu0 0.0
  %773 = vmatprep.subr.mxu0 0.0
  %774 = vmatpush1.xpose.msra.mxu0 0.0
  %775 = vmatprep.subr.mxu0 0.0
  %776 = vmatpush1.xpose.msra.mxu0 0.0
  %777 = vmatprep.subr.mxu0 0.0
  %778 = vmatpush1.xpose.msra.mxu0 0.0
  %779 = vmatprep.subr.mxu0 0.0
  %780 = vmatpush1.xpose.msra.mxu0 0.0
  %781 = vmatprep.subr.mxu0 0.0
  %782 = vmatpush1.xpose.msra.mxu0 0.0
  %783 = vmatprep.subr.mxu0 0.0
  %784 = vmatpush1.xpose.msra.mxu0 0.0
  %785 = vmatprep.subr.mxu0 0.0
  %786 = vmatpush1.xpose.msra.mxu0 0.0
  %787 = vmatprep.subr.mxu0 0.0
  %788 = vmatpush1.xpose.msra.mxu0 0.0
  %789 = vmatprep.subr.mxu0 0.0
  %790 = vmatpush1.xpose.msra.mxu0 0.0
  %791 = vmatprep.subr.mxu0 0.0
  %792 = vmatpush1.xpose.msra.mxu0 0.0
  %793 = vmatprep.subr.mxu0 0.0
  %794 = vmatpush1.xpose.msra.mxu0 0.0
  %795 = vmatprep.subr.mxu0 0.0
  %796 = vmatpush1.xpose.msra.mxu0 0.0
  %797 = vmatprep.subr.mxu0 0.0
  %798 = vmatpush1.xpose.msra.mxu0 0.0
  %799 = vmatprep.subr.mxu0 0.0
  %v800 = vand.u32 %v467, 4294901760
  %v801 = vsub.f32 %v467, %v800
  %v802 = vand.u32 %v801, 4294901760
  %803 = vmatpush1.xpose.msra.mxu0 %v802
  %804 = vmatprep.subr.mxu0 0.0
  %805 = vmatpush2.xpose.msra.mxu0 0.0
  %806 = vmatprep.subr.mxu0 0.0
  %807 = vmatpush2.xpose.msra.mxu0 0.0
  %808 = vmatprep.subr.mxu0 0.0
  %809 = vmatpush2.xpose.msra.mxu0 0.0
  %810 = vmatprep.subr.mxu0 0.0
  %811 = vmatpush2.xpose.msra.mxu0 0.0
  %812 = vmatprep.subr.mxu0 0.0
  %813 = vmatpush2.xpose.msra.mxu0 0.0
  %814 = vmatprep.subr.mxu0 0.0
  %815 = vmatpush2.xpose.msra.mxu0 0.0
  %816 = vmatprep.subr.mxu0 0.0
  %817 = vmatpush2.xpose.msra.mxu0 0.0
  %818 = vmatprep.subr.mxu0 0.0
  %819 = vmatpush2.xpose.msra.mxu0 0.0
  %820 = vmatprep.subr.mxu0 0.0
  %821 = vmatpush2.xpose.msra.mxu0 0.0
  %822 = vmatprep.subr.mxu0 0.0
  %823 = vmatpush2.xpose.msra.mxu0 0.0
  %824 = vmatprep.subr.mxu0 0.0
  %825 = vmatpush2.xpose.msra.mxu0 0.0
  %826 = vmatprep.subr.mxu0 0.0
  %827 = vmatpush2.xpose.msra.mxu0 0.0
  %828 = vmatprep.subr.mxu0 0.0
  %829 = vmatpush2.xpose.msra.mxu0 0.0
  %830 = vmatprep.subr.mxu0 0.0
  %831 = vmatpush2.xpose.msra.mxu0 0.0
  %832 = vmatprep.subr.mxu0 0.0
  %833 = vmatpush2.xpose.msra.mxu0 0.0
  %834 = vmatprep.subr.mxu0 0.0
  %835 = vmatpush2.xpose.msra.mxu0 0.0
  %836 = vmatprep.mubr.f32.mxu0 0.0
  %v837 = vand.u32 %v467, 4294901760
  %838 = vmatmul.mubr.f32.gmra.mxu0 %v837
  %v839 = vpop.f32.mrf.mxu0
  %v840 = vadd.f32 %v766, %v839
  %v841 = vpop.f32.mrf.mxu0
  %842 = vdwg.mxu0
  %843 = vmatprep.subr.mxu0 0.0
  %844 = vmatpush1.xpose.msra.mxu0 0.0
  %845 = vmatprep.subr.mxu0 0.0
  %846 = vmatpush1.xpose.msra.mxu0 0.0
  %847 = vmatprep.subr.mxu0 0.0
  %848 = vmatpush1.xpose.msra.mxu0 0.0
  %849 = vmatprep.subr.mxu0 0.0
  %850 = vmatpush1.xpose.msra.mxu0 0.0
  %851 = vmatprep.subr.mxu0 0.0
  %852 = vmatpush1.xpose.msra.mxu0 0.0
  %853 = vmatprep.subr.mxu0 0.0
  %854 = vmatpush1.xpose.msra.mxu0 0.0
  %855 = vmatprep.subr.mxu0 0.0
  %856 = vmatpush1.xpose.msra.mxu0 0.0
  %857 = vmatprep.subr.mxu0 0.0
  %858 = vmatpush1.xpose.msra.mxu0 0.0
  %859 = vmatprep.subr.mxu0 0.0
  %860 = vmatpush1.xpose.msra.mxu0 0.0
  %861 = vmatprep.subr.mxu0 0.0
  %862 = vmatpush1.xpose.msra.mxu0 0.0
  %863 = vmatprep.subr.mxu0 0.0
  %864 = vmatpush1.xpose.msra.mxu0 0.0
  %865 = vmatprep.subr.mxu0 0.0
  %866 = vmatpush1.xpose.msra.mxu0 0.0
  %867 = vmatprep.subr.mxu0 0.0
  %868 = vmatpush1.xpose.msra.mxu0 0.0
  %869 = vmatprep.subr.mxu0 0.0
  %870 = vmatpush1.xpose.msra.mxu0 0.0
  %871 = vmatprep.subr.mxu0 0.0
  %872 = vmatpush1.xpose.msra.mxu0 0.0
  %873 = vmatprep.subr.mxu0 0.0
  %v874 = vand.u32 %v467, 4294901760
  %875 = vmatpush1.xpose.msra.mxu0 %v874
  %876 = vmatprep.subr.mxu0 0.0
  %877 = vmatpush2.xpose.msra.mxu0 0.0
  %878 = vmatprep.subr.mxu0 0.0
  %879 = vmatpush2.xpose.msra.mxu0 0.0
  %880 = vmatprep.subr.mxu0 0.0
  %881 = vmatpush2.xpose.msra.mxu0 0.0
  %882 = vmatprep.subr.mxu0 0.0
  %883 = vmatpush2.xpose.msra.mxu0 0.0
  %884 = vmatprep.subr.mxu0 0.0
  %885 = vmatpush2.xpose.msra.mxu0 0.0
  %886 = vmatprep.subr.mxu0 0.0
  %887 = vmatpush2.xpose.msra.mxu0 0.0
  %888 = vmatprep.subr.mxu0 0.0
  %889 = vmatpush2.xpose.msra.mxu0 0.0
  %890 = vmatprep.subr.mxu0 0.0
  %891 = vmatpush2.xpose.msra.mxu0 0.0
  %892 = vmatprep.subr.mxu0 0.0
  %893 = vmatpush2.xpose.msra.mxu0 0.0
  %894 = vmatprep.subr.mxu0 0.0
  %895 = vmatpush2.xpose.msra.mxu0 0.0
  %896 = vmatprep.subr.mxu0 0.0
  %897 = vmatpush2.xpose.msra.mxu0 0.0
  %898 = vmatprep.subr.mxu0 0.0
  %899 = vmatpush2.xpose.msra.mxu0 0.0
  %900 = vmatprep.subr.mxu0 0.0
  %901 = vmatpush2.xpose.msra.mxu0 0.0
  %902 = vmatprep.subr.mxu0 0.0
  %903 = vmatpush2.xpose.msra.mxu0 0.0
  %904 = vmatprep.subr.mxu0 0.0
  %905 = vmatpush2.xpose.msra.mxu0 0.0
  %906 = vmatprep.subr.mxu0 0.0
  %907 = vmatpush2.xpose.msra.mxu0 0.0
  %908 = vmatprep.mubr.f32.mxu0 0.0
  %v909 = vand.u32 %v467, 4294901760
  %910 = vmatmul.mubr.f32.gmra.mxu0 %v909
  %v911 = vpop.f32.mrf.mxu0
  %v912 = vadd.f32 %v840, %v911
  %v913 = vpop.f32.mrf.mxu0
  %914 = vdwg.mxu0
  %v916 = vsel %vm16, %v10, 0
  %918 = vmatprep.subr.mxu0 0.0
  %919 = vmatpush1.xpose.msra.mxu0 0.0
  %920 = vmatprep.subr.mxu0 0.0
  %921 = vmatpush1.xpose.msra.mxu0 0.0
  %922 = vmatprep.subr.mxu0 0.0
  %923 = vmatpush1.xpose.msra.mxu0 0.0
  %924 = vmatprep.subr.mxu0 0.0
  %925 = vmatpush1.xpose.msra.mxu0 0.0
  %926 = vmatprep.subr.mxu0 0.0
  %927 = vmatpush1.xpose.msra.mxu0 0.0
  %928 = vmatprep.subr.mxu0 0.0
  %929 = vmatpush1.xpose.msra.mxu0 0.0
  %930 = vmatprep.subr.mxu0 0.0
  %931 = vmatpush1.xpose.msra.mxu0 0.0
  %932 = vmatprep.subr.mxu0 0.0
  %933 = vmatpush1.xpose.msra.mxu0 0.0
  %934 = vmatprep.subr.mxu0 0.0
  %935 = vmatpush1.xpose.msra.mxu0 0.0
  %936 = vmatprep.subr.mxu0 0.0
  %937 = vmatpush1.xpose.msra.mxu0 0.0
  %938 = vmatprep.subr.mxu0 0.0
  %939 = vmatpush1.xpose.msra.mxu0 0.0
  %940 = vmatprep.subr.mxu0 0.0
  %941 = vmatpush1.xpose.msra.mxu0 0.0
  %942 = vmatprep.subr.mxu0 0.0
  %943 = vmatpush1.xpose.msra.mxu0 0.0
  %944 = vmatprep.subr.mxu0 0.0
  %945 = vmatpush1.xpose.msra.mxu0 0.0
  %946 = vmatprep.subr.mxu0 0.0
  %947 = vmatpush1.xpose.msra.mxu0 0.0
  %948 = vmatprep.subr.mxu0 0.0
  %v949 = vand.u32 %v916, 4294901760
  %950 = vmatpush1.xpose.msra.mxu0 %v949
  %951 = vmatprep.subr.mxu0 0.0
  %952 = vmatpush2.xpose.msra.mxu0 0.0
  %953 = vmatprep.subr.mxu0 0.0
  %954 = vmatpush2.xpose.msra.mxu0 0.0
  %955 = vmatprep.subr.mxu0 0.0
  %956 = vmatpush2.xpose.msra.mxu0 0.0
  %957 = vmatprep.subr.mxu0 0.0
  %958 = vmatpush2.xpose.msra.mxu0 0.0
  %959 = vmatprep.subr.mxu0 0.0
  %960 = vmatpush2.xpose.msra.mxu0 0.0
  %961 = vmatprep.subr.mxu0 0.0
  %962 = vmatpush2.xpose.msra.mxu0 0.0
  %963 = vmatprep.subr.mxu0 0.0
  %964 = vmatpush2.xpose.msra.mxu0 0.0
  %965 = vmatprep.subr.mxu0 0.0
  %966 = vmatpush2.xpose.msra.mxu0 0.0
  %967 = vmatprep.subr.mxu0 0.0
  %968 = vmatpush2.xpose.msra.mxu0 0.0
  %969 = vmatprep.subr.mxu0 0.0
  %970 = vmatpush2.xpose.msra.mxu0 0.0
  %971 = vmatprep.subr.mxu0 0.0
  %972 = vmatpush2.xpose.msra.mxu0 0.0
  %973 = vmatprep.subr.mxu0 0.0
  %974 = vmatpush2.xpose.msra.mxu0 0.0
  %975 = vmatprep.subr.mxu0 0.0
  %976 = vmatpush2.xpose.msra.mxu0 0.0
  %977 = vmatprep.subr.mxu0 0.0
  %978 = vmatpush2.xpose.msra.mxu0 0.0
  %979 = vmatprep.subr.mxu0 0.0
  %980 = vmatpush2.xpose.msra.mxu0 0.0
  %981 = vmatprep.subr.mxu0 0.0
  %982 = vmatpush2.xpose.msra.mxu0 0.0
  %983 = vmatprep.mubr.f32.mxu0 0.0
  %v984 = vand.u32 %v916, 4294901760
  %v985 = vsub.f32 %v916, %v984
  %v986 = vand.u32 %v985, 4294901760
  %v987 = vsub.f32 %v985, %v986
  %v988 = vand.u32 %v987, 4294901760
  %989 = vmatmul.mubr.f32.gmra.mxu0 %v988
  %v990 = vpop.f32.mrf.mxu0
  %v991 = vadd.f32 0.0, %v990
  %v992 = vpop.f32.mrf.mxu0
  %993 = vdwg.mxu0
  %994 = vmatprep.subr.mxu0 0.0
  %995 = vmatpush1.xpose.msra.mxu0 0.0
  %996 = vmatprep.subr.mxu0 0.0
  %997 = vmatpush1.xpose.msra.mxu0 0.0
  %998 = vmatprep.subr.mxu0 0.0
  %999 = vmatpush1.xpose.msra.mxu0 0.0
  %1000 = vmatprep.subr.mxu0 0.0
  %1001 = vmatpush1.xpose.msra.mxu0 0.0
  %1002 = vmatprep.subr.mxu0 0.0
  %1003 = vmatpush1.xpose.msra.mxu0 0.0
  %1004 = vmatprep.subr.mxu0 0.0
  %1005 = vmatpush1.xpose.msra.mxu0 0.0
  %1006 = vmatprep.subr.mxu0 0.0
  %1007 = vmatpush1.xpose.msra.mxu0 0.0
  %1008 = vmatprep.subr.mxu0 0.0
  %1009 = vmatpush1.xpose.msra.mxu0 0.0
  %1010 = vmatprep.subr.mxu0 0.0
  %1011 = vmatpush1.xpose.msra.mxu0 0.0
  %1012 = vmatprep.subr.mxu0 0.0
  %1013 = vmatpush1.xpose.msra.mxu0 0.0
  %1014 = vmatprep.subr.mxu0 0.0
  %1015 = vmatpush1.xpose.msra.mxu0 0.0
  %1016 = vmatprep.subr.mxu0 0.0
  %1017 = vmatpush1.xpose.msra.mxu0 0.0
  %1018 = vmatprep.subr.mxu0 0.0
  %1019 = vmatpush1.xpose.msra.mxu0 0.0
  %1020 = vmatprep.subr.mxu0 0.0
  %1021 = vmatpush1.xpose.msra.mxu0 0.0
  %1022 = vmatprep.subr.mxu0 0.0
  %1023 = vmatpush1.xpose.msra.mxu0 0.0
  %1024 = vmatprep.subr.mxu0 0.0
  %v1025 = vand.u32 %v916, 4294901760
  %v1026 = vsub.f32 %v916, %v1025
  %v1027 = vand.u32 %v1026, 4294901760
  %v1028 = vsub.f32 %v1026, %v1027
  %v1029 = vand.u32 %v1028, 4294901760
  %1030 = vmatpush1.xpose.msra.mxu0 %v1029
  %1031 = vmatprep.subr.mxu0 0.0
  %1032 = vmatpush2.xpose.msra.mxu0 0.0
  %1033 = vmatprep.subr.mxu0 0.0
  %1034 = vmatpush2.xpose.msra.mxu0 0.0
  %1035 = vmatprep.subr.mxu0 0.0
  %1036 = vmatpush2.xpose.msra.mxu0 0.0
  %1037 = vmatprep.subr.mxu0 0.0
  %1038 = vmatpush2.xpose.msra.mxu0 0.0
  %1039 = vmatprep.subr.mxu0 0.0
  %1040 = vmatpush2.xpose.msra.mxu0 0.0
  %1041 = vmatprep.subr.mxu0 0.0
  %1042 = vmatpush2.xpose.msra.mxu0 0.0
  %1043 = vmatprep.subr.mxu0 0.0
  %1044 = vmatpush2.xpose.msra.mxu0 0.0
  %1045 = vmatprep.subr.mxu0 0.0
  %1046 = vmatpush2.xpose.msra.mxu0 0.0
  %1047 = vmatprep.subr.mxu0 0.0
  %1048 = vmatpush2.xpose.msra.mxu0 0.0
  %1049 = vmatprep.subr.mxu0 0.0
  %1050 = vmatpush2.xpose.msra.mxu0 0.0
  %1051 = vmatprep.subr.mxu0 0.0
  %1052 = vmatpush2.xpose.msra.mxu0 0.0
  %1053 = vmatprep.subr.mxu0 0.0
  %1054 = vmatpush2.xpose.msra.mxu0 0.0
  %1055 = vmatprep.subr.mxu0 0.0
  %1056 = vmatpush2.xpose.msra.mxu0 0.0
  %1057 = vmatprep.subr.mxu0 0.0
  %1058 = vmatpush2.xpose.msra.mxu0 0.0
  %1059 = vmatprep.subr.mxu0 0.0
  %1060 = vmatpush2.xpose.msra.mxu0 0.0
  %1061 = vmatprep.subr.mxu0 0.0
  %1062 = vmatpush2.xpose.msra.mxu0 0.0
  %1063 = vmatprep.mubr.f32.mxu0 0.0
  %v1064 = vand.u32 %v916, 4294901760
  %1065 = vmatmul.mubr.f32.gmra.mxu0 %v1064
  %v1066 = vpop.f32.mrf.mxu0
  %v1067 = vadd.f32 %v991, %v1066
  %v1068 = vpop.f32.mrf.mxu0
  %1069 = vdwg.mxu0
  %1070 = vmatprep.subr.mxu0 0.0
  %1071 = vmatpush1.xpose.msra.mxu0 0.0
  %1072 = vmatprep.subr.mxu0 0.0
  %1073 = vmatpush1.xpose.msra.mxu0 0.0
  %1074 = vmatprep.subr.mxu0 0.0
  %1075 = vmatpush1.xpose.msra.mxu0 0.0
  %1076 = vmatprep.subr.mxu0 0.0
  %1077 = vmatpush1.xpose.msra.mxu0 0.0
  %1078 = vmatprep.subr.mxu0 0.0
  %1079 = vmatpush1.xpose.msra.mxu0 0.0
  %1080 = vmatprep.subr.mxu0 0.0
  %1081 = vmatpush1.xpose.msra.mxu0 0.0
  %1082 = vmatprep.subr.mxu0 0.0
  %1083 = vmatpush1.xpose.msra.mxu0 0.0
  %1084 = vmatprep.subr.mxu0 0.0
  %1085 = vmatpush1.xpose.msra.mxu0 0.0
  %1086 = vmatprep.subr.mxu0 0.0
  %1087 = vmatpush1.xpose.msra.mxu0 0.0
  %1088 = vmatprep.subr.mxu0 0.0
  %1089 = vmatpush1.xpose.msra.mxu0 0.0
  %1090 = vmatprep.subr.mxu0 0.0
  %1091 = vmatpush1.xpose.msra.mxu0 0.0
  %1092 = vmatprep.subr.mxu0 0.0
  %1093 = vmatpush1.xpose.msra.mxu0 0.0
  %1094 = vmatprep.subr.mxu0 0.0
  %1095 = vmatpush1.xpose.msra.mxu0 0.0
  %1096 = vmatprep.subr.mxu0 0.0
  %1097 = vmatpush1.xpose.msra.mxu0 0.0
  %1098 = vmatprep.subr.mxu0 0.0
  %1099 = vmatpush1.xpose.msra.mxu0 0.0
  %1100 = vmatprep.subr.mxu0 0.0
  %v1101 = vand.u32 %v916, 4294901760
  %v1102 = vsub.f32 %v916, %v1101
  %1103 = vmatpush1.xpose.msra.mxu0 %v1102
  %1104 = vmatprep.subr.mxu0 0.0
  %1105 = vmatpush2.xpose.msra.mxu0 0.0
  %1106 = vmatprep.subr.mxu0 0.0
  %1107 = vmatpush2.xpose.msra.mxu0 0.0
  %1108 = vmatprep.subr.mxu0 0.0
  %1109 = vmatpush2.xpose.msra.mxu0 0.0
  %1110 = vmatprep.subr.mxu0 0.0
  %1111 = vmatpush2.xpose.msra.mxu0 0.0
  %1112 = vmatprep.subr.mxu0 0.0
  %1113 = vmatpush2.xpose.msra.mxu0 0.0
  %1114 = vmatprep.subr.mxu0 0.0
  %1115 = vmatpush2.xpose.msra.mxu0 0.0
  %1116 = vmatprep.subr.mxu0 0.0
  %1117 = vmatpush2.xpose.msra.mxu0 0.0
  %1118 = vmatprep.subr.mxu0 0.0
  %1119 = vmatpush2.xpose.msra.mxu0 0.0
  %1120 = vmatprep.subr.mxu0 0.0
  %1121 = vmatpush2.xpose.msra.mxu0 0.0
  %1122 = vmatprep.subr.mxu0 0.0
  %1123 = vmatpush2.xpose.msra.mxu0 0.0
  %1124 = vmatprep.subr.mxu0 0.0
  %1125 = vmatpush2.xpose.msra.mxu0 0.0
  %1126 = vmatprep.subr.mxu0 0.0
  %1127 = vmatpush2.xpose.msra.mxu0 0.0
  %1128 = vmatprep.subr.mxu0 0.0
  %1129 = vmatpush2.xpose.msra.mxu0 0.0
  %1130 = vmatprep.subr.mxu0 0.0
  %1131 = vmatpush2.xpose.msra.mxu0 0.0
  %1132 = vmatprep.subr.mxu0 0.0
  %1133 = vmatpush2.xpose.msra.mxu0 0.0
  %1134 = vmatprep.subr.mxu0 0.0
  %1135 = vmatpush2.xpose.msra.mxu0 0.0
  %1136 = vmatprep.mubr.f32.mxu0 0.0
  %v1137 = vand.u32 %v916, 4294901760
  %v1138 = vsub.f32 %v916, %v1137
  %1139 = vmatmul.mubr.f32.gmra.mxu0 %v1138
  %v1140 = vpop.f32.mrf.mxu0
  %v1141 = vadd.f32 %v1067, %v1140
  %v1142 = vpop.f32.mrf.mxu0
  %1143 = vdwg.mxu0
  %1144 = vmatprep.subr.mxu0 0.0
  %1145 = vmatpush1.xpose.msra.mxu0 0.0
  %1146 = vmatprep.subr.mxu0 0.0
  %1147 = vmatpush1.xpose.msra.mxu0 0.0
  %1148 = vmatprep.subr.mxu0 0.0
  %1149 = vmatpush1.xpose.msra.mxu0 0.0
  %1150 = vmatprep.subr.mxu0 0.0
  %1151 = vmatpush1.xpose.msra.mxu0 0.0
  %1152 = vmatprep.subr.mxu0 0.0
  %1153 = vmatpush1.xpose.msra.mxu0 0.0
  %1154 = vmatprep.subr.mxu0 0.0
  %1155 = vmatpush1.xpose.msra.mxu0 0.0
  %1156 = vmatprep.subr.mxu0 0.0
  %1157 = vmatpush1.xpose.msra.mxu0 0.0
  %1158 = vmatprep.subr.mxu0 0.0
  %1159 = vmatpush1.xpose.msra.mxu0 0.0
  %1160 = vmatprep.subr.mxu0 0.0
  %1161 = vmatpush1.xpose.msra.mxu0 0.0
  %1162 = vmatprep.subr.mxu0 0.0
  %1163 = vmatpush1.xpose.msra.mxu0 0.0
  %1164 = vmatprep.subr.mxu0 0.0
  %1165 = vmatpush1.xpose.msra.mxu0 0.0
  %1166 = vmatprep.subr.mxu0 0.0
  %1167 = vmatpush1.xpose.msra.mxu0 0.0
  %1168 = vmatprep.subr.mxu0 0.0
  %1169 = vmatpush1.xpose.msra.mxu0 0.0
  %1170 = vmatprep.subr.mxu0 0.0
  %1171 = vmatpush1.xpose.msra.mxu0 0.0
  %1172 = vmatprep.subr.mxu0 0.0
  %1173 = vmatpush1.xpose.msra.mxu0 0.0
  %1174 = vmatprep.subr.mxu0 0.0
  %v1175 = vand.u32 %v916, 4294901760
  %1176 = vmatpush1.xpose.msra.mxu0 %v1175
  %1177 = vmatprep.subr.mxu0 0.0
  %1178 = vmatpush2.xpose.msra.mxu0 0.0
  %1179 = vmatprep.subr.mxu0 0.0
  %1180 = vmatpush2.xpose.msra.mxu0 0.0
  %1181 = vmatprep.subr.mxu0 0.0
  %1182 = vmatpush2.xpose.msra.mxu0 0.0
  %1183 = vmatprep.subr.mxu0 0.0
  %1184 = vmatpush2.xpose.msra.mxu0 0.0
  %1185 = vmatprep.subr.mxu0 0.0
  %1186 = vmatpush2.xpose.msra.mxu0 0.0
  %1187 = vmatprep.subr.mxu0 0.0
  %1188 = vmatpush2.xpose.msra.mxu0 0.0
  %1189 = vmatprep.subr.mxu0 0.0
  %1190 = vmatpush2.xpose.msra.mxu0 0.0
  %1191 = vmatprep.subr.mxu0 0.0
  %1192 = vmatpush2.xpose.msra.mxu0 0.0
  %1193 = vmatprep.subr.mxu0 0.0
  %1194 = vmatpush2.xpose.msra.mxu0 0.0
  %1195 = vmatprep.subr.mxu0 0.0
  %1196 = vmatpush2.xpose.msra.mxu0 0.0
  %1197 = vmatprep.subr.mxu0 0.0
  %1198 = vmatpush2.xpose.msra.mxu0 0.0
  %1199 = vmatprep.subr.mxu0 0.0
  %1200 = vmatpush2.xpose.msra.mxu0 0.0
  %1201 = vmatprep.subr.mxu0 0.0
  %1202 = vmatpush2.xpose.msra.mxu0 0.0
  %1203 = vmatprep.subr.mxu0 0.0
  %1204 = vmatpush2.xpose.msra.mxu0 0.0
  %1205 = vmatprep.subr.mxu0 0.0
  %1206 = vmatpush2.xpose.msra.mxu0 0.0
  %1207 = vmatprep.subr.mxu0 0.0
  %1208 = vmatpush2.xpose.msra.mxu0 0.0
  %1209 = vmatprep.mubr.f32.mxu0 0.0
  %v1210 = vand.u32 %v916, 4294901760
  %v1211 = vsub.f32 %v916, %v1210
  %v1212 = vand.u32 %v1211, 4294901760
  %1213 = vmatmul.mubr.f32.gmra.mxu0 %v1212
  %v1214 = vpop.f32.mrf.mxu0
  %v1215 = vadd.f32 %v1141, %v1214
  %v1216 = vpop.f32.mrf.mxu0
  %1217 = vdwg.mxu0
  %1218 = vmatprep.subr.mxu0 0.0
  %1219 = vmatpush1.xpose.msra.mxu0 0.0
  %1220 = vmatprep.subr.mxu0 0.0
  %1221 = vmatpush1.xpose.msra.mxu0 0.0
  %1222 = vmatprep.subr.mxu0 0.0
  %1223 = vmatpush1.xpose.msra.mxu0 0.0
  %1224 = vmatprep.subr.mxu0 0.0
  %1225 = vmatpush1.xpose.msra.mxu0 0.0
  %1226 = vmatprep.subr.mxu0 0.0
  %1227 = vmatpush1.xpose.msra.mxu0 0.0
  %1228 = vmatprep.subr.mxu0 0.0
  %1229 = vmatpush1.xpose.msra.mxu0 0.0
  %1230 = vmatprep.subr.mxu0 0.0
  %1231 = vmatpush1.xpose.msra.mxu0 0.0
  %1232 = vmatprep.subr.mxu0 0.0
  %1233 = vmatpush1.xpose.msra.mxu0 0.0
  %1234 = vmatprep.subr.mxu0 0.0
  %1235 = vmatpush1.xpose.msra.mxu0 0.0
  %1236 = vmatprep.subr.mxu0 0.0
  %1237 = vmatpush1.xpose.msra.mxu0 0.0
  %1238 = vmatprep.subr.mxu0 0.0
  %1239 = vmatpush1.xpose.msra.mxu0 0.0
  %1240 = vmatprep.subr.mxu0 0.0
  %1241 = vmatpush1.xpose.msra.mxu0 0.0
  %1242 = vmatprep.subr.mxu0 0.0
  %1243 = vmatpush1.xpose.msra.mxu0 0.0
  %1244 = vmatprep.subr.mxu0 0.0
  %1245 = vmatpush1.xpose.msra.mxu0 0.0
  %1246 = vmatprep.subr.mxu0 0.0
  %1247 = vmatpush1.xpose.msra.mxu0 0.0
  %1248 = vmatprep.subr.mxu0 0.0
  %v1249 = vand.u32 %v916, 4294901760
  %v1250 = vsub.f32 %v916, %v1249
  %v1251 = vand.u32 %v1250, 4294901760
  %1252 = vmatpush1.xpose.msra.mxu0 %v1251
  %1253 = vmatprep.subr.mxu0 0.0
  %1254 = vmatpush2.xpose.msra.mxu0 0.0
  %1255 = vmatprep.subr.mxu0 0.0
  %1256 = vmatpush2.xpose.msra.mxu0 0.0
  %1257 = vmatprep.subr.mxu0 0.0
  %1258 = vmatpush2.xpose.msra.mxu0 0.0
  %1259 = vmatprep.subr.mxu0 0.0
  %1260 = vmatpush2.xpose.msra.mxu0 0.0
  %1261 = vmatprep.subr.mxu0 0.0
  %1262 = vmatpush2.xpose.msra.mxu0 0.0
  %1263 = vmatprep.subr.mxu0 0.0
  %1264 = vmatpush2.xpose.msra.mxu0 0.0
  %1265 = vmatprep.subr.mxu0 0.0
  %1266 = vmatpush2.xpose.msra.mxu0 0.0
  %1267 = vmatprep.subr.mxu0 0.0
  %1268 = vmatpush2.xpose.msra.mxu0 0.0
  %1269 = vmatprep.subr.mxu0 0.0
  %1270 = vmatpush2.xpose.msra.mxu0 0.0
  %1271 = vmatprep.subr.mxu0 0.0
  %1272 = vmatpush2.xpose.msra.mxu0 0.0
  %1273 = vmatprep.subr.mxu0 0.0
  %1274 = vmatpush2.xpose.msra.mxu0 0.0
  %1275 = vmatprep.subr.mxu0 0.0
  %1276 = vmatpush2.xpose.msra.mxu0 0.0
  %1277 = vmatprep.subr.mxu0 0.0
  %1278 = vmatpush2.xpose.msra.mxu0 0.0
  %1279 = vmatprep.subr.mxu0 0.0
  %1280 = vmatpush2.xpose.msra.mxu0 0.0
  %1281 = vmatprep.subr.mxu0 0.0
  %1282 = vmatpush2.xpose.msra.mxu0 0.0
  %1283 = vmatprep.subr.mxu0 0.0
  %1284 = vmatpush2.xpose.msra.mxu0 0.0
  %1285 = vmatprep.mubr.f32.mxu0 0.0
  %v1286 = vand.u32 %v916, 4294901760
  %1287 = vmatmul.mubr.f32.gmra.mxu0 %v1286
  %v1288 = vpop.f32.mrf.mxu0
  %v1289 = vadd.f32 %v1215, %v1288
  %v1290 = vpop.f32.mrf.mxu0
  %1291 = vdwg.mxu0
  %1292 = vmatprep.subr.mxu0 0.0
  %1293 = vmatpush1.xpose.msra.mxu0 0.0
  %1294 = vmatprep.subr.mxu0 0.0
  %1295 = vmatpush1.xpose.msra.mxu0 0.0
  %1296 = vmatprep.subr.mxu0 0.0
  %1297 = vmatpush1.xpose.msra.mxu0 0.0
  %1298 = vmatprep.subr.mxu0 0.0
  %1299 = vmatpush1.xpose.msra.mxu0 0.0
  %1300 = vmatprep.subr.mxu0 0.0
  %1301 = vmatpush1.xpose.msra.mxu0 0.0
  %1302 = vmatprep.subr.mxu0 0.0
  %1303 = vmatpush1.xpose.msra.mxu0 0.0
  %1304 = vmatprep.subr.mxu0 0.0
  %1305 = vmatpush1.xpose.msra.mxu0 0.0
  %1306 = vmatprep.subr.mxu0 0.0
  %1307 = vmatpush1.xpose.msra.mxu0 0.0
  %1308 = vmatprep.subr.mxu0 0.0
  %1309 = vmatpush1.xpose.msra.mxu0 0.0
  %1310 = vmatprep.subr.mxu0 0.0
  %1311 = vmatpush1.xpose.msra.mxu0 0.0
  %1312 = vmatprep.subr.mxu0 0.0
  %1313 = vmatpush1.xpose.msra.mxu0 0.0
  %1314 = vmatprep.subr.mxu0 0.0
  %1315 = vmatpush1.xpose.msra.mxu0 0.0
  %1316 = vmatprep.subr.mxu0 0.0
  %1317 = vmatpush1.xpose.msra.mxu0 0.0
  %1318 = vmatprep.subr.mxu0 0.0
  %1319 = vmatpush1.xpose.msra.mxu0 0.0
  %1320 = vmatprep.subr.mxu0 0.0
  %1321 = vmatpush1.xpose.msra.mxu0 0.0
  %1322 = vmatprep.subr.mxu0 0.0
  %v1323 = vand.u32 %v916, 4294901760
  %1324 = vmatpush1.xpose.msra.mxu0 %v1323
  %1325 = vmatprep.subr.mxu0 0.0
  %1326 = vmatpush2.xpose.msra.mxu0 0.0
  %1327 = vmatprep.subr.mxu0 0.0
  %1328 = vmatpush2.xpose.msra.mxu0 0.0
  %1329 = vmatprep.subr.mxu0 0.0
  %1330 = vmatpush2.xpose.msra.mxu0 0.0
  %1331 = vmatprep.subr.mxu0 0.0
  %1332 = vmatpush2.xpose.msra.mxu0 0.0
  %1333 = vmatprep.subr.mxu0 0.0
  %1334 = vmatpush2.xpose.msra.mxu0 0.0
  %1335 = vmatprep.subr.mxu0 0.0
  %1336 = vmatpush2.xpose.msra.mxu0 0.0
  %1337 = vmatprep.subr.mxu0 0.0
  %1338 = vmatpush2.xpose.msra.mxu0 0.0
  %1339 = vmatprep.subr.mxu0 0.0
  %1340 = vmatpush2.xpose.msra.mxu0 0.0
  %1341 = vmatprep.subr.mxu0 0.0
  %1342 = vmatpush2.xpose.msra.mxu0 0.0
  %1343 = vmatprep.subr.mxu0 0.0
  %1344 = vmatpush2.xpose.msra.mxu0 0.0
  %1345 = vmatprep.subr.mxu0 0.0
  %1346 = vmatpush2.xpose.msra.mxu0 0.0
  %1347 = vmatprep.subr.mxu0 0.0
  %1348 = vmatpush2.xpose.msra.mxu0 0.0
  %1349 = vmatprep.subr.mxu0 0.0
  %1350 = vmatpush2.xpose.msra.mxu0 0.0
  %1351 = vmatprep.subr.mxu0 0.0
  %1352 = vmatpush2.xpose.msra.mxu0 0.0
  %1353 = vmatprep.subr.mxu0 0.0
  %1354 = vmatpush2.xpose.msra.mxu0 0.0
  %1355 = vmatprep.subr.mxu0 0.0
  %1356 = vmatpush2.xpose.msra.mxu0 0.0
  %1357 = vmatprep.mubr.f32.mxu0 0.0
  %v1358 = vand.u32 %v916, 4294901760
  %1359 = vmatmul.mubr.f32.gmra.mxu0 %v1358
  %v1360 = vpop.f32.mrf.mxu0
  %v1361 = vadd.f32 %v1289, %v1360
  %v1362 = vpop.f32.mrf.mxu0
  %1363 = vdwg.mxu0
  %v1365 = vsel %vm16, %v11, 0
  %1367 = vmatprep.subr.mxu0 0.0
  %1368 = vmatpush1.xpose.msra.mxu0 0.0
  %1369 = vmatprep.subr.mxu0 0.0
  %1370 = vmatpush1.xpose.msra.mxu0 0.0
  %1371 = vmatprep.subr.mxu0 0.0
  %1372 = vmatpush1.xpose.msra.mxu0 0.0
  %1373 = vmatprep.subr.mxu0 0.0
  %1374 = vmatpush1.xpose.msra.mxu0 0.0
  %1375 = vmatprep.subr.mxu0 0.0
  %1376 = vmatpush1.xpose.msra.mxu0 0.0
  %1377 = vmatprep.subr.mxu0 0.0
  %1378 = vmatpush1.xpose.msra.mxu0 0.0
  %1379 = vmatprep.subr.mxu0 0.0
  %1380 = vmatpush1.xpose.msra.mxu0 0.0
  %1381 = vmatprep.subr.mxu0 0.0
  %1382 = vmatpush1.xpose.msra.mxu0 0.0
  %1383 = vmatprep.subr.mxu0 0.0
  %1384 = vmatpush1.xpose.msra.mxu0 0.0
  %1385 = vmatprep.subr.mxu0 0.0
  %1386 = vmatpush1.xpose.msra.mxu0 0.0
  %1387 = vmatprep.subr.mxu0 0.0
  %1388 = vmatpush1.xpose.msra.mxu0 0.0
  %1389 = vmatprep.subr.mxu0 0.0
  %1390 = vmatpush1.xpose.msra.mxu0 0.0
  %1391 = vmatprep.subr.mxu0 0.0
  %1392 = vmatpush1.xpose.msra.mxu0 0.0
  %1393 = vmatprep.subr.mxu0 0.0
  %1394 = vmatpush1.xpose.msra.mxu0 0.0
  %1395 = vmatprep.subr.mxu0 0.0
  %1396 = vmatpush1.xpose.msra.mxu0 0.0
  %1397 = vmatprep.subr.mxu0 0.0
  %v1398 = vand.u32 %v1365, 4294901760
  %1399 = vmatpush1.xpose.msra.mxu0 %v1398
  %1400 = vmatprep.subr.mxu0 0.0
  %1401 = vmatpush2.xpose.msra.mxu0 0.0
  %1402 = vmatprep.subr.mxu0 0.0
  %1403 = vmatpush2.xpose.msra.mxu0 0.0
  %1404 = vmatprep.subr.mxu0 0.0
  %1405 = vmatpush2.xpose.msra.mxu0 0.0
  %1406 = vmatprep.subr.mxu0 0.0
  %1407 = vmatpush2.xpose.msra.mxu0 0.0
  %1408 = vmatprep.subr.mxu0 0.0
  %1409 = vmatpush2.xpose.msra.mxu0 0.0
  %1410 = vmatprep.subr.mxu0 0.0
  %1411 = vmatpush2.xpose.msra.mxu0 0.0
  %1412 = vmatprep.subr.mxu0 0.0
  %1413 = vmatpush2.xpose.msra.mxu0 0.0
  %1414 = vmatprep.subr.mxu0 0.0
  %1415 = vmatpush2.xpose.msra.mxu0 0.0
  %1416 = vmatprep.subr.mxu0 0.0
  %1417 = vmatpush2.xpose.msra.mxu0 0.0
  %1418 = vmatprep.subr.mxu0 0.0
  %1419 = vmatpush2.xpose.msra.mxu0 0.0
  %1420 = vmatprep.subr.mxu0 0.0
  %1421 = vmatpush2.xpose.msra.mxu0 0.0
  %1422 = vmatprep.subr.mxu0 0.0
  %1423 = vmatpush2.xpose.msra.mxu0 0.0
  %1424 = vmatprep.subr.mxu0 0.0
  %1425 = vmatpush2.xpose.msra.mxu0 0.0
  %1426 = vmatprep.subr.mxu0 0.0
  %1427 = vmatpush2.xpose.msra.mxu0 0.0
  %1428 = vmatprep.subr.mxu0 0.0
  %1429 = vmatpush2.xpose.msra.mxu0 0.0
  %1430 = vmatprep.subr.mxu0 0.0
  %1431 = vmatpush2.xpose.msra.mxu0 0.0
  %1432 = vmatprep.mubr.f32.mxu0 0.0
  %v1433 = vand.u32 %v1365, 4294901760
  %v1434 = vsub.f32 %v1365, %v1433
  %v1435 = vand.u32 %v1434, 4294901760
  %v1436 = vsub.f32 %v1434, %v1435
  %v1437 = vand.u32 %v1436, 4294901760
  %1438 = vmatmul.mubr.f32.gmra.mxu0 %v1437
  %v1439 = vpop.f32.mrf.mxu0
  %v1440 = vadd.f32 0.0, %v1439
  %v1441 = vpop.f32.mrf.mxu0
  %1442 = vdwg.mxu0
  %1443 = vmatprep.subr.mxu0 0.0
  %1444 = vmatpush1.xpose.msra.mxu0 0.0
  %1445 = vmatprep.subr.mxu0 0.0
  %1446 = vmatpush1.xpose.msra.mxu0 0.0
  %1447 = vmatprep.subr.mxu0 0.0
  %1448 = vmatpush1.xpose.msra.mxu0 0.0
  %1449 = vmatprep.subr.mxu0 0.0
  %1450 = vmatpush1.xpose.msra.mxu0 0.0
  %1451 = vmatprep.subr.mxu0 0.0
  %1452 = vmatpush1.xpose.msra.mxu0 0.0
  %1453 = vmatprep.subr.mxu0 0.0
  %1454 = vmatpush1.xpose.msra.mxu0 0.0
  %1455 = vmatprep.subr.mxu0 0.0
  %1456 = vmatpush1.xpose.msra.mxu0 0.0
  %1457 = vmatprep.subr.mxu0 0.0
  %1458 = vmatpush1.xpose.msra.mxu0 0.0
  %1459 = vmatprep.subr.mxu0 0.0
  %1460 = vmatpush1.xpose.msra.mxu0 0.0
  %1461 = vmatprep.subr.mxu0 0.0
  %1462 = vmatpush1.xpose.msra.mxu0 0.0
  %1463 = vmatprep.subr.mxu0 0.0
  %1464 = vmatpush1.xpose.msra.mxu0 0.0
  %1465 = vmatprep.subr.mxu0 0.0
  %1466 = vmatpush1.xpose.msra.mxu0 0.0
  %1467 = vmatprep.subr.mxu0 0.0
  %1468 = vmatpush1.xpose.msra.mxu0 0.0
  %1469 = vmatprep.subr.mxu0 0.0
  %1470 = vmatpush1.xpose.msra.mxu0 0.0
  %1471 = vmatprep.subr.mxu0 0.0
  %1472 = vmatpush1.xpose.msra.mxu0 0.0
  %1473 = vmatprep.subr.mxu0 0.0
  %v1474 = vand.u32 %v1365, 4294901760
  %v1475 = vsub.f32 %v1365, %v1474
  %v1476 = vand.u32 %v1475, 4294901760
  %v1477 = vsub.f32 %v1475, %v1476
  %v1478 = vand.u32 %v1477, 4294901760
  %1479 = vmatpush1.xpose.msra.mxu0 %v1478
  %1480 = vmatprep.subr.mxu0 0.0
  %1481 = vmatpush2.xpose.msra.mxu0 0.0
  %1482 = vmatprep.subr.mxu0 0.0
  %1483 = vmatpush2.xpose.msra.mxu0 0.0
  %1484 = vmatprep.subr.mxu0 0.0
  %1485 = vmatpush2.xpose.msra.mxu0 0.0
  %1486 = vmatprep.subr.mxu0 0.0
  %1487 = vmatpush2.xpose.msra.mxu0 0.0
  %1488 = vmatprep.subr.mxu0 0.0
  %1489 = vmatpush2.xpose.msra.mxu0 0.0
  %1490 = vmatprep.subr.mxu0 0.0
  %1491 = vmatpush2.xpose.msra.mxu0 0.0
  %1492 = vmatprep.subr.mxu0 0.0
  %1493 = vmatpush2.xpose.msra.mxu0 0.0
  %1494 = vmatprep.subr.mxu0 0.0
  %1495 = vmatpush2.xpose.msra.mxu0 0.0
  %1496 = vmatprep.subr.mxu0 0.0
  %1497 = vmatpush2.xpose.msra.mxu0 0.0
  %1498 = vmatprep.subr.mxu0 0.0
  %1499 = vmatpush2.xpose.msra.mxu0 0.0
  %1500 = vmatprep.subr.mxu0 0.0
  %1501 = vmatpush2.xpose.msra.mxu0 0.0
  %1502 = vmatprep.subr.mxu0 0.0
  %1503 = vmatpush2.xpose.msra.mxu0 0.0
  %1504 = vmatprep.subr.mxu0 0.0
  %1505 = vmatpush2.xpose.msra.mxu0 0.0
  %1506 = vmatprep.subr.mxu0 0.0
  %1507 = vmatpush2.xpose.msra.mxu0 0.0
  %1508 = vmatprep.subr.mxu0 0.0
  %1509 = vmatpush2.xpose.msra.mxu0 0.0
  %1510 = vmatprep.subr.mxu0 0.0
  %1511 = vmatpush2.xpose.msra.mxu0 0.0
  %1512 = vmatprep.mubr.f32.mxu0 0.0
  %v1513 = vand.u32 %v1365, 4294901760
  %1514 = vmatmul.mubr.f32.gmra.mxu0 %v1513
  %v1515 = vpop.f32.mrf.mxu0
  %v1516 = vadd.f32 %v1440, %v1515
  %v1517 = vpop.f32.mrf.mxu0
  %1518 = vdwg.mxu0
  %1519 = vmatprep.subr.mxu0 0.0
  %1520 = vmatpush1.xpose.msra.mxu0 0.0
  %1521 = vmatprep.subr.mxu0 0.0
  %1522 = vmatpush1.xpose.msra.mxu0 0.0
  %1523 = vmatprep.subr.mxu0 0.0
  %1524 = vmatpush1.xpose.msra.mxu0 0.0
  %1525 = vmatprep.subr.mxu0 0.0
  %1526 = vmatpush1.xpose.msra.mxu0 0.0
  %1527 = vmatprep.subr.mxu0 0.0
  %1528 = vmatpush1.xpose.msra.mxu0 0.0
  %1529 = vmatprep.subr.mxu0 0.0
  %1530 = vmatpush1.xpose.msra.mxu0 0.0
  %1531 = vmatprep.subr.mxu0 0.0
  %1532 = vmatpush1.xpose.msra.mxu0 0.0
  %1533 = vmatprep.subr.mxu0 0.0
  %1534 = vmatpush1.xpose.msra.mxu0 0.0
  %1535 = vmatprep.subr.mxu0 0.0
  %1536 = vmatpush1.xpose.msra.mxu0 0.0
  %1537 = vmatprep.subr.mxu0 0.0
  %1538 = vmatpush1.xpose.msra.mxu0 0.0
  %1539 = vmatprep.subr.mxu0 0.0
  %1540 = vmatpush1.xpose.msra.mxu0 0.0
  %1541 = vmatprep.subr.mxu0 0.0
  %1542 = vmatpush1.xpose.msra.mxu0 0.0
  %1543 = vmatprep.subr.mxu0 0.0
  %1544 = vmatpush1.xpose.msra.mxu0 0.0
  %1545 = vmatprep.subr.mxu0 0.0
  %1546 = vmatpush1.xpose.msra.mxu0 0.0
  %1547 = vmatprep.subr.mxu0 0.0
  %1548 = vmatpush1.xpose.msra.mxu0 0.0
  %1549 = vmatprep.subr.mxu0 0.0
  %v1550 = vand.u32 %v1365, 4294901760
  %v1551 = vsub.f32 %v1365, %v1550
  %1552 = vmatpush1.xpose.msra.mxu0 %v1551
  %1553 = vmatprep.subr.mxu0 0.0
  %1554 = vmatpush2.xpose.msra.mxu0 0.0
  %1555 = vmatprep.subr.mxu0 0.0
  %1556 = vmatpush2.xpose.msra.mxu0 0.0
  %1557 = vmatprep.subr.mxu0 0.0
  %1558 = vmatpush2.xpose.msra.mxu0 0.0
  %1559 = vmatprep.subr.mxu0 0.0
  %1560 = vmatpush2.xpose.msra.mxu0 0.0
  %1561 = vmatprep.subr.mxu0 0.0
  %1562 = vmatpush2.xpose.msra.mxu0 0.0
  %1563 = vmatprep.subr.mxu0 0.0
  %1564 = vmatpush2.xpose.msra.mxu0 0.0
  %1565 = vmatprep.subr.mxu0 0.0
  %1566 = vmatpush2.xpose.msra.mxu0 0.0
  %1567 = vmatprep.subr.mxu0 0.0
  %1568 = vmatpush2.xpose.msra.mxu0 0.0
  %1569 = vmatprep.subr.mxu0 0.0
  %1570 = vmatpush2.xpose.msra.mxu0 0.0
  %1571 = vmatprep.subr.mxu0 0.0
  %1572 = vmatpush2.xpose.msra.mxu0 0.0
  %1573 = vmatprep.subr.mxu0 0.0
  %1574 = vmatpush2.xpose.msra.mxu0 0.0
  %1575 = vmatprep.subr.mxu0 0.0
  %1576 = vmatpush2.xpose.msra.mxu0 0.0
  %1577 = vmatprep.subr.mxu0 0.0
  %1578 = vmatpush2.xpose.msra.mxu0 0.0
  %1579 = vmatprep.subr.mxu0 0.0
  %1580 = vmatpush2.xpose.msra.mxu0 0.0
  %1581 = vmatprep.subr.mxu0 0.0
  %1582 = vmatpush2.xpose.msra.mxu0 0.0
  %1583 = vmatprep.subr.mxu0 0.0
  %1584 = vmatpush2.xpose.msra.mxu0 0.0
  %1585 = vmatprep.mubr.f32.mxu0 0.0
  %v1586 = vand.u32 %v1365, 4294901760
  %v1587 = vsub.f32 %v1365, %v1586
  %1588 = vmatmul.mubr.f32.gmra.mxu0 %v1587
  %v1589 = vpop.f32.mrf.mxu0
  %v1590 = vadd.f32 %v1516, %v1589
  %v1591 = vpop.f32.mrf.mxu0
  %1592 = vdwg.mxu0
  %1593 = vmatprep.subr.mxu0 0.0
  %1594 = vmatpush1.xpose.msra.mxu0 0.0
  %1595 = vmatprep.subr.mxu0 0.0
  %1596 = vmatpush1.xpose.msra.mxu0 0.0
  %1597 = vmatprep.subr.mxu0 0.0
  %1598 = vmatpush1.xpose.msra.mxu0 0.0
  %1599 = vmatprep.subr.mxu0 0.0
  %1600 = vmatpush1.xpose.msra.mxu0 0.0
  %1601 = vmatprep.subr.mxu0 0.0
  %1602 = vmatpush1.xpose.msra.mxu0 0.0
  %1603 = vmatprep.subr.mxu0 0.0
  %1604 = vmatpush1.xpose.msra.mxu0 0.0
  %1605 = vmatprep.subr.mxu0 0.0
  %1606 = vmatpush1.xpose.msra.mxu0 0.0
  %1607 = vmatprep.subr.mxu0 0.0
  %1608 = vmatpush1.xpose.msra.mxu0 0.0
  %1609 = vmatprep.subr.mxu0 0.0
  %1610 = vmatpush1.xpose.msra.mxu0 0.0
  %1611 = vmatprep.subr.mxu0 0.0
  %1612 = vmatpush1.xpose.msra.mxu0 0.0
  %1613 = vmatprep.subr.mxu0 0.0
  %1614 = vmatpush1.xpose.msra.mxu0 0.0
  %1615 = vmatprep.subr.mxu0 0.0
  %1616 = vmatpush1.xpose.msra.mxu0 0.0
  %1617 = vmatprep.subr.mxu0 0.0
  %1618 = vmatpush1.xpose.msra.mxu0 0.0
  %1619 = vmatprep.subr.mxu0 0.0
  %1620 = vmatpush1.xpose.msra.mxu0 0.0
  %1621 = vmatprep.subr.mxu0 0.0
  %1622 = vmatpush1.xpose.msra.mxu0 0.0
  %1623 = vmatprep.subr.mxu0 0.0
  %v1624 = vand.u32 %v1365, 4294901760
  %1625 = vmatpush1.xpose.msra.mxu0 %v1624
  %1626 = vmatprep.subr.mxu0 0.0
  %1627 = vmatpush2.xpose.msra.mxu0 0.0
  %1628 = vmatprep.subr.mxu0 0.0
  %1629 = vmatpush2.xpose.msra.mxu0 0.0
  %1630 = vmatprep.subr.mxu0 0.0
  %1631 = vmatpush2.xpose.msra.mxu0 0.0
  %1632 = vmatprep.subr.mxu0 0.0
  %1633 = vmatpush2.xpose.msra.mxu0 0.0
  %1634 = vmatprep.subr.mxu0 0.0
  %1635 = vmatpush2.xpose.msra.mxu0 0.0
  %1636 = vmatprep.subr.mxu0 0.0
  %1637 = vmatpush2.xpose.msra.mxu0 0.0
  %1638 = vmatprep.subr.mxu0 0.0
  %1639 = vmatpush2.xpose.msra.mxu0 0.0
  %1640 = vmatprep.subr.mxu0 0.0
  %1641 = vmatpush2.xpose.msra.mxu0 0.0
  %1642 = vmatprep.subr.mxu0 0.0
  %1643 = vmatpush2.xpose.msra.mxu0 0.0
  %1644 = vmatprep.subr.mxu0 0.0
  %1645 = vmatpush2.xpose.msra.mxu0 0.0
  %1646 = vmatprep.subr.mxu0 0.0
  %1647 = vmatpush2.xpose.msra.mxu0 0.0
  %1648 = vmatprep.subr.mxu0 0.0
  %1649 = vmatpush2.xpose.msra.mxu0 0.0
  %1650 = vmatprep.subr.mxu0 0.0
  %1651 = vmatpush2.xpose.msra.mxu0 0.0
  %1652 = vmatprep.subr.mxu0 0.0
  %1653 = vmatpush2.xpose.msra.mxu0 0.0
  %1654 = vmatprep.subr.mxu0 0.0
  %1655 = vmatpush2.xpose.msra.mxu0 0.0
  %1656 = vmatprep.subr.mxu0 0.0
  %1657 = vmatpush2.xpose.msra.mxu0 0.0
  %1658 = vmatprep.mubr.f32.mxu0 0.0
  %v1659 = vand.u32 %v1365, 4294901760
  %v1660 = vsub.f32 %v1365, %v1659
  %v1661 = vand.u32 %v1660, 4294901760
  %1662 = vmatmul.mubr.f32.gmra.mxu0 %v1661
  %v1663 = vpop.f32.mrf.mxu0
  %v1664 = vadd.f32 %v1590, %v1663
  %v1665 = vpop.f32.mrf.mxu0
  %1666 = vdwg.mxu0
  %1667 = vmatprep.subr.mxu0 0.0
  %1668 = vmatpush1.xpose.msra.mxu0 0.0
  %1669 = vmatprep.subr.mxu0 0.0
  %1670 = vmatpush1.xpose.msra.mxu0 0.0
  %1671 = vmatprep.subr.mxu0 0.0
  %1672 = vmatpush1.xpose.msra.mxu0 0.0
  %1673 = vmatprep.subr.mxu0 0.0
  %1674 = vmatpush1.xpose.msra.mxu0 0.0
  %1675 = vmatprep.subr.mxu0 0.0
  %1676 = vmatpush1.xpose.msra.mxu0 0.0
  %1677 = vmatprep.subr.mxu0 0.0
  %1678 = vmatpush1.xpose.msra.mxu0 0.0
  %1679 = vmatprep.subr.mxu0 0.0
  %1680 = vmatpush1.xpose.msra.mxu0 0.0
  %1681 = vmatprep.subr.mxu0 0.0
  %1682 = vmatpush1.xpose.msra.mxu0 0.0
  %1683 = vmatprep.subr.mxu0 0.0
  %1684 = vmatpush1.xpose.msra.mxu0 0.0
  %1685 = vmatprep.subr.mxu0 0.0
  %1686 = vmatpush1.xpose.msra.mxu0 0.0
  %1687 = vmatprep.subr.mxu0 0.0
  %1688 = vmatpush1.xpose.msra.mxu0 0.0
  %1689 = vmatprep.subr.mxu0 0.0
  %1690 = vmatpush1.xpose.msra.mxu0 0.0
  %1691 = vmatprep.subr.mxu0 0.0
  %1692 = vmatpush1.xpose.msra.mxu0 0.0
  %1693 = vmatprep.subr.mxu0 0.0
  %1694 = vmatpush1.xpose.msra.mxu0 0.0
  %1695 = vmatprep.subr.mxu0 0.0
  %1696 = vmatpush1.xpose.msra.mxu0 0.0
  %1697 = vmatprep.subr.mxu0 0.0
  %v1698 = vand.u32 %v1365, 4294901760
  %v1699 = vsub.f32 %v1365, %v1698
  %v1700 = vand.u32 %v1699, 4294901760
  %1701 = vmatpush1.xpose.msra.mxu0 %v1700
  %1702 = vmatprep.subr.mxu0 0.0
  %1703 = vmatpush2.xpose.msra.mxu0 0.0
  %1704 = vmatprep.subr.mxu0 0.0
  %1705 = vmatpush2.xpose.msra.mxu0 0.0
  %1706 = vmatprep.subr.mxu0 0.0
  %1707 = vmatpush2.xpose.msra.mxu0 0.0
  %1708 = vmatprep.subr.mxu0 0.0
  %1709 = vmatpush2.xpose.msra.mxu0 0.0
  %1710 = vmatprep.subr.mxu0 0.0
  %1711 = vmatpush2.xpose.msra.mxu0 0.0
  %1712 = vmatprep.subr.mxu0 0.0
  %1713 = vmatpush2.xpose.msra.mxu0 0.0
  %1714 = vmatprep.subr.mxu0 0.0
  %1715 = vmatpush2.xpose.msra.mxu0 0.0
  %1716 = vmatprep.subr.mxu0 0.0
  %1717 = vmatpush2.xpose.msra.mxu0 0.0
  %1718 = vmatprep.subr.mxu0 0.0
  %1719 = vmatpush2.xpose.msra.mxu0 0.0
  %1720 = vmatprep.subr.mxu0 0.0
  %1721 = vmatpush2.xpose.msra.mxu0 0.0
  %1722 = vmatprep.subr.mxu0 0.0
  %1723 = vmatpush2.xpose.msra.mxu0 0.0
  %1724 = vmatprep.subr.mxu0 0.0
  %1725 = vmatpush2.xpose.msra.mxu0 0.0
  %1726 = vmatprep.subr.mxu0 0.0
  %1727 = vmatpush2.xpose.msra.mxu0 0.0
  %1728 = vmatprep.subr.mxu0 0.0
  %1729 = vmatpush2.xpose.msra.mxu0 0.0
  %1730 = vmatprep.subr.mxu0 0.0
  %1731 = vmatpush2.xpose.msra.mxu0 0.0
  %1732 = vmatprep.subr.mxu0 0.0
  %1733 = vmatpush2.xpose.msra.mxu0 0.0
  %1734 = vmatprep.mubr.f32.mxu0 0.0
  %v1735 = vand.u32 %v1365, 4294901760
  %1736 = vmatmul.mubr.f32.gmra.mxu0 %v1735
  %v1737 = vpop.f32.mrf.mxu0
  %v1738 = vadd.f32 %v1664, %v1737
  %v1739 = vpop.f32.mrf.mxu0
  %1740 = vdwg.mxu0
  %1741 = vmatprep.subr.mxu0 0.0
  %1742 = vmatpush1.xpose.msra.mxu0 0.0
  %1743 = vmatprep.subr.mxu0 0.0
  %1744 = vmatpush1.xpose.msra.mxu0 0.0
  %1745 = vmatprep.subr.mxu0 0.0
  %1746 = vmatpush1.xpose.msra.mxu0 0.0
  %1747 = vmatprep.subr.mxu0 0.0
  %1748 = vmatpush1.xpose.msra.mxu0 0.0
  %1749 = vmatprep.subr.mxu0 0.0
  %1750 = vmatpush1.xpose.msra.mxu0 0.0
  %1751 = vmatprep.subr.mxu0 0.0
  %1752 = vmatpush1.xpose.msra.mxu0 0.0
  %1753 = vmatprep.subr.mxu0 0.0
  %1754 = vmatpush1.xpose.msra.mxu0 0.0
  %1755 = vmatprep.subr.mxu0 0.0
  %1756 = vmatpush1.xpose.msra.mxu0 0.0
  %1757 = vmatprep.subr.mxu0 0.0
  %1758 = vmatpush1.xpose.msra.mxu0 0.0
  %1759 = vmatprep.subr.mxu0 0.0
  %1760 = vmatpush1.xpose.msra.mxu0 0.0
  %1761 = vmatprep.subr.mxu0 0.0
  %1762 = vmatpush1.xpose.msra.mxu0 0.0
  %1763 = vmatprep.subr.mxu0 0.0
  %1764 = vmatpush1.xpose.msra.mxu0 0.0
  %1765 = vmatprep.subr.mxu0 0.0
  %1766 = vmatpush1.xpose.msra.mxu0 0.0
  %1767 = vmatprep.subr.mxu0 0.0
  %1768 = vmatpush1.xpose.msra.mxu0 0.0
  %1769 = vmatprep.subr.mxu0 0.0
  %1770 = vmatpush1.xpose.msra.mxu0 0.0
  %1771 = vmatprep.subr.mxu0 0.0
  %v1772 = vand.u32 %v1365, 4294901760
  %1773 = vmatpush1.xpose.msra.mxu0 %v1772
  %1774 = vmatprep.subr.mxu0 0.0
  %1775 = vmatpush2.xpose.msra.mxu0 0.0
  %1776 = vmatprep.subr.mxu0 0.0
  %1777 = vmatpush2.xpose.msra.mxu0 0.0
  %1778 = vmatprep.subr.mxu0 0.0
  %1779 = vmatpush2.xpose.msra.mxu0 0.0
  %1780 = vmatprep.subr.mxu0 0.0
  %1781 = vmatpush2.xpose.msra.mxu0 0.0
  %1782 = vmatprep.subr.mxu0 0.0
  %1783 = vmatpush2.xpose.msra.mxu0 0.0
  %1784 = vmatprep.subr.mxu0 0.0
  %1785 = vmatpush2.xpose.msra.mxu0 0.0
  %1786 = vmatprep.subr.mxu0 0.0
  %1787 = vmatpush2.xpose.msra.mxu0 0.0
  %1788 = vmatprep.subr.mxu0 0.0
  %1789 = vmatpush2.xpose.msra.mxu0 0.0
  %1790 = vmatprep.subr.mxu0 0.0
  %1791 = vmatpush2.xpose.msra.mxu0 0.0
  %1792 = vmatprep.subr.mxu0 0.0
  %1793 = vmatpush2.xpose.msra.mxu0 0.0
  %1794 = vmatprep.subr.mxu0 0.0
  %1795 = vmatpush2.xpose.msra.mxu0 0.0
  %1796 = vmatprep.subr.mxu0 0.0
  %1797 = vmatpush2.xpose.msra.mxu0 0.0
  %1798 = vmatprep.subr.mxu0 0.0
  %1799 = vmatpush2.xpose.msra.mxu0 0.0
  %1800 = vmatprep.subr.mxu0 0.0
  %1801 = vmatpush2.xpose.msra.mxu0 0.0
  %1802 = vmatprep.subr.mxu0 0.0
  %1803 = vmatpush2.xpose.msra.mxu0 0.0
  %1804 = vmatprep.subr.mxu0 0.0
  %1805 = vmatpush2.xpose.msra.mxu0 0.0
  %1806 = vmatprep.mubr.f32.mxu0 0.0
  %v1807 = vand.u32 %v1365, 4294901760
  %1808 = vmatmul.mubr.f32.gmra.mxu0 %v1807
  %v1809 = vpop.f32.mrf.mxu0
  %v1810 = vadd.f32 %v1738, %v1809
  %v1811 = vpop.f32.mrf.mxu0
  %1812 = vdwg.mxu0
  %v1814 = vsel %vm16, %v12, 0
  %1816 = vmatprep.subr.mxu0 0.0
  %1817 = vmatpush1.xpose.msra.mxu0 0.0
  %1818 = vmatprep.subr.mxu0 0.0
  %1819 = vmatpush1.xpose.msra.mxu0 0.0
  %1820 = vmatprep.subr.mxu0 0.0
  %1821 = vmatpush1.xpose.msra.mxu0 0.0
  %1822 = vmatprep.subr.mxu0 0.0
  %1823 = vmatpush1.xpose.msra.mxu0 0.0
  %1824 = vmatprep.subr.mxu0 0.0
  %1825 = vmatpush1.xpose.msra.mxu0 0.0
  %1826 = vmatprep.subr.mxu0 0.0
  %1827 = vmatpush1.xpose.msra.mxu0 0.0
  %1828 = vmatprep.subr.mxu0 0.0
  %1829 = vmatpush1.xpose.msra.mxu0 0.0
  %1830 = vmatprep.subr.mxu0 0.0
  %1831 = vmatpush1.xpose.msra.mxu0 0.0
  %1832 = vmatprep.subr.mxu0 0.0
  %1833 = vmatpush1.xpose.msra.mxu0 0.0
  %1834 = vmatprep.subr.mxu0 0.0
  %1835 = vmatpush1.xpose.msra.mxu0 0.0
  %1836 = vmatprep.subr.mxu0 0.0
  %1837 = vmatpush1.xpose.msra.mxu0 0.0
  %1838 = vmatprep.subr.mxu0 0.0
  %1839 = vmatpush1.xpose.msra.mxu0 0.0
  %1840 = vmatprep.subr.mxu0 0.0
  %1841 = vmatpush1.xpose.msra.mxu0 0.0
  %1842 = vmatprep.subr.mxu0 0.0
  %1843 = vmatpush1.xpose.msra.mxu0 0.0
  %1844 = vmatprep.subr.mxu0 0.0
  %1845 = vmatpush1.xpose.msra.mxu0 0.0
  %1846 = vmatprep.subr.mxu0 0.0
  %v1847 = vand.u32 %v1814, 4294901760
  %1848 = vmatpush1.xpose.msra.mxu0 %v1847
  %1849 = vmatprep.subr.mxu0 0.0
  %1850 = vmatpush2.xpose.msra.mxu0 0.0
  %1851 = vmatprep.subr.mxu0 0.0
  %1852 = vmatpush2.xpose.msra.mxu0 0.0
  %1853 = vmatprep.subr.mxu0 0.0
  %1854 = vmatpush2.xpose.msra.mxu0 0.0
  %1855 = vmatprep.subr.mxu0 0.0
  %1856 = vmatpush2.xpose.msra.mxu0 0.0
  %1857 = vmatprep.subr.mxu0 0.0
  %1858 = vmatpush2.xpose.msra.mxu0 0.0
  %1859 = vmatprep.subr.mxu0 0.0
  %1860 = vmatpush2.xpose.msra.mxu0 0.0
  %1861 = vmatprep.subr.mxu0 0.0
  %1862 = vmatpush2.xpose.msra.mxu0 0.0
  %1863 = vmatprep.subr.mxu0 0.0
  %1864 = vmatpush2.xpose.msra.mxu0 0.0
  %1865 = vmatprep.subr.mxu0 0.0
  %1866 = vmatpush2.xpose.msra.mxu0 0.0
  %1867 = vmatprep.subr.mxu0 0.0
  %1868 = vmatpush2.xpose.msra.mxu0 0.0
  %1869 = vmatprep.subr.mxu0 0.0
  %1870 = vmatpush2.xpose.msra.mxu0 0.0
  %1871 = vmatprep.subr.mxu0 0.0
  %1872 = vmatpush2.xpose.msra.mxu0 0.0
  %1873 = vmatprep.subr.mxu0 0.0
  %1874 = vmatpush2.xpose.msra.mxu0 0.0
  %1875 = vmatprep.subr.mxu0 0.0
  %1876 = vmatpush2.xpose.msra.mxu0 0.0
  %1877 = vmatprep.subr.mxu0 0.0
  %1878 = vmatpush2.xpose.msra.mxu0 0.0
  %1879 = vmatprep.subr.mxu0 0.0
  %1880 = vmatpush2.xpose.msra.mxu0 0.0
  %1881 = vmatprep.mubr.f32.mxu0 0.0
  %v1882 = vand.u32 %v1814, 4294901760
  %v1883 = vsub.f32 %v1814, %v1882
  %v1884 = vand.u32 %v1883, 4294901760
  %v1885 = vsub.f32 %v1883, %v1884
  %v1886 = vand.u32 %v1885, 4294901760
  %1887 = vmatmul.mubr.f32.gmra.mxu0 %v1886
  %v1888 = vpop.f32.mrf.mxu0
  %v1889 = vadd.f32 0.0, %v1888
  %v1890 = vpop.f32.mrf.mxu0
  %1891 = vdwg.mxu0
  %1892 = vmatprep.subr.mxu0 0.0
  %1893 = vmatpush1.xpose.msra.mxu0 0.0
  %1894 = vmatprep.subr.mxu0 0.0
  %1895 = vmatpush1.xpose.msra.mxu0 0.0
  %1896 = vmatprep.subr.mxu0 0.0
  %1897 = vmatpush1.xpose.msra.mxu0 0.0
  %1898 = vmatprep.subr.mxu0 0.0
  %1899 = vmatpush1.xpose.msra.mxu0 0.0
  %1900 = vmatprep.subr.mxu0 0.0
  %1901 = vmatpush1.xpose.msra.mxu0 0.0
  %1902 = vmatprep.subr.mxu0 0.0
  %1903 = vmatpush1.xpose.msra.mxu0 0.0
  %1904 = vmatprep.subr.mxu0 0.0
  %1905 = vmatpush1.xpose.msra.mxu0 0.0
  %1906 = vmatprep.subr.mxu0 0.0
  %1907 = vmatpush1.xpose.msra.mxu0 0.0
  %1908 = vmatprep.subr.mxu0 0.0
  %1909 = vmatpush1.xpose.msra.mxu0 0.0
  %1910 = vmatprep.subr.mxu0 0.0
  %1911 = vmatpush1.xpose.msra.mxu0 0.0
  %1912 = vmatprep.subr.mxu0 0.0
  %1913 = vmatpush1.xpose.msra.mxu0 0.0
  %1914 = vmatprep.subr.mxu0 0.0
  %1915 = vmatpush1.xpose.msra.mxu0 0.0
  %1916 = vmatprep.subr.mxu0 0.0
  %1917 = vmatpush1.xpose.msra.mxu0 0.0
  %1918 = vmatprep.subr.mxu0 0.0
  %1919 = vmatpush1.xpose.msra.mxu0 0.0
  %1920 = vmatprep.subr.mxu0 0.0
  %1921 = vmatpush1.xpose.msra.mxu0 0.0
  %1922 = vmatprep.subr.mxu0 0.0
  %v1923 = vand.u32 %v1814, 4294901760
  %v1924 = vsub.f32 %v1814, %v1923
  %v1925 = vand.u32 %v1924, 4294901760
  %v1926 = vsub.f32 %v1924, %v1925
  %v1927 = vand.u32 %v1926, 4294901760
  %1928 = vmatpush1.xpose.msra.mxu0 %v1927
  %1929 = vmatprep.subr.mxu0 0.0
  %1930 = vmatpush2.xpose.msra.mxu0 0.0
  %1931 = vmatprep.subr.mxu0 0.0
  %1932 = vmatpush2.xpose.msra.mxu0 0.0
  %1933 = vmatprep.subr.mxu0 0.0
  %1934 = vmatpush2.xpose.msra.mxu0 0.0
  %1935 = vmatprep.subr.mxu0 0.0
  %1936 = vmatpush2.xpose.msra.mxu0 0.0
  %1937 = vmatprep.subr.mxu0 0.0
  %1938 = vmatpush2.xpose.msra.mxu0 0.0
  %1939 = vmatprep.subr.mxu0 0.0
  %1940 = vmatpush2.xpose.msra.mxu0 0.0
  %1941 = vmatprep.subr.mxu0 0.0
  %1942 = vmatpush2.xpose.msra.mxu0 0.0
  %1943 = vmatprep.subr.mxu0 0.0
  %1944 = vmatpush2.xpose.msra.mxu0 0.0
  %1945 = vmatprep.subr.mxu0 0.0
  %1946 = vmatpush2.xpose.msra.mxu0 0.0
  %1947 = vmatprep.subr.mxu0 0.0
  %1948 = vmatpush2.xpose.msra.mxu0 0.0
  %1949 = vmatprep.subr.mxu0 0.0
  %1950 = vmatpush2.xpose.msra.mxu0 0.0
  %1951 = vmatprep.subr.mxu0 0.0
  %1952 = vmatpush2.xpose.msra.mxu0 0.0
  %1953 = vmatprep.subr.mxu0 0.0
  %1954 = vmatpush2.xpose.msra.mxu0 0.0
  %1955 = vmatprep.subr.mxu0 0.0
  %1956 = vmatpush2.xpose.msra.mxu0 0.0
  %1957 = vmatprep.subr.mxu0 0.0
  %1958 = vmatpush2.xpose.msra.mxu0 0.0
  %1959 = vmatprep.subr.mxu0 0.0
  %1960 = vmatpush2.xpose.msra.mxu0 0.0
  %1961 = vmatprep.mubr.f32.mxu0 0.0
  %v1962 = vand.u32 %v1814, 4294901760
  %1963 = vmatmul.mubr.f32.gmra.mxu0 %v1962
  %v1964 = vpop.f32.mrf.mxu0
  %v1965 = vadd.f32 %v1889, %v1964
  %v1966 = vpop.f32.mrf.mxu0
  %1967 = vdwg.mxu0
  %1968 = vmatprep.subr.mxu0 0.0
  %1969 = vmatpush1.xpose.msra.mxu0 0.0
  %1970 = vmatprep.subr.mxu0 0.0
  %1971 = vmatpush1.xpose.msra.mxu0 0.0
  %1972 = vmatprep.subr.mxu0 0.0
  %1973 = vmatpush1.xpose.msra.mxu0 0.0
  %1974 = vmatprep.subr.mxu0 0.0
  %1975 = vmatpush1.xpose.msra.mxu0 0.0
  %1976 = vmatprep.subr.mxu0 0.0
  %1977 = vmatpush1.xpose.msra.mxu0 0.0
  %1978 = vmatprep.subr.mxu0 0.0
  %1979 = vmatpush1.xpose.msra.mxu0 0.0
  %1980 = vmatprep.subr.mxu0 0.0
  %1981 = vmatpush1.xpose.msra.mxu0 0.0
  %1982 = vmatprep.subr.mxu0 0.0
  %1983 = vmatpush1.xpose.msra.mxu0 0.0
  %1984 = vmatprep.subr.mxu0 0.0
  %1985 = vmatpush1.xpose.msra.mxu0 0.0
  %1986 = vmatprep.subr.mxu0 0.0
  %1987 = vmatpush1.xpose.msra.mxu0 0.0
  %1988 = vmatprep.subr.mxu0 0.0
  %1989 = vmatpush1.xpose.msra.mxu0 0.0
  %1990 = vmatprep.subr.mxu0 0.0
  %1991 = vmatpush1.xpose.msra.mxu0 0.0
  %1992 = vmatprep.subr.mxu0 0.0
  %1993 = vmatpush1.xpose.msra.mxu0 0.0
  %1994 = vmatprep.subr.mxu0 0.0
  %1995 = vmatpush1.xpose.msra.mxu0 0.0
  %1996 = vmatprep.subr.mxu0 0.0
  %1997 = vmatpush1.xpose.msra.mxu0 0.0
  %1998 = vmatprep.subr.mxu0 0.0
  %v1999 = vand.u32 %v1814, 4294901760
  %v2000 = vsub.f32 %v1814, %v1999
  %2001 = vmatpush1.xpose.msra.mxu0 %v2000
  %2002 = vmatprep.subr.mxu0 0.0
  %2003 = vmatpush2.xpose.msra.mxu0 0.0
  %2004 = vmatprep.subr.mxu0 0.0
  %2005 = vmatpush2.xpose.msra.mxu0 0.0
  %2006 = vmatprep.subr.mxu0 0.0
  %2007 = vmatpush2.xpose.msra.mxu0 0.0
  %2008 = vmatprep.subr.mxu0 0.0
  %2009 = vmatpush2.xpose.msra.mxu0 0.0
  %2010 = vmatprep.subr.mxu0 0.0
  %2011 = vmatpush2.xpose.msra.mxu0 0.0
  %2012 = vmatprep.subr.mxu0 0.0
  %2013 = vmatpush2.xpose.msra.mxu0 0.0
  %2014 = vmatprep.subr.mxu0 0.0
  %2015 = vmatpush2.xpose.msra.mxu0 0.0
  %2016 = vmatprep.subr.mxu0 0.0
  %2017 = vmatpush2.xpose.msra.mxu0 0.0
  %2018 = vmatprep.subr.mxu0 0.0
  %2019 = vmatpush2.xpose.msra.mxu0 0.0
  %2020 = vmatprep.subr.mxu0 0.0
  %2021 = vmatpush2.xpose.msra.mxu0 0.0
  %2022 = vmatprep.subr.mxu0 0.0
  %2023 = vmatpush2.xpose.msra.mxu0 0.0
  %2024 = vmatprep.subr.mxu0 0.0
  %2025 = vmatpush2.xpose.msra.mxu0 0.0
  %2026 = vmatprep.subr.mxu0 0.0
  %2027 = vmatpush2.xpose.msra.mxu0 0.0
  %2028 = vmatprep.subr.mxu0 0.0
  %2029 = vmatpush2.xpose.msra.mxu0 0.0
  %2030 = vmatprep.subr.mxu0 0.0
  %2031 = vmatpush2.xpose.msra.mxu0 0.0
  %2032 = vmatprep.subr.mxu0 0.0
  %2033 = vmatpush2.xpose.msra.mxu0 0.0
  %2034 = vmatprep.mubr.f32.mxu0 0.0
  %v2035 = vand.u32 %v1814, 4294901760
  %v2036 = vsub.f32 %v1814, %v2035
  %2037 = vmatmul.mubr.f32.gmra.mxu0 %v2036
  %v2038 = vpop.f32.mrf.mxu0
  %v2039 = vadd.f32 %v1965, %v2038
  %v2040 = vpop.f32.mrf.mxu0
  %2041 = vdwg.mxu0
  %2042 = vmatprep.subr.mxu0 0.0
  %2043 = vmatpush1.xpose.msra.mxu0 0.0
  %2044 = vmatprep.subr.mxu0 0.0
  %2045 = vmatpush1.xpose.msra.mxu0 0.0
  %2046 = vmatprep.subr.mxu0 0.0
  %2047 = vmatpush1.xpose.msra.mxu0 0.0
  %2048 = vmatprep.subr.mxu0 0.0
  %2049 = vmatpush1.xpose.msra.mxu0 0.0
  %2050 = vmatprep.subr.mxu0 0.0
  %2051 = vmatpush1.xpose.msra.mxu0 0.0
  %2052 = vmatprep.subr.mxu0 0.0
  %2053 = vmatpush1.xpose.msra.mxu0 0.0
  %2054 = vmatprep.subr.mxu0 0.0
  %2055 = vmatpush1.xpose.msra.mxu0 0.0
  %2056 = vmatprep.subr.mxu0 0.0
  %2057 = vmatpush1.xpose.msra.mxu0 0.0
  %2058 = vmatprep.subr.mxu0 0.0
  %2059 = vmatpush1.xpose.msra.mxu0 0.0
  %2060 = vmatprep.subr.mxu0 0.0
  %2061 = vmatpush1.xpose.msra.mxu0 0.0
  %2062 = vmatprep.subr.mxu0 0.0
  %2063 = vmatpush1.xpose.msra.mxu0 0.0
  %2064 = vmatprep.subr.mxu0 0.0
  %2065 = vmatpush1.xpose.msra.mxu0 0.0
  %2066 = vmatprep.subr.mxu0 0.0
  %2067 = vmatpush1.xpose.msra.mxu0 0.0
  %2068 = vmatprep.subr.mxu0 0.0
  %2069 = vmatpush1.xpose.msra.mxu0 0.0
  %2070 = vmatprep.subr.mxu0 0.0
  %2071 = vmatpush1.xpose.msra.mxu0 0.0
  %2072 = vmatprep.subr.mxu0 0.0
  %v2073 = vand.u32 %v1814, 4294901760
  %2074 = vmatpush1.xpose.msra.mxu0 %v2073
  %2075 = vmatprep.subr.mxu0 0.0
  %2076 = vmatpush2.xpose.msra.mxu0 0.0
  %2077 = vmatprep.subr.mxu0 0.0
  %2078 = vmatpush2.xpose.msra.mxu0 0.0
  %2079 = vmatprep.subr.mxu0 0.0
  %2080 = vmatpush2.xpose.msra.mxu0 0.0
  %2081 = vmatprep.subr.mxu0 0.0
  %2082 = vmatpush2.xpose.msra.mxu0 0.0
  %2083 = vmatprep.subr.mxu0 0.0
  %2084 = vmatpush2.xpose.msra.mxu0 0.0
  %2085 = vmatprep.subr.mxu0 0.0
  %2086 = vmatpush2.xpose.msra.mxu0 0.0
  %2087 = vmatprep.subr.mxu0 0.0
  %2088 = vmatpush2.xpose.msra.mxu0 0.0
  %2089 = vmatprep.subr.mxu0 0.0
  %2090 = vmatpush2.xpose.msra.mxu0 0.0
  %2091 = vmatprep.subr.mxu0 0.0
  %2092 = vmatpush2.xpose.msra.mxu0 0.0
  %2093 = vmatprep.subr.mxu0 0.0
  %2094 = vmatpush2.xpose.msra.mxu0 0.0
  %2095 = vmatprep.subr.mxu0 0.0
  %2096 = vmatpush2.xpose.msra.mxu0 0.0
  %2097 = vmatprep.subr.mxu0 0.0
  %2098 = vmatpush2.xpose.msra.mxu0 0.0
  %2099 = vmatprep.subr.mxu0 0.0
  %2100 = vmatpush2.xpose.msra.mxu0 0.0
  %2101 = vmatprep.subr.mxu0 0.0
  %2102 = vmatpush2.xpose.msra.mxu0 0.0
  %2103 = vmatprep.subr.mxu0 0.0
  %2104 = vmatpush2.xpose.msra.mxu0 0.0
  %2105 = vmatprep.subr.mxu0 0.0
  %2106 = vmatpush2.xpose.msra.mxu0 0.0
  %2107 = vmatprep.mubr.f32.mxu0 0.0
  %v2108 = vand.u32 %v1814, 4294901760
  %v2109 = vsub.f32 %v1814, %v2108
  %v2110 = vand.u32 %v2109, 4294901760
  %2111 = vmatmul.mubr.f32.gmra.mxu0 %v2110
  %v2112 = vpop.f32.mrf.mxu0
  %v2113 = vadd.f32 %v2039, %v2112
  %v2114 = vpop.f32.mrf.mxu0
  %2115 = vdwg.mxu0
  %2116 = vmatprep.subr.mxu0 0.0
  %2117 = vmatpush1.xpose.msra.mxu0 0.0
  %2118 = vmatprep.subr.mxu0 0.0
  %2119 = vmatpush1.xpose.msra.mxu0 0.0
  %2120 = vmatprep.subr.mxu0 0.0
  %2121 = vmatpush1.xpose.msra.mxu0 0.0
  %2122 = vmatprep.subr.mxu0 0.0
  %2123 = vmatpush1.xpose.msra.mxu0 0.0
  %2124 = vmatprep.subr.mxu0 0.0
  %2125 = vmatpush1.xpose.msra.mxu0 0.0
  %2126 = vmatprep.subr.mxu0 0.0
  %2127 = vmatpush1.xpose.msra.mxu0 0.0
  %2128 = vmatprep.subr.mxu0 0.0
  %2129 = vmatpush1.xpose.msra.mxu0 0.0
  %2130 = vmatprep.subr.mxu0 0.0
  %2131 = vmatpush1.xpose.msra.mxu0 0.0
  %2132 = vmatprep.subr.mxu0 0.0
  %2133 = vmatpush1.xpose.msra.mxu0 0.0
  %2134 = vmatprep.subr.mxu0 0.0
  %2135 = vmatpush1.xpose.msra.mxu0 0.0
  %2136 = vmatprep.subr.mxu0 0.0
  %2137 = vmatpush1.xpose.msra.mxu0 0.0
  %2138 = vmatprep.subr.mxu0 0.0
  %2139 = vmatpush1.xpose.msra.mxu0 0.0
  %2140 = vmatprep.subr.mxu0 0.0
  %2141 = vmatpush1.xpose.msra.mxu0 0.0
  %2142 = vmatprep.subr.mxu0 0.0
  %2143 = vmatpush1.xpose.msra.mxu0 0.0
  %2144 = vmatprep.subr.mxu0 0.0
  %2145 = vmatpush1.xpose.msra.mxu0 0.0
  %2146 = vmatprep.subr.mxu0 0.0
  %v2147 = vand.u32 %v1814, 4294901760
  %v2148 = vsub.f32 %v1814, %v2147
  %v2149 = vand.u32 %v2148, 4294901760
  %2150 = vmatpush1.xpose.msra.mxu0 %v2149
  %2151 = vmatprep.subr.mxu0 0.0
  %2152 = vmatpush2.xpose.msra.mxu0 0.0
  %2153 = vmatprep.subr.mxu0 0.0
  %2154 = vmatpush2.xpose.msra.mxu0 0.0
  %2155 = vmatprep.subr.mxu0 0.0
  %2156 = vmatpush2.xpose.msra.mxu0 0.0
  %2157 = vmatprep.subr.mxu0 0.0
  %2158 = vmatpush2.xpose.msra.mxu0 0.0
  %2159 = vmatprep.subr.mxu0 0.0
  %2160 = vmatpush2.xpose.msra.mxu0 0.0
  %2161 = vmatprep.subr.mxu0 0.0
  %2162 = vmatpush2.xpose.msra.mxu0 0.0
  %2163 = vmatprep.subr.mxu0 0.0
  %2164 = vmatpush2.xpose.msra.mxu0 0.0
  %2165 = vmatprep.subr.mxu0 0.0
  %2166 = vmatpush2.xpose.msra.mxu0 0.0
  %2167 = vmatprep.subr.mxu0 0.0
  %2168 = vmatpush2.xpose.msra.mxu0 0.0
  %2169 = vmatprep.subr.mxu0 0.0
  %2170 = vmatpush2.xpose.msra.mxu0 0.0
  %2171 = vmatprep.subr.mxu0 0.0
  %2172 = vmatpush2.xpose.msra.mxu0 0.0
  %2173 = vmatprep.subr.mxu0 0.0
  %2174 = vmatpush2.xpose.msra.mxu0 0.0
  %2175 = vmatprep.subr.mxu0 0.0
  %2176 = vmatpush2.xpose.msra.mxu0 0.0
  %2177 = vmatprep.subr.mxu0 0.0
  %2178 = vmatpush2.xpose.msra.mxu0 0.0
  %2179 = vmatprep.subr.mxu0 0.0
  %2180 = vmatpush2.xpose.msra.mxu0 0.0
  %2181 = vmatprep.subr.mxu0 0.0
  %2182 = vmatpush2.xpose.msra.mxu0 0.0
  %2183 = vmatprep.mubr.f32.mxu0 0.0
  %v2184 = vand.u32 %v1814, 4294901760
  %2185 = vmatmul.mubr.f32.gmra.mxu0 %v2184
  %v2186 = vpop.f32.mrf.mxu0
  %v2187 = vadd.f32 %v2113, %v2186
  %v2188 = vpop.f32.mrf.mxu0
  %2189 = vdwg.mxu0
  %2190 = vmatprep.subr.mxu0 0.0
  %2191 = vmatpush1.xpose.msra.mxu0 0.0
  %2192 = vmatprep.subr.mxu0 0.0
  %2193 = vmatpush1.xpose.msra.mxu0 0.0
  %2194 = vmatprep.subr.mxu0 0.0
  %2195 = vmatpush1.xpose.msra.mxu0 0.0
  %2196 = vmatprep.subr.mxu0 0.0
  %2197 = vmatpush1.xpose.msra.mxu0 0.0
  %2198 = vmatprep.subr.mxu0 0.0
  %2199 = vmatpush1.xpose.msra.mxu0 0.0
  %2200 = vmatprep.subr.mxu0 0.0
  %2201 = vmatpush1.xpose.msra.mxu0 0.0
  %2202 = vmatprep.subr.mxu0 0.0
  %2203 = vmatpush1.xpose.msra.mxu0 0.0
  %2204 = vmatprep.subr.mxu0 0.0
  %2205 = vmatpush1.xpose.msra.mxu0 0.0
  %2206 = vmatprep.subr.mxu0 0.0
  %2207 = vmatpush1.xpose.msra.mxu0 0.0
  %2208 = vmatprep.subr.mxu0 0.0
  %2209 = vmatpush1.xpose.msra.mxu0 0.0
  %2210 = vmatprep.subr.mxu0 0.0
  %2211 = vmatpush1.xpose.msra.mxu0 0.0
  %2212 = vmatprep.subr.mxu0 0.0
  %2213 = vmatpush1.xpose.msra.mxu0 0.0
  %2214 = vmatprep.subr.mxu0 0.0
  %2215 = vmatpush1.xpose.msra.mxu0 0.0
  %2216 = vmatprep.subr.mxu0 0.0
  %2217 = vmatpush1.xpose.msra.mxu0 0.0
  %2218 = vmatprep.subr.mxu0 0.0
  %2219 = vmatpush1.xpose.msra.mxu0 0.0
  %2220 = vmatprep.subr.mxu0 0.0
  %v2221 = vand.u32 %v1814, 4294901760
  %2222 = vmatpush1.xpose.msra.mxu0 %v2221
  %2223 = vmatprep.subr.mxu0 0.0
  %2224 = vmatpush2.xpose.msra.mxu0 0.0
  %2225 = vmatprep.subr.mxu0 0.0
  %2226 = vmatpush2.xpose.msra.mxu0 0.0
  %2227 = vmatprep.subr.mxu0 0.0
  %2228 = vmatpush2.xpose.msra.mxu0 0.0
  %2229 = vmatprep.subr.mxu0 0.0
  %2230 = vmatpush2.xpose.msra.mxu0 0.0
  %2231 = vmatprep.subr.mxu0 0.0
  %2232 = vmatpush2.xpose.msra.mxu0 0.0
  %2233 = vmatprep.subr.mxu0 0.0
  %2234 = vmatpush2.xpose.msra.mxu0 0.0
  %2235 = vmatprep.subr.mxu0 0.0
  %2236 = vmatpush2.xpose.msra.mxu0 0.0
  %2237 = vmatprep.subr.mxu0 0.0
  %2238 = vmatpush2.xpose.msra.mxu0 0.0
  %2239 = vmatprep.subr.mxu0 0.0
  %2240 = vmatpush2.xpose.msra.mxu0 0.0
  %2241 = vmatprep.subr.mxu0 0.0
  %2242 = vmatpush2.xpose.msra.mxu0 0.0
  %2243 = vmatprep.subr.mxu0 0.0
  %2244 = vmatpush2.xpose.msra.mxu0 0.0
  %2245 = vmatprep.subr.mxu0 0.0
  %2246 = vmatpush2.xpose.msra.mxu0 0.0
  %2247 = vmatprep.subr.mxu0 0.0
  %2248 = vmatpush2.xpose.msra.mxu0 0.0
  %2249 = vmatprep.subr.mxu0 0.0
  %2250 = vmatpush2.xpose.msra.mxu0 0.0
  %2251 = vmatprep.subr.mxu0 0.0
  %2252 = vmatpush2.xpose.msra.mxu0 0.0
  %2253 = vmatprep.subr.mxu0 0.0
  %2254 = vmatpush2.xpose.msra.mxu0 0.0
  %2255 = vmatprep.mubr.f32.mxu0 0.0
  %v2256 = vand.u32 %v1814, 4294901760
  %2257 = vmatmul.mubr.f32.gmra.mxu0 %v2256
  %v2258 = vpop.f32.mrf.mxu0
  %v2259 = vadd.f32 %v2187, %v2258
  %v2260 = vpop.f32.mrf.mxu0
  %2261 = vdwg.mxu0
  %v2263 = vsel %vm16, %v13, 0
  %2265 = vmatprep.subr.mxu0 0.0
  %2266 = vmatpush1.xpose.msra.mxu0 0.0
  %2267 = vmatprep.subr.mxu0 0.0
  %2268 = vmatpush1.xpose.msra.mxu0 0.0
  %2269 = vmatprep.subr.mxu0 0.0
  %2270 = vmatpush1.xpose.msra.mxu0 0.0
  %2271 = vmatprep.subr.mxu0 0.0
  %2272 = vmatpush1.xpose.msra.mxu0 0.0
  %2273 = vmatprep.subr.mxu0 0.0
  %2274 = vmatpush1.xpose.msra.mxu0 0.0
  %2275 = vmatprep.subr.mxu0 0.0
  %2276 = vmatpush1.xpose.msra.mxu0 0.0
  %2277 = vmatprep.subr.mxu0 0.0
  %2278 = vmatpush1.xpose.msra.mxu0 0.0
  %2279 = vmatprep.subr.mxu0 0.0
  %2280 = vmatpush1.xpose.msra.mxu0 0.0
  %2281 = vmatprep.subr.mxu0 0.0
  %2282 = vmatpush1.xpose.msra.mxu0 0.0
  %2283 = vmatprep.subr.mxu0 0.0
  %2284 = vmatpush1.xpose.msra.mxu0 0.0
  %2285 = vmatprep.subr.mxu0 0.0
  %2286 = vmatpush1.xpose.msra.mxu0 0.0
  %2287 = vmatprep.subr.mxu0 0.0
  %2288 = vmatpush1.xpose.msra.mxu0 0.0
  %2289 = vmatprep.subr.mxu0 0.0
  %2290 = vmatpush1.xpose.msra.mxu0 0.0
  %2291 = vmatprep.subr.mxu0 0.0
  %2292 = vmatpush1.xpose.msra.mxu0 0.0
  %2293 = vmatprep.subr.mxu0 0.0
  %2294 = vmatpush1.xpose.msra.mxu0 0.0
  %2295 = vmatprep.subr.mxu0 0.0
  %v2296 = vand.u32 %v2263, 4294901760
  %2297 = vmatpush1.xpose.msra.mxu0 %v2296
  %2298 = vmatprep.subr.mxu0 0.0
  %2299 = vmatpush2.xpose.msra.mxu0 0.0
  %2300 = vmatprep.subr.mxu0 0.0
  %2301 = vmatpush2.xpose.msra.mxu0 0.0
  %2302 = vmatprep.subr.mxu0 0.0
  %2303 = vmatpush2.xpose.msra.mxu0 0.0
  %2304 = vmatprep.subr.mxu0 0.0
  %2305 = vmatpush2.xpose.msra.mxu0 0.0
  %2306 = vmatprep.subr.mxu0 0.0
  %2307 = vmatpush2.xpose.msra.mxu0 0.0
  %2308 = vmatprep.subr.mxu0 0.0
  %2309 = vmatpush2.xpose.msra.mxu0 0.0
  %2310 = vmatprep.subr.mxu0 0.0
  %2311 = vmatpush2.xpose.msra.mxu0 0.0
  %2312 = vmatprep.subr.mxu0 0.0
  %2313 = vmatpush2.xpose.msra.mxu0 0.0
  %2314 = vmatprep.subr.mxu0 0.0
  %2315 = vmatpush2.xpose.msra.mxu0 0.0
  %2316 = vmatprep.subr.mxu0 0.0
  %2317 = vmatpush2.xpose.msra.mxu0 0.0
  %2318 = vmatprep.subr.mxu0 0.0
  %2319 = vmatpush2.xpose.msra.mxu0 0.0
  %2320 = vmatprep.subr.mxu0 0.0
  %2321 = vmatpush2.xpose.msra.mxu0 0.0
  %2322 = vmatprep.subr.mxu0 0.0
  %2323 = vmatpush2.xpose.msra.mxu0 0.0
  %2324 = vmatprep.subr.mxu0 0.0
  %2325 = vmatpush2.xpose.msra.mxu0 0.0
  %2326 = vmatprep.subr.mxu0 0.0
  %2327 = vmatpush2.xpose.msra.mxu0 0.0
  %2328 = vmatprep.subr.mxu0 0.0
  %2329 = vmatpush2.xpose.msra.mxu0 0.0
  %2330 = vmatprep.mubr.f32.mxu0 0.0
  %v2331 = vand.u32 %v2263, 4294901760
  %v2332 = vsub.f32 %v2263, %v2331
  %v2333 = vand.u32 %v2332, 4294901760
  %v2334 = vsub.f32 %v2332, %v2333
  %v2335 = vand.u32 %v2334, 4294901760
  %2336 = vmatmul.mubr.f32.gmra.mxu0 %v2335
  %v2337 = vpop.f32.mrf.mxu0
  %v2338 = vadd.f32 0.0, %v2337
  %v2339 = vpop.f32.mrf.mxu0
  %2340 = vdwg.mxu0
  %2341 = vmatprep.subr.mxu0 0.0
  %2342 = vmatpush1.xpose.msra.mxu0 0.0
  %2343 = vmatprep.subr.mxu0 0.0
  %2344 = vmatpush1.xpose.msra.mxu0 0.0
  %2345 = vmatprep.subr.mxu0 0.0
  %2346 = vmatpush1.xpose.msra.mxu0 0.0
  %2347 = vmatprep.subr.mxu0 0.0
  %2348 = vmatpush1.xpose.msra.mxu0 0.0
  %2349 = vmatprep.subr.mxu0 0.0
  %2350 = vmatpush1.xpose.msra.mxu0 0.0
  %2351 = vmatprep.subr.mxu0 0.0
  %2352 = vmatpush1.xpose.msra.mxu0 0.0
  %2353 = vmatprep.subr.mxu0 0.0
  %2354 = vmatpush1.xpose.msra.mxu0 0.0
  %2355 = vmatprep.subr.mxu0 0.0
  %2356 = vmatpush1.xpose.msra.mxu0 0.0
  %2357 = vmatprep.subr.mxu0 0.0
  %2358 = vmatpush1.xpose.msra.mxu0 0.0
  %2359 = vmatprep.subr.mxu0 0.0
  %2360 = vmatpush1.xpose.msra.mxu0 0.0
  %2361 = vmatprep.subr.mxu0 0.0
  %2362 = vmatpush1.xpose.msra.mxu0 0.0
  %2363 = vmatprep.subr.mxu0 0.0
  %2364 = vmatpush1.xpose.msra.mxu0 0.0
  %2365 = vmatprep.subr.mxu0 0.0
  %2366 = vmatpush1.xpose.msra.mxu0 0.0
  %2367 = vmatprep.subr.mxu0 0.0
  %2368 = vmatpush1.xpose.msra.mxu0 0.0
  %2369 = vmatprep.subr.mxu0 0.0
  %2370 = vmatpush1.xpose.msra.mxu0 0.0
  %2371 = vmatprep.subr.mxu0 0.0
  %v2372 = vand.u32 %v2263, 4294901760
  %v2373 = vsub.f32 %v2263, %v2372
  %v2374 = vand.u32 %v2373, 4294901760
  %v2375 = vsub.f32 %v2373, %v2374
  %v2376 = vand.u32 %v2375, 4294901760
  %2377 = vmatpush1.xpose.msra.mxu0 %v2376
  %2378 = vmatprep.subr.mxu0 0.0
  %2379 = vmatpush2.xpose.msra.mxu0 0.0
  %2380 = vmatprep.subr.mxu0 0.0
  %2381 = vmatpush2.xpose.msra.mxu0 0.0
  %2382 = vmatprep.subr.mxu0 0.0
  %2383 = vmatpush2.xpose.msra.mxu0 0.0
  %2384 = vmatprep.subr.mxu0 0.0
  %2385 = vmatpush2.xpose.msra.mxu0 0.0
  %2386 = vmatprep.subr.mxu0 0.0
  %2387 = vmatpush2.xpose.msra.mxu0 0.0
  %2388 = vmatprep.subr.mxu0 0.0
  %2389 = vmatpush2.xpose.msra.mxu0 0.0
  %2390 = vmatprep.subr.mxu0 0.0
  %2391 = vmatpush2.xpose.msra.mxu0 0.0
  %2392 = vmatprep.subr.mxu0 0.0
  %2393 = vmatpush2.xpose.msra.mxu0 0.0
  %2394 = vmatprep.subr.mxu0 0.0
  %2395 = vmatpush2.xpose.msra.mxu0 0.0
  %2396 = vmatprep.subr.mxu0 0.0
  %2397 = vmatpush2.xpose.msra.mxu0 0.0
  %2398 = vmatprep.subr.mxu0 0.0
  %2399 = vmatpush2.xpose.msra.mxu0 0.0
  %2400 = vmatprep.subr.mxu0 0.0
  %2401 = vmatpush2.xpose.msra.mxu0 0.0
  %2402 = vmatprep.subr.mxu0 0.0
  %2403 = vmatpush2.xpose.msra.mxu0 0.0
  %2404 = vmatprep.subr.mxu0 0.0
  %2405 = vmatpush2.xpose.msra.mxu0 0.0
  %2406 = vmatprep.subr.mxu0 0.0
  %2407 = vmatpush2.xpose.msra.mxu0 0.0
  %2408 = vmatprep.subr.mxu0 0.0
  %2409 = vmatpush2.xpose.msra.mxu0 0.0
  %2410 = vmatprep.mubr.f32.mxu0 0.0
  %v2411 = vand.u32 %v2263, 4294901760
  %2412 = vmatmul.mubr.f32.gmra.mxu0 %v2411
  %v2413 = vpop.f32.mrf.mxu0
  %v2414 = vadd.f32 %v2338, %v2413
  %v2415 = vpop.f32.mrf.mxu0
  %2416 = vdwg.mxu0
  %2417 = vmatprep.subr.mxu0 0.0
  %2418 = vmatpush1.xpose.msra.mxu0 0.0
  %2419 = vmatprep.subr.mxu0 0.0
  %2420 = vmatpush1.xpose.msra.mxu0 0.0
  %2421 = vmatprep.subr.mxu0 0.0
  %2422 = vmatpush1.xpose.msra.mxu0 0.0
  %2423 = vmatprep.subr.mxu0 0.0
  %2424 = vmatpush1.xpose.msra.mxu0 0.0
  %2425 = vmatprep.subr.mxu0 0.0
  %2426 = vmatpush1.xpose.msra.mxu0 0.0
  %2427 = vmatprep.subr.mxu0 0.0
  %2428 = vmatpush1.xpose.msra.mxu0 0.0
  %2429 = vmatprep.subr.mxu0 0.0
  %2430 = vmatpush1.xpose.msra.mxu0 0.0
  %2431 = vmatprep.subr.mxu0 0.0
  %2432 = vmatpush1.xpose.msra.mxu0 0.0
  %2433 = vmatprep.subr.mxu0 0.0
  %2434 = vmatpush1.xpose.msra.mxu0 0.0
  %2435 = vmatprep.subr.mxu0 0.0
  %2436 = vmatpush1.xpose.msra.mxu0 0.0
  %2437 = vmatprep.subr.mxu0 0.0
  %2438 = vmatpush1.xpose.msra.mxu0 0.0
  %2439 = vmatprep.subr.mxu0 0.0
  %2440 = vmatpush1.xpose.msra.mxu0 0.0
  %2441 = vmatprep.subr.mxu0 0.0
  %2442 = vmatpush1.xpose.msra.mxu0 0.0
  %2443 = vmatprep.subr.mxu0 0.0
  %2444 = vmatpush1.xpose.msra.mxu0 0.0
  %2445 = vmatprep.subr.mxu0 0.0
  %2446 = vmatpush1.xpose.msra.mxu0 0.0
  %2447 = vmatprep.subr.mxu0 0.0
  %v2448 = vand.u32 %v2263, 4294901760
  %v2449 = vsub.f32 %v2263, %v2448
  %2450 = vmatpush1.xpose.msra.mxu0 %v2449
  %2451 = vmatprep.subr.mxu0 0.0
  %2452 = vmatpush2.xpose.msra.mxu0 0.0
  %2453 = vmatprep.subr.mxu0 0.0
  %2454 = vmatpush2.xpose.msra.mxu0 0.0
  %2455 = vmatprep.subr.mxu0 0.0
  %2456 = vmatpush2.xpose.msra.mxu0 0.0
  %2457 = vmatprep.subr.mxu0 0.0
  %2458 = vmatpush2.xpose.msra.mxu0 0.0
  %2459 = vmatprep.subr.mxu0 0.0
  %2460 = vmatpush2.xpose.msra.mxu0 0.0
  %2461 = vmatprep.subr.mxu0 0.0
  %2462 = vmatpush2.xpose.msra.mxu0 0.0
  %2463 = vmatprep.subr.mxu0 0.0
  %2464 = vmatpush2.xpose.msra.mxu0 0.0
  %2465 = vmatprep.subr.mxu0 0.0
  %2466 = vmatpush2.xpose.msra.mxu0 0.0
  %2467 = vmatprep.subr.mxu0 0.0
  %2468 = vmatpush2.xpose.msra.mxu0 0.0
  %2469 = vmatprep.subr.mxu0 0.0
  %2470 = vmatpush2.xpose.msra.mxu0 0.0
  %2471 = vmatprep.subr.mxu0 0.0
  %2472 = vmatpush2.xpose.msra.mxu0 0.0
  %2473 = vmatprep.subr.mxu0 0.0
  %2474 = vmatpush2.xpose.msra.mxu0 0.0
  %2475 = vmatprep.subr.mxu0 0.0
  %2476 = vmatpush2.xpose.msra.mxu0 0.0
  %2477 = vmatprep.subr.mxu0 0.0
  %2478 = vmatpush2.xpose.msra.mxu0 0.0
  %2479 = vmatprep.subr.mxu0 0.0
  %2480 = vmatpush2.xpose.msra.mxu0 0.0
  %2481 = vmatprep.subr.mxu0 0.0
  %2482 = vmatpush2.xpose.msra.mxu0 0.0
  %2483 = vmatprep.mubr.f32.mxu0 0.0
  %v2484 = vand.u32 %v2263, 4294901760
  %v2485 = vsub.f32 %v2263, %v2484
  %2486 = vmatmul.mubr.f32.gmra.mxu0 %v2485
  %v2487 = vpop.f32.mrf.mxu0
  %v2488 = vadd.f32 %v2414, %v2487
  %v2489 = vpop.f32.mrf.mxu0
  %2490 = vdwg.mxu0
  %2491 = vmatprep.subr.mxu0 0.0
  %2492 = vmatpush1.xpose.msra.mxu0 0.0
  %2493 = vmatprep.subr.mxu0 0.0
  %2494 = vmatpush1.xpose.msra.mxu0 0.0
  %2495 = vmatprep.subr.mxu0 0.0
  %2496 = vmatpush1.xpose.msra.mxu0 0.0
  %2497 = vmatprep.subr.mxu0 0.0
  %2498 = vmatpush1.xpose.msra.mxu0 0.0
  %2499 = vmatprep.subr.mxu0 0.0
  %2500 = vmatpush1.xpose.msra.mxu0 0.0
  %2501 = vmatprep.subr.mxu0 0.0
  %2502 = vmatpush1.xpose.msra.mxu0 0.0
  %2503 = vmatprep.subr.mxu0 0.0
  %2504 = vmatpush1.xpose.msra.mxu0 0.0
  %2505 = vmatprep.subr.mxu0 0.0
  %2506 = vmatpush1.xpose.msra.mxu0 0.0
  %2507 = vmatprep.subr.mxu0 0.0
  %2508 = vmatpush1.xpose.msra.mxu0 0.0
  %2509 = vmatprep.subr.mxu0 0.0
  %2510 = vmatpush1.xpose.msra.mxu0 0.0
  %2511 = vmatprep.subr.mxu0 0.0
  %2512 = vmatpush1.xpose.msra.mxu0 0.0
  %2513 = vmatprep.subr.mxu0 0.0
  %2514 = vmatpush1.xpose.msra.mxu0 0.0
  %2515 = vmatprep.subr.mxu0 0.0
  %2516 = vmatpush1.xpose.msra.mxu0 0.0
  %2517 = vmatprep.subr.mxu0 0.0
  %2518 = vmatpush1.xpose.msra.mxu0 0.0
  %2519 = vmatprep.subr.mxu0 0.0
  %2520 = vmatpush1.xpose.msra.mxu0 0.0
  %2521 = vmatprep.subr.mxu0 0.0
  %v2522 = vand.u32 %v2263, 4294901760
  %2523 = vmatpush1.xpose.msra.mxu0 %v2522
  %2524 = vmatprep.subr.mxu0 0.0
  %2525 = vmatpush2.xpose.msra.mxu0 0.0
  %2526 = vmatprep.subr.mxu0 0.0
  %2527 = vmatpush2.xpose.msra.mxu0 0.0
  %2528 = vmatprep.subr.mxu0 0.0
  %2529 = vmatpush2.xpose.msra.mxu0 0.0
  %2530 = vmatprep.subr.mxu0 0.0
  %2531 = vmatpush2.xpose.msra.mxu0 0.0
  %2532 = vmatprep.subr.mxu0 0.0
  %2533 = vmatpush2.xpose.msra.mxu0 0.0
  %2534 = vmatprep.subr.mxu0 0.0
  %2535 = vmatpush2.xpose.msra.mxu0 0.0
  %2536 = vmatprep.subr.mxu0 0.0
  %2537 = vmatpush2.xpose.msra.mxu0 0.0
  %2538 = vmatprep.subr.mxu0 0.0
  %2539 = vmatpush2.xpose.msra.mxu0 0.0
  %2540 = vmatprep.subr.mxu0 0.0
  %2541 = vmatpush2.xpose.msra.mxu0 0.0
  %2542 = vmatprep.subr.mxu0 0.0
  %2543 = vmatpush2.xpose.msra.mxu0 0.0
  %2544 = vmatprep.subr.mxu0 0.0
  %2545 = vmatpush2.xpose.msra.mxu0 0.0
  %2546 = vmatprep.subr.mxu0 0.0
  %2547 = vmatpush2.xpose.msra.mxu0 0.0
  %2548 = vmatprep.subr.mxu0 0.0
  %2549 = vmatpush2.xpose.msra.mxu0 0.0
  %2550 = vmatprep.subr.mxu0 0.0
  %2551 = vmatpush2.xpose.msra.mxu0 0.0
  %2552 = vmatprep.subr.mxu0 0.0
  %2553 = vmatpush2.xpose.msra.mxu0 0.0
  %2554 = vmatprep.subr.mxu0 0.0
  %2555 = vmatpush2.xpose.msra.mxu0 0.0
  %2556 = vmatprep.mubr.f32.mxu0 0.0
  %v2557 = vand.u32 %v2263, 4294901760
  %v2558 = vsub.f32 %v2263, %v2557
  %v2559 = vand.u32 %v2558, 4294901760
  %2560 = vmatmul.mubr.f32.gmra.mxu0 %v2559
  %v2561 = vpop.f32.mrf.mxu0
  %v2562 = vadd.f32 %v2488, %v2561
  %v2563 = vpop.f32.mrf.mxu0
  %2564 = vdwg.mxu0
  %2565 = vmatprep.subr.mxu0 0.0
  %2566 = vmatpush1.xpose.msra.mxu0 0.0
  %2567 = vmatprep.subr.mxu0 0.0
  %2568 = vmatpush1.xpose.msra.mxu0 0.0
  %2569 = vmatprep.subr.mxu0 0.0
  %2570 = vmatpush1.xpose.msra.mxu0 0.0
  %2571 = vmatprep.subr.mxu0 0.0
  %2572 = vmatpush1.xpose.msra.mxu0 0.0
  %2573 = vmatprep.subr.mxu0 0.0
  %2574 = vmatpush1.xpose.msra.mxu0 0.0
  %2575 = vmatprep.subr.mxu0 0.0
  %2576 = vmatpush1.xpose.msra.mxu0 0.0
  %2577 = vmatprep.subr.mxu0 0.0
  %2578 = vmatpush1.xpose.msra.mxu0 0.0
  %2579 = vmatprep.subr.mxu0 0.0
  %2580 = vmatpush1.xpose.msra.mxu0 0.0
  %2581 = vmatprep.subr.mxu0 0.0
  %2582 = vmatpush1.xpose.msra.mxu0 0.0
  %2583 = vmatprep.subr.mxu0 0.0
  %2584 = vmatpush1.xpose.msra.mxu0 0.0
  %2585 = vmatprep.subr.mxu0 0.0
  %2586 = vmatpush1.xpose.msra.mxu0 0.0
  %2587 = vmatprep.subr.mxu0 0.0
  %2588 = vmatpush1.xpose.msra.mxu0 0.0
  %2589 = vmatprep.subr.mxu0 0.0
  %2590 = vmatpush1.xpose.msra.mxu0 0.0
  %2591 = vmatprep.subr.mxu0 0.0
  %2592 = vmatpush1.xpose.msra.mxu0 0.0
  %2593 = vmatprep.subr.mxu0 0.0
  %2594 = vmatpush1.xpose.msra.mxu0 0.0
  %2595 = vmatprep.subr.mxu0 0.0
  %v2596 = vand.u32 %v2263, 4294901760
  %v2597 = vsub.f32 %v2263, %v2596
  %v2598 = vand.u32 %v2597, 4294901760
  %2599 = vmatpush1.xpose.msra.mxu0 %v2598
  %2600 = vmatprep.subr.mxu0 0.0
  %2601 = vmatpush2.xpose.msra.mxu0 0.0
  %2602 = vmatprep.subr.mxu0 0.0
  %2603 = vmatpush2.xpose.msra.mxu0 0.0
  %2604 = vmatprep.subr.mxu0 0.0
  %2605 = vmatpush2.xpose.msra.mxu0 0.0
  %2606 = vmatprep.subr.mxu0 0.0
  %2607 = vmatpush2.xpose.msra.mxu0 0.0
  %2608 = vmatprep.subr.mxu0 0.0
  %2609 = vmatpush2.xpose.msra.mxu0 0.0
  %2610 = vmatprep.subr.mxu0 0.0
  %2611 = vmatpush2.xpose.msra.mxu0 0.0
  %2612 = vmatprep.subr.mxu0 0.0
  %2613 = vmatpush2.xpose.msra.mxu0 0.0
  %2614 = vmatprep.subr.mxu0 0.0
  %2615 = vmatpush2.xpose.msra.mxu0 0.0
  %2616 = vmatprep.subr.mxu0 0.0
  %2617 = vmatpush2.xpose.msra.mxu0 0.0
  %2618 = vmatprep.subr.mxu0 0.0
  %2619 = vmatpush2.xpose.msra.mxu0 0.0
  %2620 = vmatprep.subr.mxu0 0.0
  %2621 = vmatpush2.xpose.msra.mxu0 0.0
  %2622 = vmatprep.subr.mxu0 0.0
  %2623 = vmatpush2.xpose.msra.mxu0 0.0
  %2624 = vmatprep.subr.mxu0 0.0
  %2625 = vmatpush2.xpose.msra.mxu0 0.0
  %2626 = vmatprep.subr.mxu0 0.0
  %2627 = vmatpush2.xpose.msra.mxu0 0.0
  %2628 = vmatprep.subr.mxu0 0.0
  %2629 = vmatpush2.xpose.msra.mxu0 0.0
  %2630 = vmatprep.subr.mxu0 0.0
  %2631 = vmatpush2.xpose.msra.mxu0 0.0
  %2632 = vmatprep.mubr.f32.mxu0 0.0
  %v2633 = vand.u32 %v2263, 4294901760
  %2634 = vmatmul.mubr.f32.gmra.mxu0 %v2633
  %v2635 = vpop.f32.mrf.mxu0
  %v2636 = vadd.f32 %v2562, %v2635
  %v2637 = vpop.f32.mrf.mxu0
  %2638 = vdwg.mxu0
  %2639 = vmatprep.subr.mxu0 0.0
  %2640 = vmatpush1.xpose.msra.mxu0 0.0
  %2641 = vmatprep.subr.mxu0 0.0
  %2642 = vmatpush1.xpose.msra.mxu0 0.0
  %2643 = vmatprep.subr.mxu0 0.0
  %2644 = vmatpush1.xpose.msra.mxu0 0.0
  %2645 = vmatprep.subr.mxu0 0.0
  %2646 = vmatpush1.xpose.msra.mxu0 0.0
  %2647 = vmatprep.subr.mxu0 0.0
  %2648 = vmatpush1.xpose.msra.mxu0 0.0
  %2649 = vmatprep.subr.mxu0 0.0
  %2650 = vmatpush1.xpose.msra.mxu0 0.0
  %2651 = vmatprep.subr.mxu0 0.0
  %2652 = vmatpush1.xpose.msra.mxu0 0.0
  %2653 = vmatprep.subr.mxu0 0.0
  %2654 = vmatpush1.xpose.msra.mxu0 0.0
  %2655 = vmatprep.subr.mxu0 0.0
  %2656 = vmatpush1.xpose.msra.mxu0 0.0
  %2657 = vmatprep.subr.mxu0 0.0
  %2658 = vmatpush1.xpose.msra.mxu0 0.0
  %2659 = vmatprep.subr.mxu0 0.0
  %2660 = vmatpush1.xpose.msra.mxu0 0.0
  %2661 = vmatprep.subr.mxu0 0.0
  %2662 = vmatpush1.xpose.msra.mxu0 0.0
  %2663 = vmatprep.subr.mxu0 0.0
  %2664 = vmatpush1.xpose.msra.mxu0 0.0
  %2665 = vmatprep.subr.mxu0 0.0
  %2666 = vmatpush1.xpose.msra.mxu0 0.0
  %2667 = vmatprep.subr.mxu0 0.0
  %2668 = vmatpush1.xpose.msra.mxu0 0.0
  %2669 = vmatprep.subr.mxu0 0.0
  %v2670 = vand.u32 %v2263, 4294901760
  %2671 = vmatpush1.xpose.msra.mxu0 %v2670
  %2672 = vmatprep.subr.mxu0 0.0
  %2673 = vmatpush2.xpose.msra.mxu0 0.0
  %2674 = vmatprep.subr.mxu0 0.0
  %2675 = vmatpush2.xpose.msra.mxu0 0.0
  %2676 = vmatprep.subr.mxu0 0.0
  %2677 = vmatpush2.xpose.msra.mxu0 0.0
  %2678 = vmatprep.subr.mxu0 0.0
  %2679 = vmatpush2.xpose.msra.mxu0 0.0
  %2680 = vmatprep.subr.mxu0 0.0
  %2681 = vmatpush2.xpose.msra.mxu0 0.0
  %2682 = vmatprep.subr.mxu0 0.0
  %2683 = vmatpush2.xpose.msra.mxu0 0.0
  %2684 = vmatprep.subr.mxu0 0.0
  %2685 = vmatpush2.xpose.msra.mxu0 0.0
  %2686 = vmatprep.subr.mxu0 0.0
  %2687 = vmatpush2.xpose.msra.mxu0 0.0
  %2688 = vmatprep.subr.mxu0 0.0
  %2689 = vmatpush2.xpose.msra.mxu0 0.0
  %2690 = vmatprep.subr.mxu0 0.0
  %2691 = vmatpush2.xpose.msra.mxu0 0.0
  %2692 = vmatprep.subr.mxu0 0.0
  %2693 = vmatpush2.xpose.msra.mxu0 0.0
  %2694 = vmatprep.subr.mxu0 0.0
  %2695 = vmatpush2.xpose.msra.mxu0 0.0
  %2696 = vmatprep.subr.mxu0 0.0
  %2697 = vmatpush2.xpose.msra.mxu0 0.0
  %2698 = vmatprep.subr.mxu0 0.0
  %2699 = vmatpush2.xpose.msra.mxu0 0.0
  %2700 = vmatprep.subr.mxu0 0.0
  %2701 = vmatpush2.xpose.msra.mxu0 0.0
  %2702 = vmatprep.subr.mxu0 0.0
  %2703 = vmatpush2.xpose.msra.mxu0 0.0
  %2704 = vmatprep.mubr.f32.mxu0 0.0
  %v2705 = vand.u32 %v2263, 4294901760
  %2706 = vmatmul.mubr.f32.gmra.mxu0 %v2705
  %v2707 = vpop.f32.mrf.mxu0
  %v2708 = vadd.f32 %v2636, %v2707
  %v2709 = vpop.f32.mrf.mxu0
  %2710 = vdwg.mxu0
  %v2712 = vsel %vm16, %v14, 0
  %2714 = vmatprep.subr.mxu0 0.0
  %2715 = vmatpush1.xpose.msra.mxu0 0.0
  %2716 = vmatprep.subr.mxu0 0.0
  %2717 = vmatpush1.xpose.msra.mxu0 0.0
  %2718 = vmatprep.subr.mxu0 0.0
  %2719 = vmatpush1.xpose.msra.mxu0 0.0
  %2720 = vmatprep.subr.mxu0 0.0
  %2721 = vmatpush1.xpose.msra.mxu0 0.0
  %2722 = vmatprep.subr.mxu0 0.0
  %2723 = vmatpush1.xpose.msra.mxu0 0.0
  %2724 = vmatprep.subr.mxu0 0.0
  %2725 = vmatpush1.xpose.msra.mxu0 0.0
  %2726 = vmatprep.subr.mxu0 0.0
  %2727 = vmatpush1.xpose.msra.mxu0 0.0
  %2728 = vmatprep.subr.mxu0 0.0
  %2729 = vmatpush1.xpose.msra.mxu0 0.0
  %2730 = vmatprep.subr.mxu0 0.0
  %2731 = vmatpush1.xpose.msra.mxu0 0.0
  %2732 = vmatprep.subr.mxu0 0.0
  %2733 = vmatpush1.xpose.msra.mxu0 0.0
  %2734 = vmatprep.subr.mxu0 0.0
  %2735 = vmatpush1.xpose.msra.mxu0 0.0
  %2736 = vmatprep.subr.mxu0 0.0
  %2737 = vmatpush1.xpose.msra.mxu0 0.0
  %2738 = vmatprep.subr.mxu0 0.0
  %2739 = vmatpush1.xpose.msra.mxu0 0.0
  %2740 = vmatprep.subr.mxu0 0.0
  %2741 = vmatpush1.xpose.msra.mxu0 0.0
  %2742 = vmatprep.subr.mxu0 0.0
  %2743 = vmatpush1.xpose.msra.mxu0 0.0
  %2744 = vmatprep.subr.mxu0 0.0
  %v2745 = vand.u32 %v2712, 4294901760
  %2746 = vmatpush1.xpose.msra.mxu0 %v2745
  %2747 = vmatprep.subr.mxu0 0.0
  %2748 = vmatpush2.xpose.msra.mxu0 0.0
  %2749 = vmatprep.subr.mxu0 0.0
  %2750 = vmatpush2.xpose.msra.mxu0 0.0
  %2751 = vmatprep.subr.mxu0 0.0
  %2752 = vmatpush2.xpose.msra.mxu0 0.0
  %2753 = vmatprep.subr.mxu0 0.0
  %2754 = vmatpush2.xpose.msra.mxu0 0.0
  %2755 = vmatprep.subr.mxu0 0.0
  %2756 = vmatpush2.xpose.msra.mxu0 0.0
  %2757 = vmatprep.subr.mxu0 0.0
  %2758 = vmatpush2.xpose.msra.mxu0 0.0
  %2759 = vmatprep.subr.mxu0 0.0
  %2760 = vmatpush2.xpose.msra.mxu0 0.0
  %2761 = vmatprep.subr.mxu0 0.0
  %2762 = vmatpush2.xpose.msra.mxu0 0.0
  %2763 = vmatprep.subr.mxu0 0.0
  %2764 = vmatpush2.xpose.msra.mxu0 0.0
  %2765 = vmatprep.subr.mxu0 0.0
  %2766 = vmatpush2.xpose.msra.mxu0 0.0
  %2767 = vmatprep.subr.mxu0 0.0
  %2768 = vmatpush2.xpose.msra.mxu0 0.0
  %2769 = vmatprep.subr.mxu0 0.0
  %2770 = vmatpush2.xpose.msra.mxu0 0.0
  %2771 = vmatprep.subr.mxu0 0.0
  %2772 = vmatpush2.xpose.msra.mxu0 0.0
  %2773 = vmatprep.subr.mxu0 0.0
  %2774 = vmatpush2.xpose.msra.mxu0 0.0
  %2775 = vmatprep.subr.mxu0 0.0
  %2776 = vmatpush2.xpose.msra.mxu0 0.0
  %2777 = vmatprep.subr.mxu0 0.0
  %2778 = vmatpush2.xpose.msra.mxu0 0.0
  %2779 = vmatprep.mubr.f32.mxu0 0.0
  %v2780 = vand.u32 %v2712, 4294901760
  %v2781 = vsub.f32 %v2712, %v2780
  %v2782 = vand.u32 %v2781, 4294901760
  %v2783 = vsub.f32 %v2781, %v2782
  %v2784 = vand.u32 %v2783, 4294901760
  %2785 = vmatmul.mubr.f32.gmra.mxu0 %v2784
  %v2786 = vpop.f32.mrf.mxu0
  %v2787 = vadd.f32 0.0, %v2786
  %v2788 = vpop.f32.mrf.mxu0
  %2789 = vdwg.mxu0
  %2790 = vmatprep.subr.mxu0 0.0
  %2791 = vmatpush1.xpose.msra.mxu0 0.0
  %2792 = vmatprep.subr.mxu0 0.0
  %2793 = vmatpush1.xpose.msra.mxu0 0.0
  %2794 = vmatprep.subr.mxu0 0.0
  %2795 = vmatpush1.xpose.msra.mxu0 0.0
  %2796 = vmatprep.subr.mxu0 0.0
  %2797 = vmatpush1.xpose.msra.mxu0 0.0
  %2798 = vmatprep.subr.mxu0 0.0
  %2799 = vmatpush1.xpose.msra.mxu0 0.0
  %2800 = vmatprep.subr.mxu0 0.0
  %2801 = vmatpush1.xpose.msra.mxu0 0.0
  %2802 = vmatprep.subr.mxu0 0.0
  %2803 = vmatpush1.xpose.msra.mxu0 0.0
  %2804 = vmatprep.subr.mxu0 0.0
  %2805 = vmatpush1.xpose.msra.mxu0 0.0
  %2806 = vmatprep.subr.mxu0 0.0
  %2807 = vmatpush1.xpose.msra.mxu0 0.0
  %2808 = vmatprep.subr.mxu0 0.0
  %2809 = vmatpush1.xpose.msra.mxu0 0.0
  %2810 = vmatprep.subr.mxu0 0.0
  %2811 = vmatpush1.xpose.msra.mxu0 0.0
  %2812 = vmatprep.subr.mxu0 0.0
  %2813 = vmatpush1.xpose.msra.mxu0 0.0
  %2814 = vmatprep.subr.mxu0 0.0
  %2815 = vmatpush1.xpose.msra.mxu0 0.0
  %2816 = vmatprep.subr.mxu0 0.0
  %2817 = vmatpush1.xpose.msra.mxu0 0.0
  %2818 = vmatprep.subr.mxu0 0.0
  %2819 = vmatpush1.xpose.msra.mxu0 0.0
  %2820 = vmatprep.subr.mxu0 0.0
  %v2821 = vand.u32 %v2712, 4294901760
  %v2822 = vsub.f32 %v2712, %v2821
  %v2823 = vand.u32 %v2822, 4294901760
  %v2824 = vsub.f32 %v2822, %v2823
  %v2825 = vand.u32 %v2824, 4294901760
  %2826 = vmatpush1.xpose.msra.mxu0 %v2825
  %2827 = vmatprep.subr.mxu0 0.0
  %2828 = vmatpush2.xpose.msra.mxu0 0.0
  %2829 = vmatprep.subr.mxu0 0.0
  %2830 = vmatpush2.xpose.msra.mxu0 0.0
  %2831 = vmatprep.subr.mxu0 0.0
  %2832 = vmatpush2.xpose.msra.mxu0 0.0
  %2833 = vmatprep.subr.mxu0 0.0
  %2834 = vmatpush2.xpose.msra.mxu0 0.0
  %2835 = vmatprep.subr.mxu0 0.0
  %2836 = vmatpush2.xpose.msra.mxu0 0.0
  %2837 = vmatprep.subr.mxu0 0.0
  %2838 = vmatpush2.xpose.msra.mxu0 0.0
  %2839 = vmatprep.subr.mxu0 0.0
  %2840 = vmatpush2.xpose.msra.mxu0 0.0
  %2841 = vmatprep.subr.mxu0 0.0
  %2842 = vmatpush2.xpose.msra.mxu0 0.0
  %2843 = vmatprep.subr.mxu0 0.0
  %2844 = vmatpush2.xpose.msra.mxu0 0.0
  %2845 = vmatprep.subr.mxu0 0.0
  %2846 = vmatpush2.xpose.msra.mxu0 0.0
  %2847 = vmatprep.subr.mxu0 0.0
  %2848 = vmatpush2.xpose.msra.mxu0 0.0
  %2849 = vmatprep.subr.mxu0 0.0
  %2850 = vmatpush2.xpose.msra.mxu0 0.0
  %2851 = vmatprep.subr.mxu0 0.0
  %2852 = vmatpush2.xpose.msra.mxu0 0.0
  %2853 = vmatprep.subr.mxu0 0.0
  %2854 = vmatpush2.xpose.msra.mxu0 0.0
  %2855 = vmatprep.subr.mxu0 0.0
  %2856 = vmatpush2.xpose.msra.mxu0 0.0
  %2857 = vmatprep.subr.mxu0 0.0
  %2858 = vmatpush2.xpose.msra.mxu0 0.0
  %2859 = vmatprep.mubr.f32.mxu0 0.0
  %v2860 = vand.u32 %v2712, 4294901760
  %2861 = vmatmul.mubr.f32.gmra.mxu0 %v2860
  %v2862 = vpop.f32.mrf.mxu0
  %v2863 = vadd.f32 %v2787, %v2862
  %v2864 = vpop.f32.mrf.mxu0
  %2865 = vdwg.mxu0
  %2866 = vmatprep.subr.mxu0 0.0
  %2867 = vmatpush1.xpose.msra.mxu0 0.0
  %2868 = vmatprep.subr.mxu0 0.0
  %2869 = vmatpush1.xpose.msra.mxu0 0.0
  %2870 = vmatprep.subr.mxu0 0.0
  %2871 = vmatpush1.xpose.msra.mxu0 0.0
  %2872 = vmatprep.subr.mxu0 0.0
  %2873 = vmatpush1.xpose.msra.mxu0 0.0
  %2874 = vmatprep.subr.mxu0 0.0
  %2875 = vmatpush1.xpose.msra.mxu0 0.0
  %2876 = vmatprep.subr.mxu0 0.0
  %2877 = vmatpush1.xpose.msra.mxu0 0.0
  %2878 = vmatprep.subr.mxu0 0.0
  %2879 = vmatpush1.xpose.msra.mxu0 0.0
  %2880 = vmatprep.subr.mxu0 0.0
  %2881 = vmatpush1.xpose.msra.mxu0 0.0
  %2882 = vmatprep.subr.mxu0 0.0
  %2883 = vmatpush1.xpose.msra.mxu0 0.0
  %2884 = vmatprep.subr.mxu0 0.0
  %2885 = vmatpush1.xpose.msra.mxu0 0.0
  %2886 = vmatprep.subr.mxu0 0.0
  %2887 = vmatpush1.xpose.msra.mxu0 0.0
  %2888 = vmatprep.subr.mxu0 0.0
  %2889 = vmatpush1.xpose.msra.mxu0 0.0
  %2890 = vmatprep.subr.mxu0 0.0
  %2891 = vmatpush1.xpose.msra.mxu0 0.0
  %2892 = vmatprep.subr.mxu0 0.0
  %2893 = vmatpush1.xpose.msra.mxu0 0.0
  %2894 = vmatprep.subr.mxu0 0.0
  %2895 = vmatpush1.xpose.msra.mxu0 0.0
  %2896 = vmatprep.subr.mxu0 0.0
  %v2897 = vand.u32 %v2712, 4294901760
  %v2898 = vsub.f32 %v2712, %v2897
  %2899 = vmatpush1.xpose.msra.mxu0 %v2898
  %2900 = vmatprep.subr.mxu0 0.0
  %2901 = vmatpush2.xpose.msra.mxu0 0.0
  %2902 = vmatprep.subr.mxu0 0.0
  %2903 = vmatpush2.xpose.msra.mxu0 0.0
  %2904 = vmatprep.subr.mxu0 0.0
  %2905 = vmatpush2.xpose.msra.mxu0 0.0
  %2906 = vmatprep.subr.mxu0 0.0
  %2907 = vmatpush2.xpose.msra.mxu0 0.0
  %2908 = vmatprep.subr.mxu0 0.0
  %2909 = vmatpush2.xpose.msra.mxu0 0.0
  %2910 = vmatprep.subr.mxu0 0.0
  %2911 = vmatpush2.xpose.msra.mxu0 0.0
  %2912 = vmatprep.subr.mxu0 0.0
  %2913 = vmatpush2.xpose.msra.mxu0 0.0
  %2914 = vmatprep.subr.mxu0 0.0
  %2915 = vmatpush2.xpose.msra.mxu0 0.0
  %2916 = vmatprep.subr.mxu0 0.0
  %2917 = vmatpush2.xpose.msra.mxu0 0.0
  %2918 = vmatprep.subr.mxu0 0.0
  %2919 = vmatpush2.xpose.msra.mxu0 0.0
  %2920 = vmatprep.subr.mxu0 0.0
  %2921 = vmatpush2.xpose.msra.mxu0 0.0
  %2922 = vmatprep.subr.mxu0 0.0
  %2923 = vmatpush2.xpose.msra.mxu0 0.0
  %2924 = vmatprep.subr.mxu0 0.0
  %2925 = vmatpush2.xpose.msra.mxu0 0.0
  %2926 = vmatprep.subr.mxu0 0.0
  %2927 = vmatpush2.xpose.msra.mxu0 0.0
  %2928 = vmatprep.subr.mxu0 0.0
  %2929 = vmatpush2.xpose.msra.mxu0 0.0
  %2930 = vmatprep.subr.mxu0 0.0
  %2931 = vmatpush2.xpose.msra.mxu0 0.0
  %2932 = vmatprep.mubr.f32.mxu0 0.0
  %v2933 = vand.u32 %v2712, 4294901760
  %v2934 = vsub.f32 %v2712, %v2933
  %2935 = vmatmul.mubr.f32.gmra.mxu0 %v2934
  %v2936 = vpop.f32.mrf.mxu0
  %v2937 = vadd.f32 %v2863, %v2936
  %v2938 = vpop.f32.mrf.mxu0
  %2939 = vdwg.mxu0
  %2940 = vmatprep.subr.mxu0 0.0
  %2941 = vmatpush1.xpose.msra.mxu0 0.0
  %2942 = vmatprep.subr.mxu0 0.0
  %2943 = vmatpush1.xpose.msra.mxu0 0.0
  %2944 = vmatprep.subr.mxu0 0.0
  %2945 = vmatpush1.xpose.msra.mxu0 0.0
  %2946 = vmatprep.subr.mxu0 0.0
  %2947 = vmatpush1.xpose.msra.mxu0 0.0
  %2948 = vmatprep.subr.mxu0 0.0
  %2949 = vmatpush1.xpose.msra.mxu0 0.0
  %2950 = vmatprep.subr.mxu0 0.0
  %2951 = vmatpush1.xpose.msra.mxu0 0.0
  %2952 = vmatprep.subr.mxu0 0.0
  %2953 = vmatpush1.xpose.msra.mxu0 0.0
  %2954 = vmatprep.subr.mxu0 0.0
  %2955 = vmatpush1.xpose.msra.mxu0 0.0
  %2956 = vmatprep.subr.mxu0 0.0
  %2957 = vmatpush1.xpose.msra.mxu0 0.0
  %2958 = vmatprep.subr.mxu0 0.0
  %2959 = vmatpush1.xpose.msra.mxu0 0.0
  %2960 = vmatprep.subr.mxu0 0.0
  %2961 = vmatpush1.xpose.msra.mxu0 0.0
  %2962 = vmatprep.subr.mxu0 0.0
  %2963 = vmatpush1.xpose.msra.mxu0 0.0
  %2964 = vmatprep.subr.mxu0 0.0
  %2965 = vmatpush1.xpose.msra.mxu0 0.0
  %2966 = vmatprep.subr.mxu0 0.0
  %2967 = vmatpush1.xpose.msra.mxu0 0.0
  %2968 = vmatprep.subr.mxu0 0.0
  %2969 = vmatpush1.xpose.msra.mxu0 0.0
  %2970 = vmatprep.subr.mxu0 0.0
  %v2971 = vand.u32 %v2712, 4294901760
  %2972 = vmatpush1.xpose.msra.mxu0 %v2971
  %2973 = vmatprep.subr.mxu0 0.0
  %2974 = vmatpush2.xpose.msra.mxu0 0.0
  %2975 = vmatprep.subr.mxu0 0.0
  %2976 = vmatpush2.xpose.msra.mxu0 0.0
  %2977 = vmatprep.subr.mxu0 0.0
  %2978 = vmatpush2.xpose.msra.mxu0 0.0
  %2979 = vmatprep.subr.mxu0 0.0
  %2980 = vmatpush2.xpose.msra.mxu0 0.0
  %2981 = vmatprep.subr.mxu0 0.0
  %2982 = vmatpush2.xpose.msra.mxu0 0.0
  %2983 = vmatprep.subr.mxu0 0.0
  %2984 = vmatpush2.xpose.msra.mxu0 0.0
  %2985 = vmatprep.subr.mxu0 0.0
  %2986 = vmatpush2.xpose.msra.mxu0 0.0
  %2987 = vmatprep.subr.mxu0 0.0
  %2988 = vmatpush2.xpose.msra.mxu0 0.0
  %2989 = vmatprep.subr.mxu0 0.0
  %2990 = vmatpush2.xpose.msra.mxu0 0.0
  %2991 = vmatprep.subr.mxu0 0.0
  %2992 = vmatpush2.xpose.msra.mxu0 0.0
  %2993 = vmatprep.subr.mxu0 0.0
  %2994 = vmatpush2.xpose.msra.mxu0 0.0
  %2995 = vmatprep.subr.mxu0 0.0
  %2996 = vmatpush2.xpose.msra.mxu0 0.0
  %2997 = vmatprep.subr.mxu0 0.0
  %2998 = vmatpush2.xpose.msra.mxu0 0.0
  %2999 = vmatprep.subr.mxu0 0.0
  %3000 = vmatpush2.xpose.msra.mxu0 0.0
  %3001 = vmatprep.subr.mxu0 0.0
  %3002 = vmatpush2.xpose.msra.mxu0 0.0
  %3003 = vmatprep.subr.mxu0 0.0
  %3004 = vmatpush2.xpose.msra.mxu0 0.0
  %3005 = vmatprep.mubr.f32.mxu0 0.0
  %v3006 = vand.u32 %v2712, 4294901760
  %v3007 = vsub.f32 %v2712, %v3006
  %v3008 = vand.u32 %v3007, 4294901760
  %3009 = vmatmul.mubr.f32.gmra.mxu0 %v3008
  %v3010 = vpop.f32.mrf.mxu0
  %v3011 = vadd.f32 %v2937, %v3010
  %v3012 = vpop.f32.mrf.mxu0
  %3013 = vdwg.mxu0
  %3014 = vmatprep.subr.mxu0 0.0
  %3015 = vmatpush1.xpose.msra.mxu0 0.0
  %3016 = vmatprep.subr.mxu0 0.0
  %3017 = vmatpush1.xpose.msra.mxu0 0.0
  %3018 = vmatprep.subr.mxu0 0.0
  %3019 = vmatpush1.xpose.msra.mxu0 0.0
  %3020 = vmatprep.subr.mxu0 0.0
  %3021 = vmatpush1.xpose.msra.mxu0 0.0
  %3022 = vmatprep.subr.mxu0 0.0
  %3023 = vmatpush1.xpose.msra.mxu0 0.0
  %3024 = vmatprep.subr.mxu0 0.0
  %3025 = vmatpush1.xpose.msra.mxu0 0.0
  %3026 = vmatprep.subr.mxu0 0.0
  %3027 = vmatpush1.xpose.msra.mxu0 0.0
  %3028 = vmatprep.subr.mxu0 0.0
  %3029 = vmatpush1.xpose.msra.mxu0 0.0
  %3030 = vmatprep.subr.mxu0 0.0
  %3031 = vmatpush1.xpose.msra.mxu0 0.0
  %3032 = vmatprep.subr.mxu0 0.0
  %3033 = vmatpush1.xpose.msra.mxu0 0.0
  %3034 = vmatprep.subr.mxu0 0.0
  %3035 = vmatpush1.xpose.msra.mxu0 0.0
  %3036 = vmatprep.subr.mxu0 0.0
  %3037 = vmatpush1.xpose.msra.mxu0 0.0
  %3038 = vmatprep.subr.mxu0 0.0
  %3039 = vmatpush1.xpose.msra.mxu0 0.0
  %3040 = vmatprep.subr.mxu0 0.0
  %3041 = vmatpush1.xpose.msra.mxu0 0.0
  %3042 = vmatprep.subr.mxu0 0.0
  %3043 = vmatpush1.xpose.msra.mxu0 0.0
  %3044 = vmatprep.subr.mxu0 0.0
  %v3045 = vand.u32 %v2712, 4294901760
  %v3046 = vsub.f32 %v2712, %v3045
  %v3047 = vand.u32 %v3046, 4294901760
  %3048 = vmatpush1.xpose.msra.mxu0 %v3047
  %3049 = vmatprep.subr.mxu0 0.0
  %3050 = vmatpush2.xpose.msra.mxu0 0.0
  %3051 = vmatprep.subr.mxu0 0.0
  %3052 = vmatpush2.xpose.msra.mxu0 0.0
  %3053 = vmatprep.subr.mxu0 0.0
  %3054 = vmatpush2.xpose.msra.mxu0 0.0
  %3055 = vmatprep.subr.mxu0 0.0
  %3056 = vmatpush2.xpose.msra.mxu0 0.0
  %3057 = vmatprep.subr.mxu0 0.0
  %3058 = vmatpush2.xpose.msra.mxu0 0.0
  %3059 = vmatprep.subr.mxu0 0.0
  %3060 = vmatpush2.xpose.msra.mxu0 0.0
  %3061 = vmatprep.subr.mxu0 0.0
  %3062 = vmatpush2.xpose.msra.mxu0 0.0
  %3063 = vmatprep.subr.mxu0 0.0
  %3064 = vmatpush2.xpose.msra.mxu0 0.0
  %3065 = vmatprep.subr.mxu0 0.0
  %3066 = vmatpush2.xpose.msra.mxu0 0.0
  %3067 = vmatprep.subr.mxu0 0.0
  %3068 = vmatpush2.xpose.msra.mxu0 0.0
  %3069 = vmatprep.subr.mxu0 0.0
  %3070 = vmatpush2.xpose.msra.mxu0 0.0
  %3071 = vmatprep.subr.mxu0 0.0
  %3072 = vmatpush2.xpose.msra.mxu0 0.0
  %3073 = vmatprep.subr.mxu0 0.0
  %3074 = vmatpush2.xpose.msra.mxu0 0.0
  %3075 = vmatprep.subr.mxu0 0.0
  %3076 = vmatpush2.xpose.msra.mxu0 0.0
  %3077 = vmatprep.subr.mxu0 0.0
  %3078 = vmatpush2.xpose.msra.mxu0 0.0
  %3079 = vmatprep.subr.mxu0 0.0
  %3080 = vmatpush2.xpose.msra.mxu0 0.0
  %3081 = vmatprep.mubr.f32.mxu0 0.0
  %v3082 = vand.u32 %v2712, 4294901760
  %3083 = vmatmul.mubr.f32.gmra.mxu0 %v3082
  %v3084 = vpop.f32.mrf.mxu0
  %v3085 = vadd.f32 %v3011, %v3084
  %v3086 = vpop.f32.mrf.mxu0
  %3087 = vdwg.mxu0
  %3088 = vmatprep.subr.mxu0 0.0
  %3089 = vmatpush1.xpose.msra.mxu0 0.0
  %3090 = vmatprep.subr.mxu0 0.0
  %3091 = vmatpush1.xpose.msra.mxu0 0.0
  %3092 = vmatprep.subr.mxu0 0.0
  %3093 = vmatpush1.xpose.msra.mxu0 0.0
  %3094 = vmatprep.subr.mxu0 0.0
  %3095 = vmatpush1.xpose.msra.mxu0 0.0
  %3096 = vmatprep.subr.mxu0 0.0
  %3097 = vmatpush1.xpose.msra.mxu0 0.0
  %3098 = vmatprep.subr.mxu0 0.0
  %3099 = vmatpush1.xpose.msra.mxu0 0.0
  %3100 = vmatprep.subr.mxu0 0.0
  %3101 = vmatpush1.xpose.msra.mxu0 0.0
  %3102 = vmatprep.subr.mxu0 0.0
  %3103 = vmatpush1.xpose.msra.mxu0 0.0
  %3104 = vmatprep.subr.mxu0 0.0
  %3105 = vmatpush1.xpose.msra.mxu0 0.0
  %3106 = vmatprep.subr.mxu0 0.0
  %3107 = vmatpush1.xpose.msra.mxu0 0.0
  %3108 = vmatprep.subr.mxu0 0.0
  %3109 = vmatpush1.xpose.msra.mxu0 0.0
  %3110 = vmatprep.subr.mxu0 0.0
  %3111 = vmatpush1.xpose.msra.mxu0 0.0
  %3112 = vmatprep.subr.mxu0 0.0
  %3113 = vmatpush1.xpose.msra.mxu0 0.0
  %3114 = vmatprep.subr.mxu0 0.0
  %3115 = vmatpush1.xpose.msra.mxu0 0.0
  %3116 = vmatprep.subr.mxu0 0.0
  %3117 = vmatpush1.xpose.msra.mxu0 0.0
  %3118 = vmatprep.subr.mxu0 0.0
  %v3119 = vand.u32 %v2712, 4294901760
  %3120 = vmatpush1.xpose.msra.mxu0 %v3119
  %3121 = vmatprep.subr.mxu0 0.0
  %3122 = vmatpush2.xpose.msra.mxu0 0.0
  %3123 = vmatprep.subr.mxu0 0.0
  %3124 = vmatpush2.xpose.msra.mxu0 0.0
  %3125 = vmatprep.subr.mxu0 0.0
  %3126 = vmatpush2.xpose.msra.mxu0 0.0
  %3127 = vmatprep.subr.mxu0 0.0
  %3128 = vmatpush2.xpose.msra.mxu0 0.0
  %3129 = vmatprep.subr.mxu0 0.0
  %3130 = vmatpush2.xpose.msra.mxu0 0.0
  %3131 = vmatprep.subr.mxu0 0.0
  %3132 = vmatpush2.xpose.msra.mxu0 0.0
  %3133 = vmatprep.subr.mxu0 0.0
  %3134 = vmatpush2.xpose.msra.mxu0 0.0
  %3135 = vmatprep.subr.mxu0 0.0
  %3136 = vmatpush2.xpose.msra.mxu0 0.0
  %3137 = vmatprep.subr.mxu0 0.0
  %3138 = vmatpush2.xpose.msra.mxu0 0.0
  %3139 = vmatprep.subr.mxu0 0.0
  %3140 = vmatpush2.xpose.msra.mxu0 0.0
  %3141 = vmatprep.subr.mxu0 0.0
  %3142 = vmatpush2.xpose.msra.mxu0 0.0
  %3143 = vmatprep.subr.mxu0 0.0
  %3144 = vmatpush2.xpose.msra.mxu0 0.0
  %3145 = vmatprep.subr.mxu0 0.0
  %3146 = vmatpush2.xpose.msra.mxu0 0.0
  %3147 = vmatprep.subr.mxu0 0.0
  %3148 = vmatpush2.xpose.msra.mxu0 0.0
  %3149 = vmatprep.subr.mxu0 0.0
  %3150 = vmatpush2.xpose.msra.mxu0 0.0
  %3151 = vmatprep.subr.mxu0 0.0
  %3152 = vmatpush2.xpose.msra.mxu0 0.0
  %3153 = vmatprep.mubr.f32.mxu0 0.0
  %v3154 = vand.u32 %v2712, 4294901760
  %3155 = vmatmul.mubr.f32.gmra.mxu0 %v3154
  %v3156 = vpop.f32.mrf.mxu0
  %v3157 = vadd.f32 %v3085, %v3156
  %v3158 = vpop.f32.mrf.mxu0
  %3159 = vdwg.mxu0
  %v3161 = vsel %vm16, %v15, 0
  %3163 = vmatprep.subr.mxu0 0.0
  %3164 = vmatpush1.xpose.msra.mxu0 0.0
  %3165 = vmatprep.subr.mxu0 0.0
  %3166 = vmatpush1.xpose.msra.mxu0 0.0
  %3167 = vmatprep.subr.mxu0 0.0
  %3168 = vmatpush1.xpose.msra.mxu0 0.0
  %3169 = vmatprep.subr.mxu0 0.0
  %3170 = vmatpush1.xpose.msra.mxu0 0.0
  %3171 = vmatprep.subr.mxu0 0.0
  %3172 = vmatpush1.xpose.msra.mxu0 0.0
  %3173 = vmatprep.subr.mxu0 0.0
  %3174 = vmatpush1.xpose.msra.mxu0 0.0
  %3175 = vmatprep.subr.mxu0 0.0
  %3176 = vmatpush1.xpose.msra.mxu0 0.0
  %3177 = vmatprep.subr.mxu0 0.0
  %3178 = vmatpush1.xpose.msra.mxu0 0.0
  %3179 = vmatprep.subr.mxu0 0.0
  %3180 = vmatpush1.xpose.msra.mxu0 0.0
  %3181 = vmatprep.subr.mxu0 0.0
  %3182 = vmatpush1.xpose.msra.mxu0 0.0
  %3183 = vmatprep.subr.mxu0 0.0
  %3184 = vmatpush1.xpose.msra.mxu0 0.0
  %3185 = vmatprep.subr.mxu0 0.0
  %3186 = vmatpush1.xpose.msra.mxu0 0.0
  %3187 = vmatprep.subr.mxu0 0.0
  %3188 = vmatpush1.xpose.msra.mxu0 0.0
  %3189 = vmatprep.subr.mxu0 0.0
  %3190 = vmatpush1.xpose.msra.mxu0 0.0
  %3191 = vmatprep.subr.mxu0 0.0
  %3192 = vmatpush1.xpose.msra.mxu0 0.0
  %3193 = vmatprep.subr.mxu0 0.0
  %v3194 = vand.u32 %v3161, 4294901760
  %3195 = vmatpush1.xpose.msra.mxu0 %v3194
  %3196 = vmatprep.subr.mxu0 0.0
  %3197 = vmatpush2.xpose.msra.mxu0 0.0
  %3198 = vmatprep.subr.mxu0 0.0
  %3199 = vmatpush2.xpose.msra.mxu0 0.0
  %3200 = vmatprep.subr.mxu0 0.0
  %3201 = vmatpush2.xpose.msra.mxu0 0.0
  %3202 = vmatprep.subr.mxu0 0.0
  %3203 = vmatpush2.xpose.msra.mxu0 0.0
  %3204 = vmatprep.subr.mxu0 0.0
  %3205 = vmatpush2.xpose.msra.mxu0 0.0
  %3206 = vmatprep.subr.mxu0 0.0
  %3207 = vmatpush2.xpose.msra.mxu0 0.0
  %3208 = vmatprep.subr.mxu0 0.0
  %3209 = vmatpush2.xpose.msra.mxu0 0.0
  %3210 = vmatprep.subr.mxu0 0.0
  %3211 = vmatpush2.xpose.msra.mxu0 0.0
  %3212 = vmatprep.subr.mxu0 0.0
  %3213 = vmatpush2.xpose.msra.mxu0 0.0
  %3214 = vmatprep.subr.mxu0 0.0
  %3215 = vmatpush2.xpose.msra.mxu0 0.0
  %3216 = vmatprep.subr.mxu0 0.0
  %3217 = vmatpush2.xpose.msra.mxu0 0.0
  %3218 = vmatprep.subr.mxu0 0.0
  %3219 = vmatpush2.xpose.msra.mxu0 0.0
  %3220 = vmatprep.subr.mxu0 0.0
  %3221 = vmatpush2.xpose.msra.mxu0 0.0
  %3222 = vmatprep.subr.mxu0 0.0
  %3223 = vmatpush2.xpose.msra.mxu0 0.0
  %3224 = vmatprep.subr.mxu0 0.0
  %3225 = vmatpush2.xpose.msra.mxu0 0.0
  %3226 = vmatprep.subr.mxu0 0.0
  %3227 = vmatpush2.xpose.msra.mxu0 0.0
  %3228 = vmatprep.mubr.f32.mxu0 0.0
  %v3229 = vand.u32 %v3161, 4294901760
  %v3230 = vsub.f32 %v3161, %v3229
  %v3231 = vand.u32 %v3230, 4294901760
  %v3232 = vsub.f32 %v3230, %v3231
  %v3233 = vand.u32 %v3232, 4294901760
  %3234 = vmatmul.mubr.f32.gmra.mxu0 %v3233
  %v3235 = vpop.f32.mrf.mxu0
  %v3236 = vadd.f32 0.0, %v3235
  %v3237 = vpop.f32.mrf.mxu0
  %3238 = vdwg.mxu0
  %3239 = vmatprep.subr.mxu0 0.0
  %3240 = vmatpush1.xpose.msra.mxu0 0.0
  %3241 = vmatprep.subr.mxu0 0.0
  %3242 = vmatpush1.xpose.msra.mxu0 0.0
  %3243 = vmatprep.subr.mxu0 0.0
  %3244 = vmatpush1.xpose.msra.mxu0 0.0
  %3245 = vmatprep.subr.mxu0 0.0
  %3246 = vmatpush1.xpose.msra.mxu0 0.0
  %3247 = vmatprep.subr.mxu0 0.0
  %3248 = vmatpush1.xpose.msra.mxu0 0.0
  %3249 = vmatprep.subr.mxu0 0.0
  %3250 = vmatpush1.xpose.msra.mxu0 0.0
  %3251 = vmatprep.subr.mxu0 0.0
  %3252 = vmatpush1.xpose.msra.mxu0 0.0
  %3253 = vmatprep.subr.mxu0 0.0
  %3254 = vmatpush1.xpose.msra.mxu0 0.0
  %3255 = vmatprep.subr.mxu0 0.0
  %3256 = vmatpush1.xpose.msra.mxu0 0.0
  %3257 = vmatprep.subr.mxu0 0.0
  %3258 = vmatpush1.xpose.msra.mxu0 0.0
  %3259 = vmatprep.subr.mxu0 0.0
  %3260 = vmatpush1.xpose.msra.mxu0 0.0
  %3261 = vmatprep.subr.mxu0 0.0
  %3262 = vmatpush1.xpose.msra.mxu0 0.0
  %3263 = vmatprep.subr.mxu0 0.0
  %3264 = vmatpush1.xpose.msra.mxu0 0.0
  %3265 = vmatprep.subr.mxu0 0.0
  %3266 = vmatpush1.xpose.msra.mxu0 0.0
  %3267 = vmatprep.subr.mxu0 0.0
  %3268 = vmatpush1.xpose.msra.mxu0 0.0
  %3269 = vmatprep.subr.mxu0 0.0
  %v3270 = vand.u32 %v3161, 4294901760
  %v3271 = vsub.f32 %v3161, %v3270
  %v3272 = vand.u32 %v3271, 4294901760
  %v3273 = vsub.f32 %v3271, %v3272
  %v3274 = vand.u32 %v3273, 4294901760
  %3275 = vmatpush1.xpose.msra.mxu0 %v3274
  %3276 = vmatprep.subr.mxu0 0.0
  %3277 = vmatpush2.xpose.msra.mxu0 0.0
  %3278 = vmatprep.subr.mxu0 0.0
  %3279 = vmatpush2.xpose.msra.mxu0 0.0
  %3280 = vmatprep.subr.mxu0 0.0
  %3281 = vmatpush2.xpose.msra.mxu0 0.0
  %3282 = vmatprep.subr.mxu0 0.0
  %3283 = vmatpush2.xpose.msra.mxu0 0.0
  %3284 = vmatprep.subr.mxu0 0.0
  %3285 = vmatpush2.xpose.msra.mxu0 0.0
  %3286 = vmatprep.subr.mxu0 0.0
  %3287 = vmatpush2.xpose.msra.mxu0 0.0
  %3288 = vmatprep.subr.mxu0 0.0
  %3289 = vmatpush2.xpose.msra.mxu0 0.0
  %3290 = vmatprep.subr.mxu0 0.0
  %3291 = vmatpush2.xpose.msra.mxu0 0.0
  %3292 = vmatprep.subr.mxu0 0.0
  %3293 = vmatpush2.xpose.msra.mxu0 0.0
  %3294 = vmatprep.subr.mxu0 0.0
  %3295 = vmatpush2.xpose.msra.mxu0 0.0
  %3296 = vmatprep.subr.mxu0 0.0
  %3297 = vmatpush2.xpose.msra.mxu0 0.0
  %3298 = vmatprep.subr.mxu0 0.0
  %3299 = vmatpush2.xpose.msra.mxu0 0.0
  %3300 = vmatprep.subr.mxu0 0.0
  %3301 = vmatpush2.xpose.msra.mxu0 0.0
  %3302 = vmatprep.subr.mxu0 0.0
  %3303 = vmatpush2.xpose.msra.mxu0 0.0
  %3304 = vmatprep.subr.mxu0 0.0
  %3305 = vmatpush2.xpose.msra.mxu0 0.0
  %3306 = vmatprep.subr.mxu0 0.0
  %3307 = vmatpush2.xpose.msra.mxu0 0.0
  %3308 = vmatprep.mubr.f32.mxu0 0.0
  %v3309 = vand.u32 %v3161, 4294901760
  %3310 = vmatmul.mubr.f32.gmra.mxu0 %v3309
  %v3311 = vpop.f32.mrf.mxu0
  %v3312 = vadd.f32 %v3236, %v3311
  %v3313 = vpop.f32.mrf.mxu0
  %3314 = vdwg.mxu0
  %3315 = vmatprep.subr.mxu0 0.0
  %3316 = vmatpush1.xpose.msra.mxu0 0.0
  %3317 = vmatprep.subr.mxu0 0.0
  %3318 = vmatpush1.xpose.msra.mxu0 0.0
  %3319 = vmatprep.subr.mxu0 0.0
  %3320 = vmatpush1.xpose.msra.mxu0 0.0
  %3321 = vmatprep.subr.mxu0 0.0
  %3322 = vmatpush1.xpose.msra.mxu0 0.0
  %3323 = vmatprep.subr.mxu0 0.0
  %3324 = vmatpush1.xpose.msra.mxu0 0.0
  %3325 = vmatprep.subr.mxu0 0.0
  %3326 = vmatpush1.xpose.msra.mxu0 0.0
  %3327 = vmatprep.subr.mxu0 0.0
  %3328 = vmatpush1.xpose.msra.mxu0 0.0
  %3329 = vmatprep.subr.mxu0 0.0
  %3330 = vmatpush1.xpose.msra.mxu0 0.0
  %3331 = vmatprep.subr.mxu0 0.0
  %3332 = vmatpush1.xpose.msra.mxu0 0.0
  %3333 = vmatprep.subr.mxu0 0.0
  %3334 = vmatpush1.xpose.msra.mxu0 0.0
  %3335 = vmatprep.subr.mxu0 0.0
  %3336 = vmatpush1.xpose.msra.mxu0 0.0
  %3337 = vmatprep.subr.mxu0 0.0
  %3338 = vmatpush1.xpose.msra.mxu0 0.0
  %3339 = vmatprep.subr.mxu0 0.0
  %3340 = vmatpush1.xpose.msra.mxu0 0.0
  %3341 = vmatprep.subr.mxu0 0.0
  %3342 = vmatpush1.xpose.msra.mxu0 0.0
  %3343 = vmatprep.subr.mxu0 0.0
  %3344 = vmatpush1.xpose.msra.mxu0 0.0
  %3345 = vmatprep.subr.mxu0 0.0
  %v3346 = vand.u32 %v3161, 4294901760
  %v3347 = vsub.f32 %v3161, %v3346
  %3348 = vmatpush1.xpose.msra.mxu0 %v3347
  %3349 = vmatprep.subr.mxu0 0.0
  %3350 = vmatpush2.xpose.msra.mxu0 0.0
  %3351 = vmatprep.subr.mxu0 0.0
  %3352 = vmatpush2.xpose.msra.mxu0 0.0
  %3353 = vmatprep.subr.mxu0 0.0
  %3354 = vmatpush2.xpose.msra.mxu0 0.0
  %3355 = vmatprep.subr.mxu0 0.0
  %3356 = vmatpush2.xpose.msra.mxu0 0.0
  %3357 = vmatprep.subr.mxu0 0.0
  %3358 = vmatpush2.xpose.msra.mxu0 0.0
  %3359 = vmatprep.subr.mxu0 0.0
  %3360 = vmatpush2.xpose.msra.mxu0 0.0
  %3361 = vmatprep.subr.mxu0 0.0
  %3362 = vmatpush2.xpose.msra.mxu0 0.0
  %3363 = vmatprep.subr.mxu0 0.0
  %3364 = vmatpush2.xpose.msra.mxu0 0.0
  %3365 = vmatprep.subr.mxu0 0.0
  %3366 = vmatpush2.xpose.msra.mxu0 0.0
  %3367 = vmatprep.subr.mxu0 0.0
  %3368 = vmatpush2.xpose.msra.mxu0 0.0
  %3369 = vmatprep.subr.mxu0 0.0
  %3370 = vmatpush2.xpose.msra.mxu0 0.0
  %3371 = vmatprep.subr.mxu0 0.0
  %3372 = vmatpush2.xpose.msra.mxu0 0.0
  %3373 = vmatprep.subr.mxu0 0.0
  %3374 = vmatpush2.xpose.msra.mxu0 0.0
  %3375 = vmatprep.subr.mxu0 0.0
  %3376 = vmatpush2.xpose.msra.mxu0 0.0
  %3377 = vmatprep.subr.mxu0 0.0
  %3378 = vmatpush2.xpose.msra.mxu0 0.0
  %3379 = vmatprep.subr.mxu0 0.0
  %3380 = vmatpush2.xpose.msra.mxu0 0.0
  %3381 = vmatprep.mubr.f32.mxu0 0.0
  %v3382 = vand.u32 %v3161, 4294901760
  %v3383 = vsub.f32 %v3161, %v3382
  %3384 = vmatmul.mubr.f32.gmra.mxu0 %v3383
  %v3385 = vpop.f32.mrf.mxu0
  %v3386 = vadd.f32 %v3312, %v3385
  %v3387 = vpop.f32.mrf.mxu0
  %3388 = vdwg.mxu0
  %3389 = vmatprep.subr.mxu0 0.0
  %3390 = vmatpush1.xpose.msra.mxu0 0.0
  %3391 = vmatprep.subr.mxu0 0.0
  %3392 = vmatpush1.xpose.msra.mxu0 0.0
  %3393 = vmatprep.subr.mxu0 0.0
  %3394 = vmatpush1.xpose.msra.mxu0 0.0
  %3395 = vmatprep.subr.mxu0 0.0
  %3396 = vmatpush1.xpose.msra.mxu0 0.0
  %3397 = vmatprep.subr.mxu0 0.0
  %3398 = vmatpush1.xpose.msra.mxu0 0.0
  %3399 = vmatprep.subr.mxu0 0.0
  %3400 = vmatpush1.xpose.msra.mxu0 0.0
  %3401 = vmatprep.subr.mxu0 0.0
  %3402 = vmatpush1.xpose.msra.mxu0 0.0
  %3403 = vmatprep.subr.mxu0 0.0
  %3404 = vmatpush1.xpose.msra.mxu0 0.0
  %3405 = vmatprep.subr.mxu0 0.0
  %3406 = vmatpush1.xpose.msra.mxu0 0.0
  %3407 = vmatprep.subr.mxu0 0.0
  %3408 = vmatpush1.xpose.msra.mxu0 0.0
  %3409 = vmatprep.subr.mxu0 0.0
  %3410 = vmatpush1.xpose.msra.mxu0 0.0
  %3411 = vmatprep.subr.mxu0 0.0
  %3412 = vmatpush1.xpose.msra.mxu0 0.0
  %3413 = vmatprep.subr.mxu0 0.0
  %3414 = vmatpush1.xpose.msra.mxu0 0.0
  %3415 = vmatprep.subr.mxu0 0.0
  %3416 = vmatpush1.xpose.msra.mxu0 0.0
  %3417 = vmatprep.subr.mxu0 0.0
  %3418 = vmatpush1.xpose.msra.mxu0 0.0
  %3419 = vmatprep.subr.mxu0 0.0
  %v3420 = vand.u32 %v3161, 4294901760
  %3421 = vmatpush1.xpose.msra.mxu0 %v3420
  %3422 = vmatprep.subr.mxu0 0.0
  %3423 = vmatpush2.xpose.msra.mxu0 0.0
  %3424 = vmatprep.subr.mxu0 0.0
  %3425 = vmatpush2.xpose.msra.mxu0 0.0
  %3426 = vmatprep.subr.mxu0 0.0
  %3427 = vmatpush2.xpose.msra.mxu0 0.0
  %3428 = vmatprep.subr.mxu0 0.0
  %3429 = vmatpush2.xpose.msra.mxu0 0.0
  %3430 = vmatprep.subr.mxu0 0.0
  %3431 = vmatpush2.xpose.msra.mxu0 0.0
  %3432 = vmatprep.subr.mxu0 0.0
  %3433 = vmatpush2.xpose.msra.mxu0 0.0
  %3434 = vmatprep.subr.mxu0 0.0
  %3435 = vmatpush2.xpose.msra.mxu0 0.0
  %3436 = vmatprep.subr.mxu0 0.0
  %3437 = vmatpush2.xpose.msra.mxu0 0.0
  %3438 = vmatprep.subr.mxu0 0.0
  %3439 = vmatpush2.xpose.msra.mxu0 0.0
  %3440 = vmatprep.subr.mxu0 0.0
  %3441 = vmatpush2.xpose.msra.mxu0 0.0
  %3442 = vmatprep.subr.mxu0 0.0
  %3443 = vmatpush2.xpose.msra.mxu0 0.0
  %3444 = vmatprep.subr.mxu0 0.0
  %3445 = vmatpush2.xpose.msra.mxu0 0.0
  %3446 = vmatprep.subr.mxu0 0.0
  %3447 = vmatpush2.xpose.msra.mxu0 0.0
  %3448 = vmatprep.subr.mxu0 0.0
  %3449 = vmatpush2.xpose.msra.mxu0 0.0
  %3450 = vmatprep.subr.mxu0 0.0
  %3451 = vmatpush2.xpose.msra.mxu0 0.0
  %3452 = vmatprep.subr.mxu0 0.0
  %3453 = vmatpush2.xpose.msra.mxu0 0.0
  %3454 = vmatprep.mubr.f32.mxu0 0.0
  %v3455 = vand.u32 %v3161, 4294901760
  %v3456 = vsub.f32 %v3161, %v3455
  %v3457 = vand.u32 %v3456, 4294901760
  %3458 = vmatmul.mubr.f32.gmra.mxu0 %v3457
  %v3459 = vpop.f32.mrf.mxu0
  %v3460 = vadd.f32 %v3386, %v3459
  %v3461 = vpop.f32.mrf.mxu0
  %3462 = vdwg.mxu0
  %3463 = vmatprep.subr.mxu0 0.0
  %3464 = vmatpush1.xpose.msra.mxu0 0.0
  %3465 = vmatprep.subr.mxu0 0.0
  %3466 = vmatpush1.xpose.msra.mxu0 0.0
  %3467 = vmatprep.subr.mxu0 0.0
  %3468 = vmatpush1.xpose.msra.mxu0 0.0
  %3469 = vmatprep.subr.mxu0 0.0
  %3470 = vmatpush1.xpose.msra.mxu0 0.0
  %3471 = vmatprep.subr.mxu0 0.0
  %3472 = vmatpush1.xpose.msra.mxu0 0.0
  %3473 = vmatprep.subr.mxu0 0.0
  %3474 = vmatpush1.xpose.msra.mxu0 0.0
  %3475 = vmatprep.subr.mxu0 0.0
  %3476 = vmatpush1.xpose.msra.mxu0 0.0
  %3477 = vmatprep.subr.mxu0 0.0
  %3478 = vmatpush1.xpose.msra.mxu0 0.0
  %3479 = vmatprep.subr.mxu0 0.0
  %3480 = vmatpush1.xpose.msra.mxu0 0.0
  %3481 = vmatprep.subr.mxu0 0.0
  %3482 = vmatpush1.xpose.msra.mxu0 0.0
  %3483 = vmatprep.subr.mxu0 0.0
  %3484 = vmatpush1.xpose.msra.mxu0 0.0
  %3485 = vmatprep.subr.mxu0 0.0
  %3486 = vmatpush1.xpose.msra.mxu0 0.0
  %3487 = vmatprep.subr.mxu0 0.0
  %3488 = vmatpush1.xpose.msra.mxu0 0.0
  %3489 = vmatprep.subr.mxu0 0.0
  %3490 = vmatpush1.xpose.msra.mxu0 0.0
  %3491 = vmatprep.subr.mxu0 0.0
  %3492 = vmatpush1.xpose.msra.mxu0 0.0
  %3493 = vmatprep.subr.mxu0 0.0
  %v3494 = vand.u32 %v3161, 4294901760
  %v3495 = vsub.f32 %v3161, %v3494
  %v3496 = vand.u32 %v3495, 4294901760
  %3497 = vmatpush1.xpose.msra.mxu0 %v3496
  %3498 = vmatprep.subr.mxu0 0.0
  %3499 = vmatpush2.xpose.msra.mxu0 0.0
  %3500 = vmatprep.subr.mxu0 0.0
  %3501 = vmatpush2.xpose.msra.mxu0 0.0
  %3502 = vmatprep.subr.mxu0 0.0
  %3503 = vmatpush2.xpose.msra.mxu0 0.0
  %3504 = vmatprep.subr.mxu0 0.0
  %3505 = vmatpush2.xpose.msra.mxu0 0.0
  %3506 = vmatprep.subr.mxu0 0.0
  %3507 = vmatpush2.xpose.msra.mxu0 0.0
  %3508 = vmatprep.subr.mxu0 0.0
  %3509 = vmatpush2.xpose.msra.mxu0 0.0
  %3510 = vmatprep.subr.mxu0 0.0
  %3511 = vmatpush2.xpose.msra.mxu0 0.0
  %3512 = vmatprep.subr.mxu0 0.0
  %3513 = vmatpush2.xpose.msra.mxu0 0.0
  %3514 = vmatprep.subr.mxu0 0.0
  %3515 = vmatpush2.xpose.msra.mxu0 0.0
  %3516 = vmatprep.subr.mxu0 0.0
  %3517 = vmatpush2.xpose.msra.mxu0 0.0
  %3518 = vmatprep.subr.mxu0 0.0
  %3519 = vmatpush2.xpose.msra.mxu0 0.0
  %3520 = vmatprep.subr.mxu0 0.0
  %3521 = vmatpush2.xpose.msra.mxu0 0.0
  %3522 = vmatprep.subr.mxu0 0.0
  %3523 = vmatpush2.xpose.msra.mxu0 0.0
  %3524 = vmatprep.subr.mxu0 0.0
  %3525 = vmatpush2.xpose.msra.mxu0 0.0
  %3526 = vmatprep.subr.mxu0 0.0
  %3527 = vmatpush2.xpose.msra.mxu0 0.0
  %3528 = vmatprep.subr.mxu0 0.0
  %3529 = vmatpush2.xpose.msra.mxu0 0.0
  %3530 = vmatprep.mubr.f32.mxu0 0.0
  %v3531 = vand.u32 %v3161, 4294901760
  %3532 = vmatmul.mubr.f32.gmra.mxu0 %v3531
  %v3533 = vpop.f32.mrf.mxu0
  %v3534 = vadd.f32 %v3460, %v3533
  %v3535 = vpop.f32.mrf.mxu0
  %3536 = vdwg.mxu0
  %3537 = vmatprep.subr.mxu0 0.0
  %3538 = vmatpush1.xpose.msra.mxu0 0.0
  %3539 = vmatprep.subr.mxu0 0.0
  %3540 = vmatpush1.xpose.msra.mxu0 0.0
  %3541 = vmatprep.subr.mxu0 0.0
  %3542 = vmatpush1.xpose.msra.mxu0 0.0
  %3543 = vmatprep.subr.mxu0 0.0
  %3544 = vmatpush1.xpose.msra.mxu0 0.0
  %3545 = vmatprep.subr.mxu0 0.0
  %3546 = vmatpush1.xpose.msra.mxu0 0.0
  %3547 = vmatprep.subr.mxu0 0.0
  %3548 = vmatpush1.xpose.msra.mxu0 0.0
  %3549 = vmatprep.subr.mxu0 0.0
  %3550 = vmatpush1.xpose.msra.mxu0 0.0
  %3551 = vmatprep.subr.mxu0 0.0
  %3552 = vmatpush1.xpose.msra.mxu0 0.0
  %3553 = vmatprep.subr.mxu0 0.0
  %3554 = vmatpush1.xpose.msra.mxu0 0.0
  %3555 = vmatprep.subr.mxu0 0.0
  %3556 = vmatpush1.xpose.msra.mxu0 0.0
  %3557 = vmatprep.subr.mxu0 0.0
  %3558 = vmatpush1.xpose.msra.mxu0 0.0
  %3559 = vmatprep.subr.mxu0 0.0
  %3560 = vmatpush1.xpose.msra.mxu0 0.0
  %3561 = vmatprep.subr.mxu0 0.0
  %3562 = vmatpush1.xpose.msra.mxu0 0.0
  %3563 = vmatprep.subr.mxu0 0.0
  %3564 = vmatpush1.xpose.msra.mxu0 0.0
  %3565 = vmatprep.subr.mxu0 0.0
  %3566 = vmatpush1.xpose.msra.mxu0 0.0
  %3567 = vmatprep.subr.mxu0 0.0
  %v3568 = vand.u32 %v3161, 4294901760
  %3569 = vmatpush1.xpose.msra.mxu0 %v3568
  %3570 = vmatprep.subr.mxu0 0.0
  %3571 = vmatpush2.xpose.msra.mxu0 0.0
  %3572 = vmatprep.subr.mxu0 0.0
  %3573 = vmatpush2.xpose.msra.mxu0 0.0
  %3574 = vmatprep.subr.mxu0 0.0
  %3575 = vmatpush2.xpose.msra.mxu0 0.0
  %3576 = vmatprep.subr.mxu0 0.0
  %3577 = vmatpush2.xpose.msra.mxu0 0.0
  %3578 = vmatprep.subr.mxu0 0.0
  %3579 = vmatpush2.xpose.msra.mxu0 0.0
  %3580 = vmatprep.subr.mxu0 0.0
  %3581 = vmatpush2.xpose.msra.mxu0 0.0
  %3582 = vmatprep.subr.mxu0 0.0
  %3583 = vmatpush2.xpose.msra.mxu0 0.0
  %3584 = vmatprep.subr.mxu0 0.0
  %3585 = vmatpush2.xpose.msra.mxu0 0.0
  %3586 = vmatprep.subr.mxu0 0.0
  %3587 = vmatpush2.xpose.msra.mxu0 0.0
  %3588 = vmatprep.subr.mxu0 0.0
  %3589 = vmatpush2.xpose.msra.mxu0 0.0
  %3590 = vmatprep.subr.mxu0 0.0
  %3591 = vmatpush2.xpose.msra.mxu0 0.0
  %3592 = vmatprep.subr.mxu0 0.0
  %3593 = vmatpush2.xpose.msra.mxu0 0.0
  %3594 = vmatprep.subr.mxu0 0.0
  %3595 = vmatpush2.xpose.msra.mxu0 0.0
  %3596 = vmatprep.subr.mxu0 0.0
  %3597 = vmatpush2.xpose.msra.mxu0 0.0
  %3598 = vmatprep.subr.mxu0 0.0
  %3599 = vmatpush2.xpose.msra.mxu0 0.0
  %3600 = vmatprep.subr.mxu0 0.0
  %3601 = vmatpush2.xpose.msra.mxu0 0.0
  %3602 = vmatprep.mubr.f32.mxu0 0.0
  %v3603 = vand.u32 %v3161, 4294901760
  %3604 = vmatmul.mubr.f32.gmra.mxu0 %v3603
  %v3605 = vpop.f32.mrf.mxu0
  %v3606 = vadd.f32 %v3534, %v3605
  %v3607 = vpop.f32.mrf.mxu0
  %3608 = vdwg.mxu0
  %v3609 = vmul.f32 %v8, %v8
  %v3610 = vmul.f32 %v9, %v9
  %v3611 = vmul.f32 %v10, %v10
  %v3612 = vmul.f32 %v11, %v11
  %v3613 = vmul.f32 %v12, %v12
  %v3614 = vmul.f32 %v13, %v13
  %v3615 = vmul.f32 %v14, %v14
  %v3616 = vmul.f32 %v15, %v15
  %vm3617 = vcmask 257024
  %v3618 = vsel %vm3617, %v3609, 0.0
  %3619 = vadd.xlane.f32.xlu0 %v3618
  %v3620 = vpop.xlane.xlu0 %3619
  %v3621 = vsel %vm3617, %v3610, 0.0
  %3622 = vadd.xlane.f32.xlu0 %v3621
  %v3623 = vpop.xlane.xlu0 %3622
  %v3624 = vsel %vm3617, %v3611, 0.0
  %3625 = vadd.xlane.f32.xlu0 %v3624
  %v3626 = vpop.xlane.xlu0 %3625
  %v3627 = vsel %vm3617, %v3612, 0.0
  %3628 = vadd.xlane.f32.xlu0 %v3627
  %v3629 = vpop.xlane.xlu0 %3628
  %v3630 = vsel %vm3617, %v3613, 0.0
  %3631 = vadd.xlane.f32.xlu0 %v3630
  %v3632 = vpop.xlane.xlu0 %3631
  %v3633 = vsel %vm3617, %v3614, 0.0
  %3634 = vadd.xlane.f32.xlu0 %v3633
  %v3635 = vpop.xlane.xlu0 %3634
  %v3636 = vsel %vm3617, %v3615, 0.0
  %3637 = vadd.xlane.f32.xlu0 %v3636
  %v3638 = vpop.xlane.xlu0 %3637
  %v3639 = vsel %vm3617, %v3616, 0.0
  %3640 = vadd.xlane.f32.xlu0 %v3639
  %v3641 = vpop.xlane.xlu0 %3640
  %v3650 = vlaneseq
  %v3651 = vand.u32 %v3650, 127
  %v3652 = vlaneseq
  %v3653 = vshrl.u32 %v3652, 7
  %v3654 = vsub.s32 %v3651, %v3653
  %v3655 = vrot.slane %v3620, %v3654
  %v3656 = vlaneseq
  %v3657 = vshrl.u32 %v3656, 7
  %v3658 = vsub.s32 %v3651, %v3657
  %v3659 = vrot.slane %v3623, %v3658
  %v3660 = vlaneseq
  %v3661 = vshrl.u32 %v3660, 7
  %v3662 = vsub.s32 %v3651, %v3661
  %v3663 = vrot.slane %v3626, %v3662
  %v3664 = vlaneseq
  %v3665 = vshrl.u32 %v3664, 7
  %v3666 = vsub.s32 %v3651, %v3665
  %v3667 = vrot.slane %v3629, %v3666
  %v3668 = vlaneseq
  %v3669 = vshrl.u32 %v3668, 7
  %v3670 = vsub.s32 %v3651, %v3669
  %v3671 = vrot.slane %v3632, %v3670
  %v3672 = vlaneseq
  %v3673 = vshrl.u32 %v3672, 7
  %v3674 = vsub.s32 %v3651, %v3673
  %v3675 = vrot.slane %v3635, %v3674
  %v3676 = vlaneseq
  %v3677 = vshrl.u32 %v3676, 7
  %v3678 = vsub.s32 %v3651, %v3677
  %v3679 = vrot.slane %v3638, %v3678
  %v3680 = vlaneseq
  %v3681 = vshrl.u32 %v3680, 7
  %v3682 = vsub.s32 %v3651, %v3681
  %v3683 = vrot.slane %v3641, %v3682
  %vm3684 = vcmask 1042434
  %v3685 = vsel %vm3684, %v3655, %v3655
  %vm3686 = vcmask 1043459
  %v3687 = vsel %vm3686, %v3655, %v3685
  %v3688 = vsel %vm3684, %v3659, %v3659
  %v3689 = vsel %vm3686, %v3659, %v3688
  %v3690 = vsel %vm3684, %v3663, %v3663
  %v3691 = vsel %vm3686, %v3663, %v3690
  %v3692 = vsel %vm3684, %v3667, %v3667
  %v3693 = vsel %vm3686, %v3667, %v3692
  %v3694 = vsel %vm3684, %v3671, %v3671
  %v3695 = vsel %vm3686, %v3671, %v3694
  %v3696 = vsel %vm3684, %v3675, %v3675
  %v3697 = vsel %vm3686, %v3675, %v3696
  %v3698 = vsel %vm3684, %v3679, %v3679
  %v3699 = vsel %vm3686, %v3679, %v3698
  %v3700 = vsel %vm3684, %v3683, %v3683
  %v3701 = vsel %vm3686, %v3683, %v3700
  %v3710 = vmul.f32 %v3620, %v3687
  %v3711 = vmul.f32 %v3623, %v3689
  %v3712 = vmul.f32 %v3626, %v3691
  %v3713 = vmul.f32 %v3629, %v3693
  %v3714 = vmul.f32 %v3632, %v3695
  %v3715 = vmul.f32 %v3635, %v3697
  %v3716 = vmul.f32 %v3638, %v3699
  %v3717 = vmul.f32 %v3641, %v3701
  %v3718 = vmax.f32 %v3710, 1e-18
  %v3719 = vmax.f32 %v3711, 1e-18
  %v3720 = vmax.f32 %v3712, 1e-18
  %v3721 = vmax.f32 %v3713, 1e-18
  %v3722 = vmax.f32 %v3714, 1e-18
  %v3723 = vmax.f32 %v3715, 1e-18
  %v3724 = vmax.f32 %v3716, 1e-18
  %v3725 = vmax.f32 %v3717, 1e-18
  %v3726 = vrsqrt.pop %v3718
  %v3727 = vrsqrt.pop %v3719
  %v3728 = vrsqrt.pop %v3720
  %v3729 = vrsqrt.pop %v3721
  %v3730 = vrsqrt.pop %v3722
  %v3731 = vrsqrt.pop %v3723
  %v3732 = vrsqrt.pop %v3724
  %v3733 = vrsqrt.pop %v3725
  %v3734 = vmul.f32 %v463, %v3726
  %v3735 = vmul.f32 %v912, %v3727
  %v3736 = vmul.f32 %v1361, %v3728
  %v3737 = vmul.f32 %v1810, %v3729
  %v3738 = vmul.f32 %v2259, %v3730
  %v3739 = vmul.f32 %v2708, %v3731
  %v3740 = vmul.f32 %v3157, %v3732
  %v3741 = vmul.f32 %v3606, %v3733
  %vm3742 = vcmask 27648
  %3743 = vst.msk [vmem:[%s1] sm:$0xf] %vm3742, %v3734
  %3744 = vst.msk [vmem:[%s1 + $0x4] sm:$0xf] %vm3742, %v3735
  %3745 = vst.msk [vmem:[%s1 + $0x8] sm:$0xf] %vm3742, %v3736
  %3746 = vst.msk [vmem:[%s1 + $0xc] sm:$0xf] %vm3742, %v3737
  %3747 = vst.msk [vmem:[%s1 + $0x10] sm:$0xf] %vm3742, %v3738
  %3748 = vst.msk [vmem:[%s1 + $0x14] sm:$0xf] %vm3742, %v3739
  %3749 = vst.msk [vmem:[%s1 + $0x18] sm:$0xf] %vm3742, %v3740
  %3750 = vst.msk [vmem:[%s1 + $0x1c] sm:$0xf] %vm3742, %v3741
  // Predicated region
  $region6: #{a_call__.1} parent=0 // pred_check
    _
  $region7: #{a_call__.1} parent=0 // pred_check_branch
    %3752 = sbr.rel (0) target = $region9
  $region8: #{a_call__.1} parent=0 // pred_region
    _
  $region9: #{a_call__.1} parent=0 // pred_fallthru
    _
  // Predicated region
  $region10: #{a_call__.1} parent=0 // pred_check
    _
  $region11: #{a_call__.1} parent=0 // pred_check_branch
    %3754 = sbr.rel (0) target = $region13
  $region12: #{a_call__.1} parent=0 // pred_region
    _
  $region13: #{a_call__.1} parent=0 // pred_fallthru
    _

</llo_original>
